<compile_context>
chip_gen: v7x
topology: tpu7x:2x2x1
jax: 0.10.0
libtpu: 0.0.40
codegen_flags: <defaults>
</compile_context>

<pallas_src>
import functools
import math

import jax
import jax.numpy as jnp
from jax.experimental import pallas as pl
from jax.experimental.pallas import tpu as pltpu

HIDDEN = 100          # fixed by the module (self.hidden_size = 100)
N_HEADS = 1           # self.attn_heads = 1
LAYERNORM_EPS = 1e-6  # repo's custom LayerNorm uses eps=1e-6

LANE = 128
HP = 128              # hidden padded to lane width
FFP = 512             # 4*hidden padded to lane width


def _round_up(v, m):
    return (v + m - 1) // m * m


def _gelu_tanh(x):
    # BERT-repo GELU: 0.5*x*(1 + tanh(sqrt(2/pi)*(x + 0.044715*x^3)))
    return 0.5 * x * (1.0 + jnp.tanh(
        math.sqrt(2.0 / math.pi) * (x + 0.044715 * x * x * x)))


def _masked_layernorm(x, g, b, lane_mask, inv_h):
    # LayerNorm statistics over the TRUE hidden features only (padded lanes
    # masked); padded gamma/beta are zero so padded output lanes stay zero.
    xm = jnp.where(lane_mask, x, 0.0)
    mu = jnp.sum(xm, axis=-1, keepdims=True) * inv_h
    d = jnp.where(lane_mask, x - mu, 0.0)
    var = jnp.sum(d * d, axis=-1, keepdims=True) * inv_h
    return g * (x - mu) * jax.lax.rsqrt(var + LAYERNORM_EPS) + b


def bert_block_kernel(x_ref, pos_ref, bias_ref,
                      ln1_g_ref, ln1_b_ref,
                      wq_ref, bq_ref, wk_ref, bk_ref, wv_ref, bv_ref,
                      wo_ref, bo_ref,
                      ln2_g_ref, ln2_b_ref,
                      w1_ref, b1_ref, w2_ref, b2_ref,
                      fc_w_ref, fc_b_ref,
                      out_seq_ref, logits_ref,
                      *, compute_dtype):
    f32 = jnp.float32
    inv_sqrt_dk = 1.0 / math.sqrt(HIDDEN // N_HEADS)   # true d_k = 100
    inv_h = 1.0 / HIDDEN

    lane_mask = jax.lax.broadcasted_iota(jnp.int32, (1, HP), 1) < HIDDEN

    def mm(a, w):
        return jnp.dot(a.astype(compute_dtype), w.astype(compute_dtype),
                       preferred_element_type=f32)

    # ---- embedding (fused): zero CLS placeholder row + data rows, plus the
    #      (positional + CLS-token) table tiled over the batch tile ----
    x = x_ref[...] + pos_ref[...]                       # (R, HP) f32

    # ---- pre-LN self-attention sublayer ----
    xn = _masked_layernorm(x, ln1_g_ref[...], ln1_b_ref[...], lane_mask, inv_h)
    q = mm(xn, wq_ref[...]) + bq_ref[...]
    k = mm(xn, wk_ref[...]) + bk_ref[...]
    v = mm(xn, wv_ref[...]) + bv_ref[...]

    # all-pairs scores within the tile; cross-sample pairs masked by the
    # precomputed additive block-diagonal bias (-1e30).  Contraction over the
    # hidden axis of both operands -> no explicit transpose.
    scores = jax.lax.dot_general(
        q.astype(compute_dtype), k.astype(compute_dtype),
        dimension_numbers=(((1,), (1,)), ((), ())),
        preferred_element_type=f32) * inv_sqrt_dk + bias_ref[...]
    scores = scores - jnp.max(scores, axis=-1, keepdims=True)
    p = jnp.exp(scores)
    denom = jnp.sum(p, axis=-1, keepdims=True)
    p = p * pl.reciprocal(denom, approx=True)           # EUP reciprocal

    attn = mm(p, v)
    attn = mm(attn, wo_ref[...]) + bo_ref[...]
    x = x + attn                                        # residual (dropout = id)

    # ---- feed-forward sublayer ----
    xn2 = _masked_layernorm(x, ln2_g_ref[...], ln2_b_ref[...], lane_mask, inv_h)
    h1 = _gelu_tanh(mm(xn2, w1_ref[...]) + b1_ref[...])
    ff = mm(h1, w2_ref[...]) + b2_ref[...]
    x = x + ff                                          # residual (dropout = id)

    out_seq_ref[...] = x

    # ---- classification head on every row (full-width matmul, lane-dense
    #      stores); the wrapper keeps only the CLS rows.  Dropout = identity. ----
    logits_ref[...] = mm(x, fc_w_ref[...]) + fc_b_ref[...]


def pose_bert_forward(x, params, *, length, num_classes, batch_tile=8,
                      compute_dtype=jnp.float32):
    """Mirrors poseRaw_bert10_twoPeople_withoutAngle.forward (eval mode).

    batch_tile (TB) samples are processed per grid step; keep TB a multiple of 8
    (layout) and grid length >= 2 at realistic batch sizes so both v7x
    TensorCores get work.  Set compute_dtype=jnp.bfloat16 on v6e/v7x for
    MXU-native matmuls (accumulation stays f32).
    """
    hidden = HIDDEN
    if batch_tile % 8 != 0:
        raise ValueError("batch_tile must be a multiple of 8")
    TB = batch_tile
    S = length + 1
    CP = _round_up(max(num_classes, 1), LANE)

    x = x.reshape(-1, length, hidden).astype(jnp.float32)   # x.view(-1, L, 100)
    input_vectors = x
    B = x.shape[0]
    B_pad = _round_up(max(B, 1), TB)
    R = TB * S                                               # rows per grid step

    # one fused zero-pad: CLS placeholder row at seq position 0, lane pad to 128,
    # batch pad to a multiple of TB; then a free row-major reshape to 2-D.
    xp = jnp.pad(x, ((0, B_pad - B), (1, 0), (0, HP - hidden)))
    x2d = xp.reshape(B_pad * S, HP)

    # fold the CLS token into the positional table, pad lanes with zeros, tile
    # over the batch tile so the in-kernel add is a plain 2-D elementwise add.
    pos_cls = params["pos"][0].at[0].add(params["cls"][0, 0])   # (S, hidden)
    pos_cls = jnp.pad(pos_cls, ((0, 0), (0, HP - hidden)))
    pos_tiled = jnp.tile(pos_cls, (TB, 1)).astype(jnp.float32)  # (R, HP)

    # additive block-diagonal attention bias: 0 within a sample, -1e30 across.
    sample_id = jnp.arange(R, dtype=jnp.int32) // S
    attn_bias = jnp.where(sample_id[:, None] == sample_id[None, :],
                          0.0, -1e30).astype(jnp.float32)        # (R, R)

    def pad_w(w, r, c):
        return jnp.pad(w, ((0, r - w.shape[0]), (0, c - w.shape[1])))

    wdt = compute_dtype
    wq = pad_w(params["wq"], HP, HP).astype(wdt)
    wk = pad_w(params["wk"], HP, HP).astype(wdt)
    wv = pad_w(params["wv"], HP, HP).astype(wdt)
    wo = pad_w(params["wo"], HP, HP).astype(wdt)
    w1 = pad_w(params["w1"], HP, FFP).astype(wdt)
    w2 = pad_w(params["w2"], FFP, HP).astype(wdt)
    fc_w = pad_w(params["fc_w"], HP, CP).astype(wdt)

    bq = pad_w(params["bq"], 1, HP)
    bk = pad_w(params["bk"], 1, HP)
    bv = pad_w(params["bv"], 1, HP)
    bo = pad_w(params["bo"], 1, HP)
    b1 = pad_w(params["b1"], 1, FFP)
    b2 = pad_w(params["b2"], 1, HP)
    fc_b = pad_w(params["fc_b"], 1, CP)
    ln1_g = pad_w(params["ln1_g"], 1, HP)
    ln1_b = pad_w(params["ln1_b"], 1, HP)
    ln2_g = pad_w(params["ln2_g"], 1, HP)
    ln2_b = pad_w(params["ln2_b"], 1, HP)

    def inv_spec(shape):
        # grid-invariant input: constant block index -> DMA'd once, not per step.
        rank = len(shape)
        return pl.BlockSpec(shape, lambda b, _r=rank: (0,) * _r)

    kernel = functools.partial(bert_block_kernel, compute_dtype=compute_dtype)

    out_seq2d, logits2d = pl.pallas_call(
        kernel,
        out_shape=(
            jax.ShapeDtypeStruct((B_pad * S, HP), jnp.float32),
            jax.ShapeDtypeStruct((B_pad * S, CP), jnp.float32),
        ),
        grid_spec=pltpu.PrefetchScalarGridSpec(
            num_scalar_prefetch=0,
            grid=(B_pad // TB,),
            in_specs=[
                pl.BlockSpec((R, HP), lambda b: (b, 0)),     # padded x rows
                inv_spec((R, HP)),                           # pos + CLS (tiled)
                inv_spec((R, R)),                            # block-diag bias
                inv_spec((1, HP)), inv_spec((1, HP)),        # ln1 g, b
                inv_spec((HP, HP)), inv_spec((1, HP)),       # wq, bq
                inv_spec((HP, HP)), inv_spec((1, HP)),       # wk, bk
                inv_spec((HP, HP)), inv_spec((1, HP)),       # wv, bv
                inv_spec((HP, HP)), inv_spec((1, HP)),       # wo, bo
                inv_spec((1, HP)), inv_spec((1, HP)),        # ln2 g, b
                inv_spec((HP, FFP)), inv_spec((1, FFP)),     # ff w1, b1
                inv_spec((FFP, HP)), inv_spec((1, HP)),      # ff w2, b2
                inv_spec((HP, CP)), inv_spec((1, CP)),       # fc_action
            ],
            out_specs=[
                pl.BlockSpec((R, HP), lambda b: (b, 0)),
                pl.BlockSpec((R, CP), lambda b: (b, 0)),
            ],
        ),
        compiler_params=pltpu.CompilerParams(
            dimension_semantics=("parallel",)),
    )(x2d, pos_tiled, attn_bias,
      ln1_g, ln1_b,
      wq, bq, wk, bk, wv, bv, wo, bo,
      ln2_g, ln2_b,
      w1, b1, w2, b2,
      fc_w, fc_b)

    out_seq = out_seq2d.reshape(B_pad, S, HP)
    logits_full = logits2d.reshape(B_pad, S, CP)
    logits = logits_full[:B, 0, :num_classes]       # fc_action(Dropout(output[:,0,:]))
    sequence_out = out_seq[:B, 1:, :hidden]         # output[:, 1:, :]
    mask_sample = None                              # BERT5 returns sample=None at eval
    return logits, input_vectors, sequence_out, mask_sample


def init_params(key, *, length, num_classes):
    """Deterministic synthetic parameter init (shapes match the PyTorch module)."""
    hidden, ff = HIDDEN, 4 * HIDDEN
    S = length + 1
    keys = jax.random.split(key, 16)

    def lin_w(k, fan_in, fan_out):
        bound = 1.0 / math.sqrt(fan_in)
        return jax.random.uniform(k, (fan_in, fan_out), jnp.float32, -bound, bound)

    def lin_b(k, fan_in, fan_out):
        bound = 1.0 / math.sqrt(fan_in)
        return jax.random.uniform(k, (1, fan_out), jnp.float32, -bound, bound)

    # sinusoidal positional embedding (max_len = length + 1, d_model = hidden)
    pos = jnp.arange(S, dtype=jnp.float32)[:, None]
    div = jnp.exp(jnp.arange(0, hidden, 2, dtype=jnp.float32)
                  * (-math.log(10000.0) / hidden))
    pe = jnp.zeros((S, hidden), jnp.float32)
    pe = pe.at[:, 0::2].set(jnp.sin(pos * div))
    pe = pe.at[:, 1::2].set(jnp.cos(pos * div))

    # fc_action: xavier-uniform weight, zero bias (as in the module __init__)
    xav = math.sqrt(6.0 / (hidden + num_classes))
    fc_w = jax.random.uniform(keys[14], (hidden, num_classes), jnp.float32, -xav, xav)

    return dict(
        cls=jax.random.normal(keys[0], (1, 1, hidden), jnp.float32),
        pos=pe[None],                                         # (1, S, H)
        ln1_g=jnp.ones((1, hidden), jnp.float32),
        ln1_b=jnp.zeros((1, hidden), jnp.float32),
        wq=lin_w(keys[1], hidden, hidden), bq=lin_b(keys[2], hidden, hidden),
        wk=lin_w(keys[3], hidden, hidden), bk=lin_b(keys[4], hidden, hidden),
        wv=lin_w(keys[5], hidden, hidden), bv=lin_b(keys[6], hidden, hidden),
        wo=lin_w(keys[7], hidden, hidden), bo=lin_b(keys[8], hidden, hidden),
        ln2_g=jnp.ones((1, hidden), jnp.float32),
        ln2_b=jnp.zeros((1, hidden), jnp.float32),
        w1=lin_w(keys[9], hidden, ff), b1=lin_b(keys[10], hidden, ff),
        w2=lin_w(keys[11], ff, hidden), b2=lin_b(keys[12], ff, hidden),
        fc_w=fc_w,
        fc_b=jnp.zeros((1, num_classes), jnp.float32),
    )


if __name__ == "__main__":
    LENGTH = 8        # sequence length (constructor arg)
    NUM_CLASSES = 10  # constructor arg
    BATCH = 2

    key = jax.random.PRNGKey(0)
    k_x, k_p = jax.random.split(key)
    x = jax.random.normal(k_x, (BATCH, LENGTH, HIDDEN), jnp.float32)
    params = init_params(k_p, length=LENGTH, num_classes=NUM_CLASSES)

    # compute_dtype=jnp.bfloat16 is recommended on v6e/v7x once the model is
    # compute-visible; f32 here keeps reference numerics exactly.
    fwd = jax.jit(functools.partial(
        pose_bert_forward, length=LENGTH, num_classes=NUM_CLASSES,
        batch_tile=8, compute_dtype=jnp.float32))

    logits, input_vectors, sequence_out, mask_sample = fwd(x, params)
    jax.block_until_ready((logits, input_vectors, sequence_out))

    assert logits.shape == (BATCH, NUM_CLASSES)
    assert input_vectors.shape == (BATCH, LENGTH, HIDDEN)
    assert sequence_out.shape == (BATCH, LENGTH, HIDDEN)
    assert mask_sample is None  # eval-mode BERT5 returns sample=None
    assert bool(jnp.all(jnp.isfinite(logits)))
    print("KERNEL_OK")
</pallas_src>

<mosaic_0001>
module attributes {stable_mosaic.version = 11 : i64} {
  func.func @bert_block_kernel(%arg0: i32, %arg1: memref<72x128xf32, #tpu.memory_space<vmem>>, %arg2: memref<72x128xf32, #tpu.memory_space<vmem>>, %arg3: memref<72x72xf32, #tpu.memory_space<vmem>>, %arg4: memref<1x128xf32, #tpu.memory_space<vmem>>, %arg5: memref<1x128xf32, #tpu.memory_space<vmem>>, %arg6: memref<128x128xf32, #tpu.memory_space<vmem>>, %arg7: memref<1x128xf32, #tpu.memory_space<vmem>>, %arg8: memref<128x128xf32, #tpu.memory_space<vmem>>, %arg9: memref<1x128xf32, #tpu.memory_space<vmem>>, %arg10: memref<128x128xf32, #tpu.memory_space<vmem>>, %arg11: memref<1x128xf32, #tpu.memory_space<vmem>>, %arg12: memref<128x128xf32, #tpu.memory_space<vmem>>, %arg13: memref<1x128xf32, #tpu.memory_space<vmem>>, %arg14: memref<1x128xf32, #tpu.memory_space<vmem>>, %arg15: memref<1x128xf32, #tpu.memory_space<vmem>>, %arg16: memref<128x512xf32, #tpu.memory_space<vmem>>, %arg17: memref<1x512xf32, #tpu.memory_space<vmem>>, %arg18: memref<512x128xf32, #tpu.memory_space<vmem>>, %arg19: memref<1x128xf32, #tpu.memory_space<vmem>>, %arg20: memref<128x128xf32, #tpu.memory_space<vmem>>, %arg21: memref<1x128xf32, #tpu.memory_space<vmem>>, %arg22: memref<72x128xf32, #tpu.memory_space<vmem>>, %arg23: memref<72x128xf32, #tpu.memory_space<vmem>>) attributes {dimension_semantics = [#tpu.dimension_semantics<parallel>], iteration_bounds = array<i64: 1>, scalar_prefetch = 0 : i64, scratch_operands = 0 : i64, tpu.core_type = #tpu.core_type<tc>, window_params = [{transform_indices = @transform_0, window_bounds = array<i64: 72, 128>}, {pipeline_mode = #tpu.pipeline_mode<synchronous>, transform_indices = @transform_1, window_bounds = array<i64: 72, 128>}, {pipeline_mode = #tpu.pipeline_mode<synchronous>, transform_indices = @transform_2, window_bounds = array<i64: 72, 72>}, {pipeline_mode = #tpu.pipeline_mode<synchronous>, transform_indices = @transform_3, window_bounds = array<i64: 1, 128>}, {pipeline_mode = #tpu.pipeline_mode<synchronous>, transform_indices = @transform_4, window_bounds = array<i64: 1, 128>}, {pipeline_mode = #tpu.pipeline_mode<synchronous>, transform_indices = @transform_5, window_bounds = array<i64: 128, 128>}, {pipeline_mode = #tpu.pipeline_mode<synchronous>, transform_indices = @transform_6, window_bounds = array<i64: 1, 128>}, {pipeline_mode = #tpu.pipeline_mode<synchronous>, transform_indices = @transform_7, window_bounds = array<i64: 128, 128>}, {pipeline_mode = #tpu.pipeline_mode<synchronous>, transform_indices = @transform_8, window_bounds = array<i64: 1, 128>}, {pipeline_mode = #tpu.pipeline_mode<synchronous>, transform_indices = @transform_9, window_bounds = array<i64: 128, 128>}, {pipeline_mode = #tpu.pipeline_mode<synchronous>, transform_indices = @transform_10, window_bounds = array<i64: 1, 128>}, {pipeline_mode = #tpu.pipeline_mode<synchronous>, transform_indices = @transform_11, window_bounds = array<i64: 128, 128>}, {pipeline_mode = #tpu.pipeline_mode<synchronous>, transform_indices = @transform_12, window_bounds = array<i64: 1, 128>}, {pipeline_mode = #tpu.pipeline_mode<synchronous>, transform_indices = @transform_13, window_bounds = array<i64: 1, 128>}, {pipeline_mode = #tpu.pipeline_mode<synchronous>, transform_indices = @transform_14, window_bounds = array<i64: 1, 128>}, {pipeline_mode = #tpu.pipeline_mode<synchronous>, transform_indices = @transform_15, window_bounds = array<i64: 128, 512>}, {pipeline_mode = #tpu.pipeline_mode<synchronous>, transform_indices = @transform_16, window_bounds = array<i64: 1, 512>}, {pipeline_mode = #tpu.pipeline_mode<synchronous>, transform_indices = @transform_17, window_bounds = array<i64: 512, 128>}, {pipeline_mode = #tpu.pipeline_mode<synchronous>, transform_indices = @transform_18, window_bounds = array<i64: 1, 128>}, {pipeline_mode = #tpu.pipeline_mode<synchronous>, transform_indices = @transform_19, window_bounds = array<i64: 128, 128>}, {pipeline_mode = #tpu.pipeline_mode<synchronous>, transform_indices = @transform_20, window_bounds = array<i64: 1, 128>}, {transform_indices = @transform_21, window_bounds = array<i64: 72, 128>}, {transform_indices = @transform_22, window_bounds = array<i64: 72, 128>}]} {
    %0 = tpu.iota {dimensions = array<i32: 1>} : vector<1x128xi32>
    %c100_i32 = arith.constant 100 : i32
    %1 = vector.broadcast %c100_i32 : i32 to vector<1x128xi32>
    %2 = arith.cmpi slt, %0, %1 : vector<1x128xi32>
    %c0 = arith.constant 0 : index
    %c0_0 = arith.constant 0 : index
    %3 = vector.load %arg1[%c0, %c0_0] : memref<72x128xf32, #tpu.memory_space<vmem>>, vector<72x128xf32>
    %c0_1 = arith.constant 0 : index
    %c0_2 = arith.constant 0 : index
    %4 = vector.load %arg2[%c0_1, %c0_2] : memref<72x128xf32, #tpu.memory_space<vmem>>, vector<72x128xf32>
    %5 = arith.addf %3, %4 : vector<72x128xf32>
    %c0_3 = arith.constant 0 : index
    %c0_4 = arith.constant 0 : index
    %6 = vector.load %arg4[%c0_3, %c0_4] : memref<1x128xf32, #tpu.memory_space<vmem>>, vector<1x128xf32>
    %c0_5 = arith.constant 0 : index
    %c0_6 = arith.constant 0 : index
    %7 = vector.load %arg5[%c0_5, %c0_6] : memref<1x128xf32, #tpu.memory_space<vmem>>, vector<1x128xf32>
    %cst = arith.constant 0.000000e+00 : f32
    %8 = vector.shape_cast %2 : vector<1x128xi1> to vector<1x128xi1>
    %9 = vector.broadcast %8 : vector<1x128xi1> to vector<72x128xi1>
    %10 = vector.broadcast %cst : f32 to vector<72x128xf32>
    %11 = arith.select %9, %5, %10 : vector<72x128xi1>, vector<72x128xf32>
    %cst_7 = arith.constant dense<0.000000e+00> : vector<72xf32>
    %12 = vector.multi_reduction <add>, %11, %cst_7 [1] : vector<72x128xf32> to vector<72xf32>
    %13 = vector.shape_cast %12 : vector<72xf32> to vector<72x1xf32>
    %cst_8 = arith.constant 0.00999999977 : f32
    %14 = vector.broadcast %cst_8 : f32 to vector<72x1xf32>
    %15 = arith.mulf %13, %14 : vector<72x1xf32>
    %16 = vector.broadcast %15 : vector<72x1xf32> to vector<72x128xf32>
    %17 = arith.subf %5, %16 : vector<72x128xf32>
    %cst_9 = arith.constant 0.000000e+00 : f32
    %18 = vector.shape_cast %2 : vector<1x128xi1> to vector<1x128xi1>
    %19 = vector.broadcast %18 : vector<1x128xi1> to vector<72x128xi1>
    %20 = vector.broadcast %cst_9 : f32 to vector<72x128xf32>
    %21 = arith.select %19, %17, %20 : vector<72x128xi1>, vector<72x128xf32>
    %22 = arith.mulf %21, %21 : vector<72x128xf32>
    %cst_10 = arith.constant dense<0.000000e+00> : vector<72xf32>
    %23 = vector.multi_reduction <add>, %22, %cst_10 [1] : vector<72x128xf32> to vector<72xf32>
    %24 = vector.shape_cast %23 : vector<72xf32> to vector<72x1xf32>
    %cst_11 = arith.constant 0.00999999977 : f32
    %25 = vector.broadcast %cst_11 : f32 to vector<72x1xf32>
    %26 = arith.mulf %24, %25 : vector<72x1xf32>
    %27 = vector.broadcast %15 : vector<72x1xf32> to vector<72x128xf32>
    %28 = arith.subf %5, %27 : vector<72x128xf32>
    %29 = vector.broadcast %6 : vector<1x128xf32> to vector<72x128xf32>
    %30 = arith.mulf %29, %28 : vector<72x128xf32>
    %cst_12 = arith.constant 9.99999997E-7 : f32
    %31 = vector.broadcast %cst_12 : f32 to vector<72x1xf32>
    %32 = arith.addf %26, %31 : vector<72x1xf32>
    %33 = math.rsqrt %32 : vector<72x1xf32>
    %34 = vector.broadcast %33 : vector<72x1xf32> to vector<72x128xf32>
    %35 = arith.mulf %30, %34 : vector<72x128xf32>
    %36 = vector.broadcast %7 : vector<1x128xf32> to vector<72x128xf32>
    %37 = arith.addf %35, %36 : vector<72x128xf32>
    %c0_13 = arith.constant 0 : index
    %c0_14 = arith.constant 0 : index
    %38 = vector.load %arg6[%c0_13, %c0_14] : memref<128x128xf32, #tpu.memory_space<vmem>>, vector<128x128xf32>
    %cst_15 = arith.constant dense<0.000000e+00> : vector<72x128xf32>
    %39 = tpu.matmul %37, %38, %cst_15 {dimension_numbers = #tpu.dot_dimension_numbers<[1], [0], [0], [1], [0, 0, 1, 1], [], []>} : vector<72x128xf32>, vector<128x128xf32>, vector<72x128xf32> -> vector<72x128xf32>
    %c0_16 = arith.constant 0 : index
    %c0_17 = arith.constant 0 : index
    %40 = vector.load %arg7[%c0_16, %c0_17] : memref<1x128xf32, #tpu.memory_space<vmem>>, vector<1x128xf32>
    %41 = vector.broadcast %40 : vector<1x128xf32> to vector<72x128xf32>
    %42 = arith.addf %39, %41 : vector<72x128xf32>
    %c0_18 = arith.constant 0 : index
    %c0_19 = arith.constant 0 : index
    %43 = vector.load %arg8[%c0_18, %c0_19] : memref<128x128xf32, #tpu.memory_space<vmem>>, vector<128x128xf32>
    %cst_20 = arith.constant dense<0.000000e+00> : vector<72x128xf32>
    %44 = tpu.matmul %37, %43, %cst_20 {dimension_numbers = #tpu.dot_dimension_numbers<[1], [0], [0], [1], [0, 0, 1, 1], [], []>} : vector<72x128xf32>, vector<128x128xf32>, vector<72x128xf32> -> vector<72x128xf32>
    %c0_21 = arith.constant 0 : index
    %c0_22 = arith.constant 0 : index
    %45 = vector.load %arg9[%c0_21, %c0_22] : memref<1x128xf32, #tpu.memory_space<vmem>>, vector<1x128xf32>
    %46 = vector.broadcast %45 : vector<1x128xf32> to vector<72x128xf32>
    %47 = arith.addf %44, %46 : vector<72x128xf32>
    %c0_23 = arith.constant 0 : index
    %c0_24 = arith.constant 0 : index
    %48 = vector.load %arg10[%c0_23, %c0_24] : memref<128x128xf32, #tpu.memory_space<vmem>>, vector<128x128xf32>
    %cst_25 = arith.constant dense<0.000000e+00> : vector<72x128xf32>
    %49 = tpu.matmul %37, %48, %cst_25 {dimension_numbers = #tpu.dot_dimension_numbers<[1], [0], [0], [1], [0, 0, 1, 1], [], []>} : vector<72x128xf32>, vector<128x128xf32>, vector<72x128xf32> -> vector<72x128xf32>
    %c0_26 = arith.constant 0 : index
    %c0_27 = arith.constant 0 : index
    %50 = vector.load %arg11[%c0_26, %c0_27] : memref<1x128xf32, #tpu.memory_space<vmem>>, vector<1x128xf32>
    %51 = vector.broadcast %50 : vector<1x128xf32> to vector<72x128xf32>
    %52 = arith.addf %49, %51 : vector<72x128xf32>
    %cst_28 = arith.constant dense<0.000000e+00> : vector<72x72xf32>
    %53 = tpu.matmul %42, %47, %cst_28 {dimension_numbers = #tpu.dot_dimension_numbers<[1], [1], [0], [0], [0, 0, 1, 0], [], []>} : vector<72x128xf32>, vector<72x128xf32>, vector<72x72xf32> -> vector<72x72xf32>
    %cst_29 = arith.constant 1.000000e-01 : f32
    %54 = vector.broadcast %cst_29 : f32 to vector<72x72xf32>
    %55 = arith.mulf %53, %54 : vector<72x72xf32>
    %c0_30 = arith.constant 0 : index
    %c0_31 = arith.constant 0 : index
    %56 = vector.load %arg3[%c0_30, %c0_31] : memref<72x72xf32, #tpu.memory_space<vmem>>, vector<72x72xf32>
    %57 = arith.addf %55, %56 : vector<72x72xf32>
    %cst_32 = arith.constant dense<0xFF800000> : vector<72xf32>
    %58 = vector.multi_reduction <maximumf>, %57, %cst_32 [1] : vector<72x72xf32> to vector<72xf32>
    %59 = vector.shape_cast %58 : vector<72xf32> to vector<72x1xf32>
    %60 = vector.broadcast %59 : vector<72x1xf32> to vector<72x72xf32>
    %61 = arith.subf %57, %60 : vector<72x72xf32>
    %62 = math.exp %61 : vector<72x72xf32>
    %cst_33 = arith.constant dense<0.000000e+00> : vector<72xf32>
    %63 = vector.multi_reduction <add>, %62, %cst_33 [1] : vector<72x72xf32> to vector<72xf32>
    %64 = vector.shape_cast %63 : vector<72xf32> to vector<72x1xf32>
    %65 = tpu.reciprocal %64 {approx = true} : vector<72x1xf32> -> vector<72x1xf32>
    %66 = vector.broadcast %65 : vector<72x1xf32> to vector<72x72xf32>
    %67 = arith.mulf %62, %66 : vector<72x72xf32>
    %cst_34 = arith.constant dense<0.000000e+00> : vector<72x128xf32>
    %68 = tpu.matmul %67, %52, %cst_34 {dimension_numbers = #tpu.dot_dimension_numbers<[1], [0], [0], [1], [0, 0, 1, 1], [], []>} : vector<72x72xf32>, vector<72x128xf32>, vector<72x128xf32> -> vector<72x128xf32>
    %c0_35 = arith.constant 0 : index
    %c0_36 = arith.constant 0 : index
    %69 = vector.load %arg12[%c0_35, %c0_36] : memref<128x128xf32, #tpu.memory_space<vmem>>, vector<128x128xf32>
    %cst_37 = arith.constant dense<0.000000e+00> : vector<72x128xf32>
    %70 = tpu.matmul %68, %69, %cst_37 {dimension_numbers = #tpu.dot_dimension_numbers<[1], [0], [0], [1], [0, 0, 1, 1], [], []>} : vector<72x128xf32>, vector<128x128xf32>, vector<72x128xf32> -> vector<72x128xf32>
    %c0_38 = arith.constant 0 : index
    %c0_39 = arith.constant 0 : index
    %71 = vector.load %arg13[%c0_38, %c0_39] : memref<1x128xf32, #tpu.memory_space<vmem>>, vector<1x128xf32>
    %72 = vector.broadcast %71 : vector<1x128xf32> to vector<72x128xf32>
    %73 = arith.addf %70, %72 : vector<72x128xf32>
    %74 = arith.addf %5, %73 : vector<72x128xf32>
    %c0_40 = arith.constant 0 : index
    %c0_41 = arith.constant 0 : index
    %75 = vector.load %arg14[%c0_40, %c0_41] : memref<1x128xf32, #tpu.memory_space<vmem>>, vector<1x128xf32>
    %c0_42 = arith.constant 0 : index
    %c0_43 = arith.constant 0 : index
    %76 = vector.load %arg15[%c0_42, %c0_43] : memref<1x128xf32, #tpu.memory_space<vmem>>, vector<1x128xf32>
    %cst_44 = arith.constant 0.000000e+00 : f32
    %77 = vector.shape_cast %2 : vector<1x128xi1> to vector<1x128xi1>
    %78 = vector.broadcast %77 : vector<1x128xi1> to vector<72x128xi1>
    %79 = vector.broadcast %cst_44 : f32 to vector<72x128xf32>
    %80 = arith.select %78, %74, %79 : vector<72x128xi1>, vector<72x128xf32>
    %cst_45 = arith.constant dense<0.000000e+00> : vector<72xf32>
    %81 = vector.multi_reduction <add>, %80, %cst_45 [1] : vector<72x128xf32> to vector<72xf32>
    %82 = vector.shape_cast %81 : vector<72xf32> to vector<72x1xf32>
    %cst_46 = arith.constant 0.00999999977 : f32
    %83 = vector.broadcast %cst_46 : f32 to vector<72x1xf32>
    %84 = arith.mulf %82, %83 : vector<72x1xf32>
    %85 = vector.broadcast %84 : vector<72x1xf32> to vector<72x128xf32>
    %86 = arith.subf %74, %85 : vector<72x128xf32>
    %cst_47 = arith.constant 0.000000e+00 : f32
    %87 = vector.shape_cast %2 : vector<1x128xi1> to vector<1x128xi1>
    %88 = vector.broadcast %87 : vector<1x128xi1> to vector<72x128xi1>
    %89 = vector.broadcast %cst_47 : f32 to vector<72x128xf32>
    %90 = arith.select %88, %86, %89 : vector<72x128xi1>, vector<72x128xf32>
    %91 = arith.mulf %90, %90 : vector<72x128xf32>
    %cst_48 = arith.constant dense<0.000000e+00> : vector<72xf32>
    %92 = vector.multi_reduction <add>, %91, %cst_48 [1] : vector<72x128xf32> to vector<72xf32>
    %93 = vector.shape_cast %92 : vector<72xf32> to vector<72x1xf32>
    %cst_49 = arith.constant 0.00999999977 : f32
    %94 = vector.broadcast %cst_49 : f32 to vector<72x1xf32>
    %95 = arith.mulf %93, %94 : vector<72x1xf32>
    %96 = vector.broadcast %84 : vector<72x1xf32> to vector<72x128xf32>
    %97 = arith.subf %74, %96 : vector<72x128xf32>
    %98 = vector.broadcast %75 : vector<1x128xf32> to vector<72x128xf32>
    %99 = arith.mulf %98, %97 : vector<72x128xf32>
    %cst_50 = arith.constant 9.99999997E-7 : f32
    %100 = vector.broadcast %cst_50 : f32 to vector<72x1xf32>
    %101 = arith.addf %95, %100 : vector<72x1xf32>
    %102 = math.rsqrt %101 : vector<72x1xf32>
    %103 = vector.broadcast %102 : vector<72x1xf32> to vector<72x128xf32>
    %104 = arith.mulf %99, %103 : vector<72x128xf32>
    %105 = vector.broadcast %76 : vector<1x128xf32> to vector<72x128xf32>
    %106 = arith.addf %104, %105 : vector<72x128xf32>
    %c0_51 = arith.constant 0 : index
    %c0_52 = arith.constant 0 : index
    %107 = vector.load %arg16[%c0_51, %c0_52] : memref<128x512xf32, #tpu.memory_space<vmem>>, vector<128x512xf32>
    %cst_53 = arith.constant dense<0.000000e+00> : vector<72x512xf32>
    %108 = tpu.matmul %106, %107, %cst_53 {dimension_numbers = #tpu.dot_dimension_numbers<[1], [0], [0], [1], [0, 0, 1, 1], [], []>} : vector<72x128xf32>, vector<128x512xf32>, vector<72x512xf32> -> vector<72x512xf32>
    %c0_54 = arith.constant 0 : index
    %c0_55 = arith.constant 0 : index
    %109 = vector.load %arg17[%c0_54, %c0_55] : memref<1x512xf32, #tpu.memory_space<vmem>>, vector<1x512xf32>
    %110 = vector.broadcast %109 : vector<1x512xf32> to vector<72x512xf32>
    %111 = arith.addf %108, %110 : vector<72x512xf32>
    %cst_56 = arith.constant 5.000000e-01 : f32
    %112 = vector.broadcast %cst_56 : f32 to vector<72x512xf32>
    %113 = arith.mulf %112, %111 : vector<72x512xf32>
    %cst_57 = arith.constant 4.471500e-02 : f32
    %114 = vector.broadcast %cst_57 : f32 to vector<72x512xf32>
    %115 = arith.mulf %114, %111 : vector<72x512xf32>
    %116 = arith.mulf %115, %111 : vector<72x512xf32>
    %117 = arith.mulf %116, %111 : vector<72x512xf32>
    %118 = arith.addf %111, %117 : vector<72x512xf32>
    %cst_58 = arith.constant 0.797884583 : f32
    %119 = vector.broadcast %cst_58 : f32 to vector<72x512xf32>
    %120 = arith.mulf %119, %118 : vector<72x512xf32>
    %121 = math.tanh %120 : vector<72x512xf32>
    %cst_59 = arith.constant 1.000000e+00 : f32
    %122 = vector.broadcast %cst_59 : f32 to vector<72x512xf32>
    %123 = arith.addf %122, %121 : vector<72x512xf32>
    %124 = arith.mulf %113, %123 : vector<72x512xf32>
    %c0_60 = arith.constant 0 : index
    %c0_61 = arith.constant 0 : index
    %125 = vector.load %arg18[%c0_60, %c0_61] : memref<512x128xf32, #tpu.memory_space<vmem>>, vector<512x128xf32>
    %cst_62 = arith.constant dense<0.000000e+00> : vector<72x128xf32>
    %126 = tpu.matmul %124, %125, %cst_62 {dimension_numbers = #tpu.dot_dimension_numbers<[1], [0], [0], [1], [0, 0, 1, 1], [], []>} : vector<72x512xf32>, vector<512x128xf32>, vector<72x128xf32> -> vector<72x128xf32>
    %c0_63 = arith.constant 0 : index
    %c0_64 = arith.constant 0 : index
    %127 = vector.load %arg19[%c0_63, %c0_64] : memref<1x128xf32, #tpu.memory_space<vmem>>, vector<1x128xf32>
    %128 = vector.broadcast %127 : vector<1x128xf32> to vector<72x128xf32>
    %129 = arith.addf %126, %128 : vector<72x128xf32>
    %130 = arith.addf %74, %129 : vector<72x128xf32>
    %c0_65 = arith.constant 0 : index
    %c0_66 = arith.constant 0 : index
    %131 = vector.load %arg22[%c0_65, %c0_66] : memref<72x128xf32, #tpu.memory_space<vmem>>, vector<72x128xf32>
    tpu.vector_store %arg22[%c0_65, %c0_66], %130 {strides = array<i32>} : memref<72x128xf32, #tpu.memory_space<vmem>>, vector<72x128xf32>,
    %c0_67 = arith.constant 0 : index
    %c0_68 = arith.constant 0 : index
    %132 = vector.load %arg20[%c0_67, %c0_68] : memref<128x128xf32, #tpu.memory_space<vmem>>, vector<128x128xf32>
    %cst_69 = arith.constant dense<0.000000e+00> : vector<72x128xf32>
    %133 = tpu.matmul %130, %132, %cst_69 {dimension_numbers = #tpu.dot_dimension_numbers<[1], [0], [0], [1], [0, 0, 1, 1], [], []>} : vector<72x128xf32>, vector<128x128xf32>, vector<72x128xf32> -> vector<72x128xf32>
    %c0_70 = arith.constant 0 : index
    %c0_71 = arith.constant 0 : index
    %134 = vector.load %arg21[%c0_70, %c0_71] : memref<1x128xf32, #tpu.memory_space<vmem>>, vector<1x128xf32>
    %135 = vector.broadcast %134 : vector<1x128xf32> to vector<72x128xf32>
    %136 = arith.addf %133, %135 : vector<72x128xf32>
    %c0_72 = arith.constant 0 : index
    %c0_73 = arith.constant 0 : index
    %137 = vector.load %arg23[%c0_72, %c0_73] : memref<72x128xf32, #tpu.memory_space<vmem>>, vector<72x128xf32>
    tpu.vector_store %arg23[%c0_72, %c0_73], %136 {strides = array<i32>} : memref<72x128xf32, #tpu.memory_space<vmem>>, vector<72x128xf32>,
    return
  }
  func.func @transform_0(%arg0: i32) -> (i32, i32) {
    %c0_i32 = arith.constant 0 : i32
    %c0_i32_0 = arith.constant 0 : i32
    return %arg0, %c0_i32 : i32, i32
  }
  func.func @transform_1(%arg0: i32) -> (i32, i32) {
    %c0_i32 = arith.constant 0 : i32
    %c0_i32_0 = arith.constant 0 : i32
    %c0_i32_1 = arith.constant 0 : i32
    return %c0_i32, %c0_i32_0 : i32, i32
  }
  func.func @transform_2(%arg0: i32) -> (i32, i32) {
    %c0_i32 = arith.constant 0 : i32
    %c0_i32_0 = arith.constant 0 : i32
    %c0_i32_1 = arith.constant 0 : i32
    return %c0_i32, %c0_i32_0 : i32, i32
  }
  func.func @transform_3(%arg0: i32) -> (i32, i32) {
    %c0_i32 = arith.constant 0 : i32
    %c0_i32_0 = arith.constant 0 : i32
    %c0_i32_1 = arith.constant 0 : i32
    return %c0_i32, %c0_i32_0 : i32, i32
  }
  func.func @transform_4(%arg0: i32) -> (i32, i32) {
    %c0_i32 = arith.constant 0 : i32
    %c0_i32_0 = arith.constant 0 : i32
    %c0_i32_1 = arith.constant 0 : i32
    return %c0_i32, %c0_i32_0 : i32, i32
  }
  func.func @transform_5(%arg0: i32) -> (i32, i32) {
    %c0_i32 = arith.constant 0 : i32
    %c0_i32_0 = arith.constant 0 : i32
    %c0_i32_1 = arith.constant 0 : i32
    return %c0_i32, %c0_i32_0 : i32, i32
  }
  func.func @transform_6(%arg0: i32) -> (i32, i32) {
    %c0_i32 = arith.constant 0 : i32
    %c0_i32_0 = arith.constant 0 : i32
    %c0_i32_1 = arith.constant 0 : i32
    return %c0_i32, %c0_i32_0 : i32, i32
  }
  func.func @transform_7(%arg0: i32) -> (i32, i32) {
    %c0_i32 = arith.constant 0 : i32
    %c0_i32_0 = arith.constant 0 : i32
    %c0_i32_1 = arith.constant 0 : i32
    return %c0_i32, %c0_i32_0 : i32, i32
  }
  func.func @transform_8(%arg0: i32) -> (i32, i32) {
    %c0_i32 = arith.constant 0 : i32
    %c0_i32_0 = arith.constant 0 : i32
    %c0_i32_1 = arith.constant 0 : i32
    return %c0_i32, %c0_i32_0 : i32, i32
  }
  func.func @transform_9(%arg0: i32) -> (i32, i32) {
    %c0_i32 = arith.constant 0 : i32
    %c0_i32_0 = arith.constant 0 : i32
    %c0_i32_1 = arith.constant 0 : i32
    return %c0_i32, %c0_i32_0 : i32, i32
  }
  func.func @transform_10(%arg0: i32) -> (i32, i32) {
    %c0_i32 = arith.constant 0 : i32
    %c0_i32_0 = arith.constant 0 : i32
    %c0_i32_1 = arith.constant 0 : i32
    return %c0_i32, %c0_i32_0 : i32, i32
  }
  func.func @transform_11(%arg0: i32) -> (i32, i32) {
    %c0_i32 = arith.constant 0 : i32
    %c0_i32_0 = arith.constant 0 : i32
    %c0_i32_1 = arith.constant 0 : i32
    return %c0_i32, %c0_i32_0 : i32, i32
  }
  func.func @transform_12(%arg0: i32) -> (i32, i32) {
    %c0_i32 = arith.constant 0 : i32
    %c0_i32_0 = arith.constant 0 : i32
    %c0_i32_1 = arith.constant 0 : i32
    return %c0_i32, %c0_i32_0 : i32, i32
  }
  func.func @transform_13(%arg0: i32) -> (i32, i32) {
    %c0_i32 = arith.constant 0 : i32
    %c0_i32_0 = arith.constant 0 : i32
    %c0_i32_1 = arith.constant 0 : i32
    return %c0_i32, %c0_i32_0 : i32, i32
  }
  func.func @transform_14(%arg0: i32) -> (i32, i32) {
    %c0_i32 = arith.constant 0 : i32
    %c0_i32_0 = arith.constant 0 : i32
    %c0_i32_1 = arith.constant 0 : i32
    return %c0_i32, %c0_i32_0 : i32, i32
  }
  func.func @transform_15(%arg0: i32) -> (i32, i32) {
    %c0_i32 = arith.constant 0 : i32
    %c0_i32_0 = arith.constant 0 : i32
    %c0_i32_1 = arith.constant 0 : i32
    return %c0_i32, %c0_i32_0 : i32, i32
  }
  func.func @transform_16(%arg0: i32) -> (i32, i32) {
    %c0_i32 = arith.constant 0 : i32
    %c0_i32_0 = arith.constant 0 : i32
    %c0_i32_1 = arith.constant 0 : i32
    return %c0_i32, %c0_i32_0 : i32, i32
  }
  func.func @transform_17(%arg0: i32) -> (i32, i32) {
    %c0_i32 = arith.constant 0 : i32
    %c0_i32_0 = arith.constant 0 : i32
    %c0_i32_1 = arith.constant 0 : i32
    return %c0_i32, %c0_i32_0 : i32, i32
  }
  func.func @transform_18(%arg0: i32) -> (i32, i32) {
    %c0_i32 = arith.constant 0 : i32
    %c0_i32_0 = arith.constant 0 : i32
    %c0_i32_1 = arith.constant 0 : i32
    return %c0_i32, %c0_i32_0 : i32, i32
  }
  func.func @transform_19(%arg0: i32) -> (i32, i32) {
    %c0_i32 = arith.constant 0 : i32
    %c0_i32_0 = arith.constant 0 : i32
    %c0_i32_1 = arith.constant 0 : i32
    return %c0_i32, %c0_i32_0 : i32, i32
  }
  func.func @transform_20(%arg0: i32) -> (i32, i32) {
    %c0_i32 = arith.constant 0 : i32
    %c0_i32_0 = arith.constant 0 : i32
    %c0_i32_1 = arith.constant 0 : i32
    return %c0_i32, %c0_i32_0 : i32, i32
  }
  func.func @transform_21(%arg0: i32) -> (i32, i32) {
    %c0_i32 = arith.constant 0 : i32
    %c0_i32_0 = arith.constant 0 : i32
    return %arg0, %c0_i32 : i32, i32
  }
  func.func @transform_22(%arg0: i32) -> (i32, i32) {
    %c0_i32 = arith.constant 0 : i32
    %c0_i32_0 = arith.constant 0 : i32
    return %arg0, %c0_i32 : i32, i32
  }
}

</mosaic_0001>

<llo_original>
// kernel: tile.9
$region0: #{tile.9}
  %s0 = inlined_call_operand.vmem [shape: f32[8,9,128], index: 0, kind: input, shape index: {}]
  %s1 = inlined_call_operand.vmem [shape: f32[72,128], index: 1, kind: output, shape index: {}]
  %v2 = vld [vmem:[%s0] sm:$0xff]
  %3 = vst [vmem:[%s1] sm:$0xff] %v2
  %s4 = scalar_lea.vmem %s0, 8
  %s5 = smov 3
  %v6 = vld [vmem:[%s4] ss:$8 sm:%s5]
  %s7 = scalar_lea.vmem %s1, 8
  %8 = vst [vmem:[%s7] sm:$0x3] %v6
  %s9 = scalar_lea.vmem %s0, 17
  %v10 = vld [vmem:[%s9] sm:$0xff]
  %s11 = scalar_lea.vmem %s1, 10
  %12 = vst [vmem:[%s11] sm:$0xff] %v10
  %s13 = scalar_lea.vmem %s0, 32
  %v14 = vld [vmem:[%s13] sm:$0xff]
  %s15 = scalar_lea.vmem %s1, 18
  %16 = vst [vmem:[%s15] sm:$0xff] %v14
  %s17 = scalar_lea.vmem %s0, 40
  %s18 = smov 3
  %v19 = vld [vmem:[%s17] ss:$8 sm:%s18]
  %s20 = scalar_lea.vmem %s1, 26
  %21 = vst [vmem:[%s20] sm:$0x3] %v19
  %s22 = scalar_lea.vmem %s0, 49
  %v23 = vld [vmem:[%s22] sm:$0xff]
  %s24 = scalar_lea.vmem %s1, 28
  %25 = vst [vmem:[%s24] sm:$0xff] %v23
  %s26 = scalar_lea.vmem %s0, 64
  %v27 = vld [vmem:[%s26] sm:$0xff]
  %s28 = scalar_lea.vmem %s1, 36
  %29 = vst [vmem:[%s28] sm:$0xff] %v27
  %s30 = scalar_lea.vmem %s0, 72
  %s31 = smov 3
  %v32 = vld [vmem:[%s30] ss:$8 sm:%s31]
  %s33 = scalar_lea.vmem %s1, 44
  %34 = vst [vmem:[%s33] sm:$0x3] %v32
  %s35 = scalar_lea.vmem %s0, 81
  %v36 = vld [vmem:[%s35] sm:$0xff]
  %s37 = scalar_lea.vmem %s1, 46
  %38 = vst [vmem:[%s37] sm:$0xff] %v36
  %s39 = scalar_lea.vmem %s0, 96
  %v40 = vld [vmem:[%s39] sm:$0xff]
  %s41 = scalar_lea.vmem %s1, 54
  %42 = vst [vmem:[%s41] sm:$0xff] %v40
  %s43 = scalar_lea.vmem %s0, 104
  %s44 = smov 3
  %v45 = vld [vmem:[%s43] ss:$8 sm:%s44]
  %s46 = scalar_lea.vmem %s1, 62
  %47 = vst [vmem:[%s46] sm:$0x3] %v45
  %s48 = scalar_lea.vmem %s0, 113
  %v49 = vld [vmem:[%s48] sm:$0xff]
  %s50 = scalar_lea.vmem %s1, 64
  %51 = vst [vmem:[%s50] sm:$0xff] %v49

// kernel: pose_bert_forward.1
$region0: #{pose_bert_forward.1}
  #allocation0 [shape = 'u32[]', space=smem, size = 0x4, offset = 0x4, fixed_abs, tag = 'smem constant byte address 0x4 - core index']
  #allocation1 [shape = 'u32[144,128]{1,0:T(1,128)}', space=vmem, size = 0x12000, scoped, tag = 'internal scratch']
  %s0 = inlined_call_operand.vmem [shape: f32[72,128], index: 0, kind: input, shape index: {}]
  %s1 = inlined_call_operand.vmem [shape: f32[72,128], index: 1, kind: input, shape index: {}]
  %s2 = inlined_call_operand.vmem [shape: f32[72,72], index: 2, kind: input, shape index: {}]
  %s3 = inlined_call_operand.vmem [shape: f32[1,128], index: 3, kind: input, shape index: {}]
  %s4 = inlined_call_operand.vmem [shape: f32[1,128], index: 4, kind: input, shape index: {}]
  %s5 = inlined_call_operand.vmem [shape: f32[128,128], index: 5, kind: input, shape index: {}]
  %s6 = inlined_call_operand.vmem [shape: f32[1,128], index: 6, kind: input, shape index: {}]
  %s7 = inlined_call_operand.vmem [shape: f32[128,128], index: 7, kind: input, shape index: {}]
  %s8 = inlined_call_operand.vmem [shape: f32[1,128], index: 8, kind: input, shape index: {}]
  %s9 = inlined_call_operand.vmem [shape: f32[128,128], index: 9, kind: input, shape index: {}]
  %s10 = inlined_call_operand.vmem [shape: f32[1,128], index: 10, kind: input, shape index: {}]
  %s11 = inlined_call_operand.vmem [shape: f32[128,128], index: 11, kind: input, shape index: {}]
  %s12 = inlined_call_operand.vmem [shape: f32[1,128], index: 12, kind: input, shape index: {}]
  %s13 = inlined_call_operand.vmem [shape: f32[1,128], index: 13, kind: input, shape index: {}]
  %s14 = inlined_call_operand.vmem [shape: f32[1,128], index: 14, kind: input, shape index: {}]
  %s15 = inlined_call_operand.vmem [shape: f32[128,512], index: 15, kind: input, shape index: {}]
  %s16 = inlined_call_operand.vmem [shape: f32[1,512], index: 16, kind: input, shape index: {}]
  %s17 = inlined_call_operand.vmem [shape: f32[512,128], index: 17, kind: input, shape index: {}]
  %s18 = inlined_call_operand.vmem [shape: f32[1,128], index: 18, kind: input, shape index: {}]
  %s19 = inlined_call_operand.vmem [shape: f32[128,128], index: 19, kind: input, shape index: {}]
  %s20 = inlined_call_operand.vmem [shape: f32[1,128], index: 20, kind: input, shape index: {}]
  %s21 = inlined_call_operand.vmem [shape: f32[72,128], index: 21, kind: output, shape index: {0}]
  %s22 = inlined_call_operand.vmem [shape: f32[72,128], index: 22, kind: output, shape index: {1}]
  %23 = xla_tuple %s21, %s22
  %s24 = sld [smem:[#allocation0]]
  $region102: #{pose_bert_forward.1} parent=0
    _
  %s26 = ssub.s32 1, %s24
  %s27 = scalar_select 0, %s26, %s24
  // Predicated region
  $region2: #{pose_bert_forward.1} parent=0 // pred_check
    _
  $region3: #{pose_bert_forward.1} parent=0 // pred_check_branch
    %29 = sbr.rel (0) target = $region5
  $region4: #{pose_bert_forward.1} parent=0 // pred_region
    _
  $region5: #{pose_bert_forward.1} parent=0 // pred_fallthru
    _
  // Predicated region
  $region6: #{pose_bert_forward.1} parent=0 // pred_check
    _
  $region7: #{pose_bert_forward.1} parent=0 // pred_check_branch
    %31 = sbr.rel (0) target = $region9
  $region8: #{pose_bert_forward.1} parent=0 // pred_region
    _
  $region9: #{pose_bert_forward.1} parent=0 // pred_fallthru
    _
  // Predicated region
  $region10: #{pose_bert_forward.1} parent=0 // pred_check
    _
  $region11: #{pose_bert_forward.1} parent=0 // pred_check_branch
    %33 = sbr.rel (0) target = $region13
  $region12: #{pose_bert_forward.1} parent=0 // pred_region
    _
  $region13: #{pose_bert_forward.1} parent=0 // pred_fallthru
    _
  // Predicated region
  $region14: #{pose_bert_forward.1} parent=0 // pred_check
    _
  $region15: #{pose_bert_forward.1} parent=0 // pred_check_branch
    %35 = sbr.rel (0) target = $region17
  $region16: #{pose_bert_forward.1} parent=0 // pred_region
    _
  $region17: #{pose_bert_forward.1} parent=0 // pred_fallthru
    _
  // Predicated region
  $region18: #{pose_bert_forward.1} parent=0 // pred_check
    _
  $region19: #{pose_bert_forward.1} parent=0 // pred_check_branch
    %37 = sbr.rel (0) target = $region21
  $region20: #{pose_bert_forward.1} parent=0 // pred_region
    _
  $region21: #{pose_bert_forward.1} parent=0 // pred_fallthru
    _
  // Predicated region
  $region22: #{pose_bert_forward.1} parent=0 // pred_check
    _
  $region23: #{pose_bert_forward.1} parent=0 // pred_check_branch
    %39 = sbr.rel (0) target = $region25
  $region24: #{pose_bert_forward.1} parent=0 // pred_region
    _
  $region25: #{pose_bert_forward.1} parent=0 // pred_fallthru
    _
  // Predicated region
  $region26: #{pose_bert_forward.1} parent=0 // pred_check
    _
  $region27: #{pose_bert_forward.1} parent=0 // pred_check_branch
    %41 = sbr.rel (0) target = $region29
  $region28: #{pose_bert_forward.1} parent=0 // pred_region
    _
  $region29: #{pose_bert_forward.1} parent=0 // pred_fallthru
    _
  // Predicated region
  $region30: #{pose_bert_forward.1} parent=0 // pred_check
    _
  $region31: #{pose_bert_forward.1} parent=0 // pred_check_branch
    %43 = sbr.rel (0) target = $region33
  $region32: #{pose_bert_forward.1} parent=0 // pred_region
    _
  $region33: #{pose_bert_forward.1} parent=0 // pred_fallthru
    _
  // Predicated region
  $region34: #{pose_bert_forward.1} parent=0 // pred_check
    _
  $region35: #{pose_bert_forward.1} parent=0 // pred_check_branch
    %45 = sbr.rel (0) target = $region37
  $region36: #{pose_bert_forward.1} parent=0 // pred_region
    _
  $region37: #{pose_bert_forward.1} parent=0 // pred_fallthru
    _
  // Predicated region
  $region38: #{pose_bert_forward.1} parent=0 // pred_check
    _
  $region39: #{pose_bert_forward.1} parent=0 // pred_check_branch
    %47 = sbr.rel (0) target = $region41
  $region40: #{pose_bert_forward.1} parent=0 // pred_region
    _
  $region41: #{pose_bert_forward.1} parent=0 // pred_fallthru
    _
  // Predicated region
  $region42: #{pose_bert_forward.1} parent=0 // pred_check
    _
  $region43: #{pose_bert_forward.1} parent=0 // pred_check_branch
    %49 = sbr.rel (0) target = $region45
  $region44: #{pose_bert_forward.1} parent=0 // pred_region
    _
  $region45: #{pose_bert_forward.1} parent=0 // pred_fallthru
    _
  // Predicated region
  $region46: #{pose_bert_forward.1} parent=0 // pred_check
    _
  $region47: #{pose_bert_forward.1} parent=0 // pred_check_branch
    %51 = sbr.rel (0) target = $region49
  $region48: #{pose_bert_forward.1} parent=0 // pred_region
    _
  $region49: #{pose_bert_forward.1} parent=0 // pred_fallthru
    _
  // Predicated region
  $region50: #{pose_bert_forward.1} parent=0 // pred_check
    _
  $region51: #{pose_bert_forward.1} parent=0 // pred_check_branch
    %53 = sbr.rel (0) target = $region53
  $region52: #{pose_bert_forward.1} parent=0 // pred_region
    _
  $region53: #{pose_bert_forward.1} parent=0 // pred_fallthru
    _
  // Predicated region
  $region54: #{pose_bert_forward.1} parent=0 // pred_check
    _
  $region55: #{pose_bert_forward.1} parent=0 // pred_check_branch
    %55 = sbr.rel (0) target = $region57
  $region56: #{pose_bert_forward.1} parent=0 // pred_region
    _
  $region57: #{pose_bert_forward.1} parent=0 // pred_fallthru
    _
  // Predicated region
  $region58: #{pose_bert_forward.1} parent=0 // pred_check
    _
  $region59: #{pose_bert_forward.1} parent=0 // pred_check_branch
    %57 = sbr.rel (0) target = $region61
  $region60: #{pose_bert_forward.1} parent=0 // pred_region
    _
  $region61: #{pose_bert_forward.1} parent=0 // pred_fallthru
    _
  // Predicated region
  $region62: #{pose_bert_forward.1} parent=0 // pred_check
    _
  $region63: #{pose_bert_forward.1} parent=0 // pred_check_branch
    %59 = sbr.rel (0) target = $region65
  $region64: #{pose_bert_forward.1} parent=0 // pred_region
    _
  $region65: #{pose_bert_forward.1} parent=0 // pred_fallthru
    _
  // Predicated region
  $region66: #{pose_bert_forward.1} parent=0 // pred_check
    _
  $region67: #{pose_bert_forward.1} parent=0 // pred_check_branch
    %61 = sbr.rel (0) target = $region69
  $region68: #{pose_bert_forward.1} parent=0 // pred_region
    _
  $region69: #{pose_bert_forward.1} parent=0 // pred_fallthru
    _
  // Predicated region
  $region70: #{pose_bert_forward.1} parent=0 // pred_check
    _
  $region71: #{pose_bert_forward.1} parent=0 // pred_check_branch
    %63 = sbr.rel (0) target = $region73
  $region72: #{pose_bert_forward.1} parent=0 // pred_region
    _
  $region73: #{pose_bert_forward.1} parent=0 // pred_fallthru
    _
  // Predicated region
  $region74: #{pose_bert_forward.1} parent=0 // pred_check
    _
  $region75: #{pose_bert_forward.1} parent=0 // pred_check_branch
    %65 = sbr.rel (0) target = $region77
  $region76: #{pose_bert_forward.1} parent=0 // pred_region
    _
  $region77: #{pose_bert_forward.1} parent=0 // pred_fallthru
    _
  // Predicated region
  $region78: #{pose_bert_forward.1} parent=0 // pred_check
    _
  $region79: #{pose_bert_forward.1} parent=0 // pred_check_branch
    %67 = sbr.rel (0) target = $region81
  $region80: #{pose_bert_forward.1} parent=0 // pred_region
    _
  $region81: #{pose_bert_forward.1} parent=0 // pred_fallthru
    _
  // Predicated region
  $region82: #{pose_bert_forward.1} parent=0 // pred_check
    _
  $region83: #{pose_bert_forward.1} parent=0 // pred_check_branch
    %69 = sbr.rel (0) target = $region85
  $region84: #{pose_bert_forward.1} parent=0 // pred_region
    _
  $region85: #{pose_bert_forward.1} parent=0 // pred_fallthru
    _
  %v70 = vlaneseq
  %v71 = vand.u32 %v70, 127
  %vm72 = vcmp.lt.s32.totalorder %v71, 100
  %v73 = vld [vmem:[%s0] sm:$0xff]
  %v74 = vld [vmem:[%s0 + $0x8] sm:$0xff]
  %v75 = vld [vmem:[%s0 + $0x10] sm:$0xff]
  %v76 = vld [vmem:[%s0 + $0x18] sm:$0xff]
  %v77 = vld [vmem:[%s0 + $0x20] sm:$0xff]
  %v78 = vld [vmem:[%s0 + $0x28] sm:$0xff]
  %v79 = vld [vmem:[%s0 + $0x30] sm:$0xff]
  %v80 = vld [vmem:[%s0 + $0x38] sm:$0xff]
  %v81 = vld [vmem:[%s0 + $0x40] sm:$0xff]
  %v82 = vld [vmem:[%s1] sm:$0xff]
  %v83 = vld [vmem:[%s1 + $0x8] sm:$0xff]
  %v84 = vld [vmem:[%s1 + $0x10] sm:$0xff]
  %v85 = vld [vmem:[%s1 + $0x18] sm:$0xff]
  %v86 = vld [vmem:[%s1 + $0x20] sm:$0xff]
  %v87 = vld [vmem:[%s1 + $0x28] sm:$0xff]
  %v88 = vld [vmem:[%s1 + $0x30] sm:$0xff]
  %v89 = vld [vmem:[%s1 + $0x38] sm:$0xff]
  %v90 = vld [vmem:[%s1 + $0x40] sm:$0xff]
  %v91 = vadd.f32 %v73, %v82
  %v92 = vadd.f32 %v74, %v83
  %v93 = vadd.f32 %v75, %v84
  %v94 = vadd.f32 %v76, %v85
  %v95 = vadd.f32 %v77, %v86
  %v96 = vadd.f32 %v78, %v87
  %v97 = vadd.f32 %v79, %v88
  %v98 = vadd.f32 %v80, %v89
  %v99 = vadd.f32 %v81, %v90
  %v100 = vld [vmem:[%s3] sm:$0x1]
  %v101 = vld [vmem:[%s4] sm:$0x1]
  %v102 = vsel %vm72, 1, 0
  %vm103 = vcmp.eq.s32.totalorder %v102, 1
  %v104 = vsel %vm103, %v91, 0.0
  %v105 = vsel %vm103, %v92, 0.0
  %v106 = vsel %vm103, %v93, 0.0
  %v107 = vsel %vm103, %v94, 0.0
  %v108 = vsel %vm103, %v95, 0.0
  %v109 = vsel %vm103, %v96, 0.0
  %v110 = vsel %vm103, %v97, 0.0
  %v111 = vsel %vm103, %v98, 0.0
  %v112 = vsel %vm103, %v99, 0.0
  %113 = vadd.xlane.f32.xlu0 %v104
  %v114 = vpop.xlane.xlu0 %113
  %115 = vadd.xlane.f32.xlu0 %v105
  %v116 = vpop.xlane.xlu0 %115
  %117 = vadd.xlane.f32.xlu0 %v106
  %v118 = vpop.xlane.xlu0 %117
  %119 = vadd.xlane.f32.xlu0 %v107
  %v120 = vpop.xlane.xlu0 %119
  %121 = vadd.xlane.f32.xlu0 %v108
  %v122 = vpop.xlane.xlu0 %121
  %123 = vadd.xlane.f32.xlu0 %v109
  %v124 = vpop.xlane.xlu0 %123
  %125 = vadd.xlane.f32.xlu0 %v110
  %v126 = vpop.xlane.xlu0 %125
  %127 = vadd.xlane.f32.xlu0 %v111
  %v128 = vpop.xlane.xlu0 %127
  %129 = vadd.xlane.f32.xlu0 %v112
  %v130 = vpop.xlane.xlu0 %129
  %v131 = vmul.f32 %v114, 0.01
  %v132 = vmul.f32 %v116, 0.01
  %v133 = vmul.f32 %v118, 0.01
  %v134 = vmul.f32 %v120, 0.01
  %v135 = vmul.f32 %v122, 0.01
  %v136 = vmul.f32 %v124, 0.01
  %v137 = vmul.f32 %v126, 0.01
  %v138 = vmul.f32 %v128, 0.01
  %v139 = vmul.f32 %v130, 0.01
  %v140 = vsub.f32 %v91, %v131
  %v141 = vsub.f32 %v92, %v132
  %v142 = vsub.f32 %v93, %v133
  %v143 = vsub.f32 %v94, %v134
  %v144 = vsub.f32 %v95, %v135
  %v145 = vsub.f32 %v96, %v136
  %v146 = vsub.f32 %v97, %v137
  %v147 = vsub.f32 %v98, %v138
  %v148 = vsub.f32 %v99, %v139
  %v149 = vsel %vm103, %v140, 0.0
  %v150 = vsel %vm103, %v141, 0.0
  %v151 = vsel %vm103, %v142, 0.0
  %v152 = vsel %vm103, %v143, 0.0
  %v153 = vsel %vm103, %v144, 0.0
  %v154 = vsel %vm103, %v145, 0.0
  %v155 = vsel %vm103, %v146, 0.0
  %v156 = vsel %vm103, %v147, 0.0
  %v157 = vsel %vm103, %v148, 0.0
  %v158 = vmul.f32 %v149, %v149
  %v159 = vmul.f32 %v150, %v150
  %v160 = vmul.f32 %v151, %v151
  %v161 = vmul.f32 %v152, %v152
  %v162 = vmul.f32 %v153, %v153
  %v163 = vmul.f32 %v154, %v154
  %v164 = vmul.f32 %v155, %v155
  %v165 = vmul.f32 %v156, %v156
  %v166 = vmul.f32 %v157, %v157
  %167 = vadd.xlane.f32.xlu0 %v158
  %v168 = vpop.xlane.xlu0 %167
  %169 = vadd.xlane.f32.xlu0 %v159
  %v170 = vpop.xlane.xlu0 %169
  %171 = vadd.xlane.f32.xlu0 %v160
  %v172 = vpop.xlane.xlu0 %171
  %173 = vadd.xlane.f32.xlu0 %v161
  %v174 = vpop.xlane.xlu0 %173
  %175 = vadd.xlane.f32.xlu0 %v162
  %v176 = vpop.xlane.xlu0 %175
  %177 = vadd.xlane.f32.xlu0 %v163
  %v178 = vpop.xlane.xlu0 %177
  %179 = vadd.xlane.f32.xlu0 %v164
  %v180 = vpop.xlane.xlu0 %179
  %181 = vadd.xlane.f32.xlu0 %v165
  %v182 = vpop.xlane.xlu0 %181
  %183 = vadd.xlane.f32.xlu0 %v166
  %v184 = vpop.xlane.xlu0 %183
  %v185 = vmul.f32 %v168, 0.01
  %v186 = vmul.f32 %v170, 0.01
  %v187 = vmul.f32 %v172, 0.01
  %v188 = vmul.f32 %v174, 0.01
  %v189 = vmul.f32 %v176, 0.01
  %v190 = vmul.f32 %v178, 0.01
  %v191 = vmul.f32 %v180, 0.01
  %v192 = vmul.f32 %v182, 0.01
  %v193 = vmul.f32 %v184, 0.01
  %v195 = vlaneseq
  %v196 = vshrl.u32 %v195, 7
  %v197 = vsub.s32 0, %v196
  %v198 = vrot.slane %v100, %v197
  %v200 = vmul.f32 %v198, %v140
  %v201 = vmul.f32 %v198, %v141
  %v202 = vmul.f32 %v198, %v142
  %v203 = vmul.f32 %v198, %v143
  %v204 = vmul.f32 %v198, %v144
  %v205 = vmul.f32 %v198, %v145
  %v206 = vmul.f32 %v198, %v146
  %v207 = vmul.f32 %v198, %v147
  %v208 = vmul.f32 %v198, %v148
  %v209 = vadd.f32 %v185, 1e-06
  %v210 = vadd.f32 %v186, 1e-06
  %v211 = vadd.f32 %v187, 1e-06
  %v212 = vadd.f32 %v188, 1e-06
  %v213 = vadd.f32 %v189, 1e-06
  %v214 = vadd.f32 %v190, 1e-06
  %v215 = vadd.f32 %v191, 1e-06
  %v216 = vadd.f32 %v192, 1e-06
  %v217 = vadd.f32 %v193, 1e-06
  %v218 = vrsqrt.pop %v209
  %v219 = vrsqrt.pop %v210
  %v220 = vrsqrt.pop %v211
  %v221 = vrsqrt.pop %v212
  %v222 = vrsqrt.pop %v213
  %v223 = vrsqrt.pop %v214
  %v224 = vrsqrt.pop %v215
  %v225 = vrsqrt.pop %v216
  %v226 = vrsqrt.pop %v217
  %v227 = vmul.f32 %v200, %v218
  %v228 = vmul.f32 %v201, %v219
  %v229 = vmul.f32 %v202, %v220
  %v230 = vmul.f32 %v203, %v221
  %v231 = vmul.f32 %v204, %v222
  %v232 = vmul.f32 %v205, %v223
  %v233 = vmul.f32 %v206, %v224
  %v234 = vmul.f32 %v207, %v225
  %v235 = vmul.f32 %v208, %v226
  %v237 = vlaneseq
  %v238 = vshrl.u32 %v237, 7
  %v239 = vsub.s32 0, %v238
  %v240 = vrot.slane %v101, %v239
  %v242 = vadd.f32 %v227, %v240
  %v243 = vadd.f32 %v228, %v240
  %v244 = vadd.f32 %v229, %v240
  %v245 = vadd.f32 %v230, %v240
  %v246 = vadd.f32 %v231, %v240
  %v247 = vadd.f32 %v232, %v240
  %v248 = vadd.f32 %v233, %v240
  %v249 = vadd.f32 %v234, %v240
  %v250 = vadd.f32 %v235, %v240
  %v251 = vld [vmem:[%s5] sm:$0xff]
  %v252 = vld [vmem:[%s5 + $0x8] sm:$0xff]
  %v253 = vld [vmem:[%s5 + $0x10] sm:$0xff]
  %v254 = vld [vmem:[%s5 + $0x18] sm:$0xff]
  %v255 = vld [vmem:[%s5 + $0x20] sm:$0xff]
  %v256 = vld [vmem:[%s5 + $0x28] sm:$0xff]
  %v257 = vld [vmem:[%s5 + $0x30] sm:$0xff]
  %v258 = vld [vmem:[%s5 + $0x38] sm:$0xff]
  %v259 = vld [vmem:[%s5 + $0x40] sm:$0xff]
  %v260 = vld [vmem:[%s5 + $0x48] sm:$0xff]
  %v261 = vld [vmem:[%s5 + $0x50] sm:$0xff]
  %v262 = vld [vmem:[%s5 + $0x58] sm:$0xff]
  %v263 = vld [vmem:[%s5 + $0x60] sm:$0xff]
  %v264 = vld [vmem:[%s5 + $0x68] sm:$0xff]
  %v265 = vld [vmem:[%s5 + $0x70] sm:$0xff]
  %v266 = vld [vmem:[%s5 + $0x78] sm:$0xff]
  %v267 = vld [vmem:[%s6] sm:$0x1]
  %v269 = vlaneseq
  %v270 = vshrl.u32 %v269, 7
  %v271 = vsub.s32 0, %v270
  %v272 = vrot.slane %v267, %v271
  %274 = vmatprep.subr.mxu0 0.0
  %275 = vmatpush1.msra.mxu0 %v251
  %276 = vmatprep.subr.mxu0 0.0
  %277 = vmatpush1.msra.mxu0 %v252
  %278 = vmatprep.subr.mxu0 0.0
  %279 = vmatpush1.msra.mxu0 %v253
  %280 = vmatprep.subr.mxu0 0.0
  %281 = vmatpush1.msra.mxu0 %v254
  %282 = vmatprep.subr.mxu0 0.0
  %283 = vmatpush1.msra.mxu0 %v255
  %284 = vmatprep.subr.mxu0 0.0
  %285 = vmatpush1.msra.mxu0 %v256
  %286 = vmatprep.subr.mxu0 0.0
  %287 = vmatpush1.msra.mxu0 %v257
  %288 = vmatprep.subr.mxu0 0.0
  %289 = vmatpush1.msra.mxu0 %v258
  %290 = vmatprep.subr.mxu0 0.0
  %291 = vmatpush1.msra.mxu0 %v259
  %292 = vmatprep.subr.mxu0 0.0
  %293 = vmatpush1.msra.mxu0 %v260
  %294 = vmatprep.subr.mxu0 0.0
  %295 = vmatpush1.msra.mxu0 %v261
  %296 = vmatprep.subr.mxu0 0.0
  %297 = vmatpush1.msra.mxu0 %v262
  %298 = vmatprep.subr.mxu0 0.0
  %299 = vmatpush1.msra.mxu0 %v263
  %300 = vmatprep.subr.mxu0 0.0
  %301 = vmatpush1.msra.mxu0 %v264
  %302 = vmatprep.subr.mxu0 0.0
  %303 = vmatpush1.msra.mxu0 %v265
  %304 = vmatprep.subr.mxu0 0.0
  %305 = vmatpush1.msra.mxu0 %v266
  %306 = vmatprep.subr.mxu0 0.0
  %307 = vmatpush1.msra.mxu0 0.0
  %308 = vmatprep.subr.mxu0 0.0
  %309 = vmatpush1.msra.mxu0 0.0
  %310 = vmatprep.subr.mxu0 0.0
  %311 = vmatpush1.msra.mxu0 0.0
  %312 = vmatprep.subr.mxu0 0.0
  %313 = vmatpush1.msra.mxu0 0.0
  %314 = vmatprep.subr.mxu0 0.0
  %315 = vmatpush1.msra.mxu0 0.0
  %316 = vmatprep.subr.mxu0 0.0
  %317 = vmatpush1.msra.mxu0 0.0
  %318 = vmatprep.subr.mxu0 0.0
  %319 = vmatpush1.msra.mxu0 0.0
  %320 = vmatprep.subr.mxu0 0.0
  %321 = vmatpush1.msra.mxu0 0.0
  %322 = vmatprep.subr.mxu0 0.0
  %323 = vmatpush1.msra.mxu0 0.0
  %324 = vmatprep.subr.mxu0 0.0
  %325 = vmatpush1.msra.mxu0 0.0
  %326 = vmatprep.subr.mxu0 0.0
  %327 = vmatpush1.msra.mxu0 0.0
  %328 = vmatprep.subr.mxu0 0.0
  %329 = vmatpush1.msra.mxu0 0.0
  %330 = vmatprep.subr.mxu0 0.0
  %331 = vmatpush1.msra.mxu0 0.0
  %332 = vmatprep.subr.mxu0 0.0
  %333 = vmatpush1.msra.mxu0 0.0
  %334 = vmatprep.subr.mxu0 0.0
  %335 = vmatpush1.msra.mxu0 0.0
  %336 = vmatprep.subr.mxu0 0.0
  %337 = vmatpush1.msra.mxu0 0.0
  %338 = vmatprep.mubr.f32.mxu0 0.0
  %339 = vmatmul.mubr.f32.gmra.mrb[0].mxu0 %v242
  %v340 = vpop.f32.mrb[0].mxu0
  %v341 = vadd.f32 %v272, %v340
  %v342 = vpop.f32.mrb[0].mxu0
  %343 = vmatprep.mubr.f32.mxu0 0.0
  %344 = vmatmul.mubr.f32.gmra.mrb[0].mxu0 %v243
  %v345 = vpop.f32.mrb[0].mxu0
  %v346 = vadd.f32 %v272, %v345
  %v347 = vpop.f32.mrb[0].mxu0
  %348 = vmatprep.mubr.f32.mxu0 0.0
  %349 = vmatmul.mubr.f32.gmra.mrb[0].mxu0 %v244
  %v350 = vpop.f32.mrb[0].mxu0
  %v351 = vadd.f32 %v272, %v350
  %v352 = vpop.f32.mrb[0].mxu0
  %353 = vmatprep.mubr.f32.mxu0 0.0
  %354 = vmatmul.mubr.f32.gmra.mrb[0].mxu0 %v245
  %v355 = vpop.f32.mrb[0].mxu0
  %v356 = vadd.f32 %v272, %v355
  %v357 = vpop.f32.mrb[0].mxu0
  %358 = vmatprep.mubr.f32.mxu0 0.0
  %359 = vmatmul.mubr.f32.gmra.mrb[0].mxu0 %v246
  %v360 = vpop.f32.mrb[0].mxu0
  %v361 = vadd.f32 %v272, %v360
  %v362 = vpop.f32.mrb[0].mxu0
  %363 = vmatprep.mubr.f32.mxu0 0.0
  %364 = vmatmul.mubr.f32.gmra.mrb[0].mxu0 %v247
  %v365 = vpop.f32.mrb[0].mxu0
  %v366 = vadd.f32 %v272, %v365
  %v367 = vpop.f32.mrb[0].mxu0
  %368 = vmatprep.mubr.f32.mxu0 0.0
  %369 = vmatmul.mubr.f32.gmra.mrb[0].mxu0 %v248
  %v370 = vpop.f32.mrb[0].mxu0
  %v371 = vadd.f32 %v272, %v370
  %v372 = vpop.f32.mrb[0].mxu0
  %373 = vmatprep.mubr.f32.mxu0 0.0
  %374 = vmatmul.mubr.f32.gmra.mrb[0].mxu0 %v249
  %v375 = vpop.f32.mrb[0].mxu0
  %v376 = vadd.f32 %v272, %v375
  %v377 = vpop.f32.mrb[0].mxu0
  %378 = vmatprep.mubr.f32.mxu0 0.0
  %379 = vmatmul.mubr.f32.gmra.mrb[0].mxu0 %v250
  %v380 = vpop.f32.mrb[0].mxu0
  %v381 = vadd.f32 %v272, %v380
  %v382 = vpop.f32.mrb[0].mxu0
  %383 = vdwg.mxu0
  %v384 = vld [vmem:[%s7] sm:$0xff]
  %v385 = vld [vmem:[%s7 + $0x8] sm:$0xff]
  %v386 = vld [vmem:[%s7 + $0x10] sm:$0xff]
  %v387 = vld [vmem:[%s7 + $0x18] sm:$0xff]
  %v388 = vld [vmem:[%s7 + $0x20] sm:$0xff]
  %v389 = vld [vmem:[%s7 + $0x28] sm:$0xff]
  %v390 = vld [vmem:[%s7 + $0x30] sm:$0xff]
  %v391 = vld [vmem:[%s7 + $0x38] sm:$0xff]
  %v392 = vld [vmem:[%s7 + $0x40] sm:$0xff]
  %v393 = vld [vmem:[%s7 + $0x48] sm:$0xff]
  %v394 = vld [vmem:[%s7 + $0x50] sm:$0xff]
  %v395 = vld [vmem:[%s7 + $0x58] sm:$0xff]
  %v396 = vld [vmem:[%s7 + $0x60] sm:$0xff]
  %v397 = vld [vmem:[%s7 + $0x68] sm:$0xff]
  %v398 = vld [vmem:[%s7 + $0x70] sm:$0xff]
  %v399 = vld [vmem:[%s7 + $0x78] sm:$0xff]
  %v400 = vld [vmem:[%s8] sm:$0x1]
  %v402 = vlaneseq
  %v403 = vshrl.u32 %v402, 7
  %v404 = vsub.s32 0, %v403
  %v405 = vrot.slane %v400, %v404
  %407 = vmatprep.subr.mxu0 0.0
  %408 = vmatpush1.msra.mxu0 %v384
  %409 = vmatprep.subr.mxu0 0.0
  %410 = vmatpush1.msra.mxu0 %v385
  %411 = vmatprep.subr.mxu0 0.0
  %412 = vmatpush1.msra.mxu0 %v386
  %413 = vmatprep.subr.mxu0 0.0
  %414 = vmatpush1.msra.mxu0 %v387
  %415 = vmatprep.subr.mxu0 0.0
  %416 = vmatpush1.msra.mxu0 %v388
  %417 = vmatprep.subr.mxu0 0.0
  %418 = vmatpush1.msra.mxu0 %v389
  %419 = vmatprep.subr.mxu0 0.0
  %420 = vmatpush1.msra.mxu0 %v390
  %421 = vmatprep.subr.mxu0 0.0
  %422 = vmatpush1.msra.mxu0 %v391
  %423 = vmatprep.subr.mxu0 0.0
  %424 = vmatpush1.msra.mxu0 %v392
  %425 = vmatprep.subr.mxu0 0.0
  %426 = vmatpush1.msra.mxu0 %v393
  %427 = vmatprep.subr.mxu0 0.0
  %428 = vmatpush1.msra.mxu0 %v394
  %429 = vmatprep.subr.mxu0 0.0
  %430 = vmatpush1.msra.mxu0 %v395
  %431 = vmatprep.subr.mxu0 0.0
  %432 = vmatpush1.msra.mxu0 %v396
  %433 = vmatprep.subr.mxu0 0.0
  %434 = vmatpush1.msra.mxu0 %v397
  %435 = vmatprep.subr.mxu0 0.0
  %436 = vmatpush1.msra.mxu0 %v398
  %437 = vmatprep.subr.mxu0 0.0
  %438 = vmatpush1.msra.mxu0 %v399
  %439 = vmatprep.subr.mxu0 0.0
  %440 = vmatpush1.msra.mxu0 0.0
  %441 = vmatprep.subr.mxu0 0.0
  %442 = vmatpush1.msra.mxu0 0.0
  %443 = vmatprep.subr.mxu0 0.0
  %444 = vmatpush1.msra.mxu0 0.0
  %445 = vmatprep.subr.mxu0 0.0
  %446 = vmatpush1.msra.mxu0 0.0
  %447 = vmatprep.subr.mxu0 0.0
  %448 = vmatpush1.msra.mxu0 0.0
  %449 = vmatprep.subr.mxu0 0.0
  %450 = vmatpush1.msra.mxu0 0.0
  %451 = vmatprep.subr.mxu0 0.0
  %452 = vmatpush1.msra.mxu0 0.0
  %453 = vmatprep.subr.mxu0 0.0
  %454 = vmatpush1.msra.mxu0 0.0
  %455 = vmatprep.subr.mxu0 0.0
  %456 = vmatpush1.msra.mxu0 0.0
  %457 = vmatprep.subr.mxu0 0.0
  %458 = vmatpush1.msra.mxu0 0.0
  %459 = vmatprep.subr.mxu0 0.0
  %460 = vmatpush1.msra.mxu0 0.0
  %461 = vmatprep.subr.mxu0 0.0
  %462 = vmatpush1.msra.mxu0 0.0
  %463 = vmatprep.subr.mxu0 0.0
  %464 = vmatpush1.msra.mxu0 0.0
  %465 = vmatprep.subr.mxu0 0.0
  %466 = vmatpush1.msra.mxu0 0.0
  %467 = vmatprep.subr.mxu0 0.0
  %468 = vmatpush1.msra.mxu0 0.0
  %469 = vmatprep.subr.mxu0 0.0
  %470 = vmatpush1.msra.mxu0 0.0
  %471 = vmatprep.mubr.f32.mxu0 0.0
  %472 = vmatmul.mubr.f32.gmra.mrb[0].mxu0 %v242
  %v473 = vpop.f32.mrb[0].mxu0
  %v474 = vadd.f32 %v405, %v473
  %v475 = vpop.f32.mrb[0].mxu0
  %476 = vmatprep.mubr.f32.mxu0 0.0
  %477 = vmatmul.mubr.f32.gmra.mrb[0].mxu0 %v243
  %v478 = vpop.f32.mrb[0].mxu0
  %v479 = vadd.f32 %v405, %v478
  %v480 = vpop.f32.mrb[0].mxu0
  %481 = vmatprep.mubr.f32.mxu0 0.0
  %482 = vmatmul.mubr.f32.gmra.mrb[0].mxu0 %v244
  %v483 = vpop.f32.mrb[0].mxu0
  %v484 = vadd.f32 %v405, %v483
  %v485 = vpop.f32.mrb[0].mxu0
  %486 = vmatprep.mubr.f32.mxu0 0.0
  %487 = vmatmul.mubr.f32.gmra.mrb[0].mxu0 %v245
  %v488 = vpop.f32.mrb[0].mxu0
  %v489 = vadd.f32 %v405, %v488
  %v490 = vpop.f32.mrb[0].mxu0
  %491 = vmatprep.mubr.f32.mxu0 0.0
  %492 = vmatmul.mubr.f32.gmra.mrb[0].mxu0 %v246
  %v493 = vpop.f32.mrb[0].mxu0
  %v494 = vadd.f32 %v405, %v493
  %v495 = vpop.f32.mrb[0].mxu0
  %496 = vmatprep.mubr.f32.mxu0 0.0
  %497 = vmatmul.mubr.f32.gmra.mrb[0].mxu0 %v247
  %v498 = vpop.f32.mrb[0].mxu0
  %v499 = vadd.f32 %v405, %v498
  %v500 = vpop.f32.mrb[0].mxu0
  %501 = vmatprep.mubr.f32.mxu0 0.0
  %502 = vmatmul.mubr.f32.gmra.mrb[0].mxu0 %v248
  %v503 = vpop.f32.mrb[0].mxu0
  %v504 = vadd.f32 %v405, %v503
  %v505 = vpop.f32.mrb[0].mxu0
  %506 = vmatprep.mubr.f32.mxu0 0.0
  %507 = vmatmul.mubr.f32.gmra.mrb[0].mxu0 %v249
  %v508 = vpop.f32.mrb[0].mxu0
  %v509 = vadd.f32 %v405, %v508
  %v510 = vpop.f32.mrb[0].mxu0
  %511 = vmatprep.mubr.f32.mxu0 0.0
  %512 = vmatmul.mubr.f32.gmra.mrb[0].mxu0 %v250
  %v513 = vpop.f32.mrb[0].mxu0
  %v514 = vadd.f32 %v405, %v513
  %v515 = vpop.f32.mrb[0].mxu0
  %516 = vdwg.mxu0
  %v517 = vld [vmem:[%s9] sm:$0xff]
  %v518 = vld [vmem:[%s9 + $0x8] sm:$0xff]
  %v519 = vld [vmem:[%s9 + $0x10] sm:$0xff]
  %v520 = vld [vmem:[%s9 + $0x18] sm:$0xff]
  %v521 = vld [vmem:[%s9 + $0x20] sm:$0xff]
  %v522 = vld [vmem:[%s9 + $0x28] sm:$0xff]
  %v523 = vld [vmem:[%s9 + $0x30] sm:$0xff]
  %v524 = vld [vmem:[%s9 + $0x38] sm:$0xff]
  %v525 = vld [vmem:[%s9 + $0x40] sm:$0xff]
  %v526 = vld [vmem:[%s9 + $0x48] sm:$0xff]
  %v527 = vld [vmem:[%s9 + $0x50] sm:$0xff]
  %v528 = vld [vmem:[%s9 + $0x58] sm:$0xff]
  %v529 = vld [vmem:[%s9 + $0x60] sm:$0xff]
  %v530 = vld [vmem:[%s9 + $0x68] sm:$0xff]
  %v531 = vld [vmem:[%s9 + $0x70] sm:$0xff]
  %v532 = vld [vmem:[%s9 + $0x78] sm:$0xff]
  %v533 = vld [vmem:[%s10] sm:$0x1]
  %v535 = vlaneseq
  %v536 = vshrl.u32 %v535, 7
  %v537 = vsub.s32 0, %v536
  %v538 = vrot.slane %v533, %v537
  %540 = vmatprep.subr.mxu0 0.0
  %541 = vmatpush1.msra.mxu0 %v517
  %542 = vmatprep.subr.mxu0 0.0
  %543 = vmatpush1.msra.mxu0 %v518
  %544 = vmatprep.subr.mxu0 0.0
  %545 = vmatpush1.msra.mxu0 %v519
  %546 = vmatprep.subr.mxu0 0.0
  %547 = vmatpush1.msra.mxu0 %v520
  %548 = vmatprep.subr.mxu0 0.0
  %549 = vmatpush1.msra.mxu0 %v521
  %550 = vmatprep.subr.mxu0 0.0
  %551 = vmatpush1.msra.mxu0 %v522
  %552 = vmatprep.subr.mxu0 0.0
  %553 = vmatpush1.msra.mxu0 %v523
  %554 = vmatprep.subr.mxu0 0.0
  %555 = vmatpush1.msra.mxu0 %v524
  %556 = vmatprep.subr.mxu0 0.0
  %557 = vmatpush1.msra.mxu0 %v525
  %558 = vmatprep.subr.mxu0 0.0
  %559 = vmatpush1.msra.mxu0 %v526
  %560 = vmatprep.subr.mxu0 0.0
  %561 = vmatpush1.msra.mxu0 %v527
  %562 = vmatprep.subr.mxu0 0.0
  %563 = vmatpush1.msra.mxu0 %v528
  %564 = vmatprep.subr.mxu0 0.0
  %565 = vmatpush1.msra.mxu0 %v529
  %566 = vmatprep.subr.mxu0 0.0
  %567 = vmatpush1.msra.mxu0 %v530
  %568 = vmatprep.subr.mxu0 0.0
  %569 = vmatpush1.msra.mxu0 %v531
  %570 = vmatprep.subr.mxu0 0.0
  %571 = vmatpush1.msra.mxu0 %v532
  %572 = vmatprep.subr.mxu0 0.0
  %573 = vmatpush1.msra.mxu0 0.0
  %574 = vmatprep.subr.mxu0 0.0
  %575 = vmatpush1.msra.mxu0 0.0
  %576 = vmatprep.subr.mxu0 0.0
  %577 = vmatpush1.msra.mxu0 0.0
  %578 = vmatprep.subr.mxu0 0.0
  %579 = vmatpush1.msra.mxu0 0.0
  %580 = vmatprep.subr.mxu0 0.0
  %581 = vmatpush1.msra.mxu0 0.0
  %582 = vmatprep.subr.mxu0 0.0
  %583 = vmatpush1.msra.mxu0 0.0
  %584 = vmatprep.subr.mxu0 0.0
  %585 = vmatpush1.msra.mxu0 0.0
  %586 = vmatprep.subr.mxu0 0.0
  %587 = vmatpush1.msra.mxu0 0.0
  %588 = vmatprep.subr.mxu0 0.0
  %589 = vmatpush1.msra.mxu0 0.0
  %590 = vmatprep.subr.mxu0 0.0
  %591 = vmatpush1.msra.mxu0 0.0
  %592 = vmatprep.subr.mxu0 0.0
  %593 = vmatpush1.msra.mxu0 0.0
  %594 = vmatprep.subr.mxu0 0.0
  %595 = vmatpush1.msra.mxu0 0.0
  %596 = vmatprep.subr.mxu0 0.0
  %597 = vmatpush1.msra.mxu0 0.0
  %598 = vmatprep.subr.mxu0 0.0
  %599 = vmatpush1.msra.mxu0 0.0
  %600 = vmatprep.subr.mxu0 0.0
  %601 = vmatpush1.msra.mxu0 0.0
  %602 = vmatprep.subr.mxu0 0.0
  %603 = vmatpush1.msra.mxu0 0.0
  %604 = vmatprep.mubr.f32.mxu0 0.0
  %605 = vmatmul.mubr.f32.gmra.mrb[0].mxu0 %v242
  %v606 = vpop.f32.mrb[0].mxu0
  %v607 = vadd.f32 %v538, %v606
  %v608 = vpop.f32.mrb[0].mxu0
  %609 = vmatprep.mubr.f32.mxu0 0.0
  %610 = vmatmul.mubr.f32.gmra.mrb[0].mxu0 %v243
  %v611 = vpop.f32.mrb[0].mxu0
  %v612 = vadd.f32 %v538, %v611
  %v613 = vpop.f32.mrb[0].mxu0
  %614 = vmatprep.mubr.f32.mxu0 0.0
  %615 = vmatmul.mubr.f32.gmra.mrb[0].mxu0 %v244
  %v616 = vpop.f32.mrb[0].mxu0
  %v617 = vadd.f32 %v538, %v616
  %v618 = vpop.f32.mrb[0].mxu0
  %619 = vmatprep.mubr.f32.mxu0 0.0
  %620 = vmatmul.mubr.f32.gmra.mrb[0].mxu0 %v245
  %v621 = vpop.f32.mrb[0].mxu0
  %v622 = vadd.f32 %v538, %v621
  %v623 = vpop.f32.mrb[0].mxu0
  %624 = vmatprep.mubr.f32.mxu0 0.0
  %625 = vmatmul.mubr.f32.gmra.mrb[0].mxu0 %v246
  %v626 = vpop.f32.mrb[0].mxu0
  %v627 = vadd.f32 %v538, %v626
  %v628 = vpop.f32.mrb[0].mxu0
  %629 = vmatprep.mubr.f32.mxu0 0.0
  %630 = vmatmul.mubr.f32.gmra.mrb[0].mxu0 %v247
  %v631 = vpop.f32.mrb[0].mxu0
  %v632 = vadd.f32 %v538, %v631
  %v633 = vpop.f32.mrb[0].mxu0
  %634 = vmatprep.mubr.f32.mxu0 0.0
  %635 = vmatmul.mubr.f32.gmra.mrb[0].mxu0 %v248
  %v636 = vpop.f32.mrb[0].mxu0
  %v637 = vadd.f32 %v538, %v636
  %v638 = vpop.f32.mrb[0].mxu0
  %639 = vmatprep.mubr.f32.mxu0 0.0
  %640 = vmatmul.mubr.f32.gmra.mrb[0].mxu0 %v249
  %v641 = vpop.f32.mrb[0].mxu0
  %v642 = vadd.f32 %v538, %v641
  %v643 = vpop.f32.mrb[0].mxu0
  %644 = vmatprep.mubr.f32.mxu0 0.0
  %645 = vmatmul.mubr.f32.gmra.mrb[0].mxu0 %v250
  %v646 = vpop.f32.mrb[0].mxu0
  %v647 = vadd.f32 %v538, %v646
  %v648 = vpop.f32.mrb[0].mxu0
  %649 = vdwg.mxu0
  %650 = vmatprep.subr.mxu0 0.0
  %651 = vmatpush1.xpose.msra.mxu0 %v474
  %652 = vmatprep.subr.mxu0 0.0
  %653 = vmatpush1.xpose.msra.mxu0 %v479
  %654 = vmatprep.subr.mxu0 0.0
  %655 = vmatpush1.xpose.msra.mxu0 %v484
  %656 = vmatprep.subr.mxu0 0.0
  %657 = vmatpush1.xpose.msra.mxu0 %v489
  %658 = vmatprep.subr.mxu0 0.0
  %659 = vmatpush1.xpose.msra.mxu0 %v494
  %660 = vmatprep.subr.mxu0 0.0
  %661 = vmatpush1.xpose.msra.mxu0 %v499
  %662 = vmatprep.subr.mxu0 0.0
  %663 = vmatpush1.xpose.msra.mxu0 %v504
  %664 = vmatprep.subr.mxu0 0.0
  %665 = vmatpush1.xpose.msra.mxu0 %v509
  %666 = vmatprep.subr.mxu0 0.0
  %667 = vmatpush1.xpose.msra.mxu0 %v514
  %668 = vmatprep.subr.mxu0 0.0
  %669 = vmatpush1.xpose.msra.mxu0 0.0
  %670 = vmatprep.subr.mxu0 0.0
  %671 = vmatpush1.xpose.msra.mxu0 0.0
  %672 = vmatprep.subr.mxu0 0.0
  %673 = vmatpush1.xpose.msra.mxu0 0.0
  %674 = vmatprep.subr.mxu0 0.0
  %675 = vmatpush1.xpose.msra.mxu0 0.0
  %676 = vmatprep.subr.mxu0 0.0
  %677 = vmatpush1.xpose.msra.mxu0 0.0
  %678 = vmatprep.subr.mxu0 0.0
  %679 = vmatpush1.xpose.msra.mxu0 0.0
  %680 = vmatprep.subr.mxu0 0.0
  %681 = vmatpush1.xpose.msra.mxu0 0.0
  %682 = vmatprep.subr.mxu0 0.0
  %683 = vmatpush1.xpose.msra.mxu0 0.0
  %684 = vmatprep.subr.mxu0 0.0
  %685 = vmatpush1.xpose.msra.mxu0 0.0
  %686 = vmatprep.subr.mxu0 0.0
  %687 = vmatpush1.xpose.msra.mxu0 0.0
  %688 = vmatprep.subr.mxu0 0.0
  %689 = vmatpush1.xpose.msra.mxu0 0.0
  %690 = vmatprep.subr.mxu0 0.0
  %691 = vmatpush1.xpose.msra.mxu0 0.0
  %692 = vmatprep.subr.mxu0 0.0
  %693 = vmatpush1.xpose.msra.mxu0 0.0
  %694 = vmatprep.subr.mxu0 0.0
  %695 = vmatpush1.xpose.msra.mxu0 0.0
  %696 = vmatprep.subr.mxu0 0.0
  %697 = vmatpush1.xpose.msra.mxu0 0.0
  %698 = vmatprep.subr.mxu0 0.0
  %699 = vmatpush1.xpose.msra.mxu0 0.0
  %700 = vmatprep.subr.mxu0 0.0
  %701 = vmatpush1.xpose.msra.mxu0 0.0
  %702 = vmatprep.subr.mxu0 0.0
  %703 = vmatpush1.xpose.msra.mxu0 0.0
  %704 = vmatprep.subr.mxu0 0.0
  %705 = vmatpush1.xpose.msra.mxu0 0.0
  %706 = vmatprep.subr.mxu0 0.0
  %707 = vmatpush1.xpose.msra.mxu0 0.0
  %708 = vmatprep.subr.mxu0 0.0
  %709 = vmatpush1.xpose.msra.mxu0 0.0
  %710 = vmatprep.subr.mxu0 0.0
  %711 = vmatpush1.xpose.msra.mxu0 0.0
  %712 = vmatprep.subr.mxu0 0.0
  %713 = vmatpush1.xpose.msra.mxu0 0.0
  %714 = vmatprep.mubr.f32.mxu0 0.0
  %715 = vmatmul.mubr.f32.gmra.mrb[0].mxu0 %v341
  %v716 = vpop.f32.mrb[0].mxu0
  %v717 = vadd.f32 0.0, %v716
  %v718 = vpop.f32.mrb[0].mxu0
  %719 = vmatprep.mubr.f32.mxu0 0.0
  %720 = vmatmul.mubr.f32.gmra.mrb[0].mxu0 %v346
  %v721 = vpop.f32.mrb[0].mxu0
  %v722 = vadd.f32 0.0, %v721
  %v723 = vpop.f32.mrb[0].mxu0
  %724 = vmatprep.mubr.f32.mxu0 0.0
  %725 = vmatmul.mubr.f32.gmra.mrb[0].mxu0 %v351
  %v726 = vpop.f32.mrb[0].mxu0
  %v727 = vadd.f32 0.0, %v726
  %v728 = vpop.f32.mrb[0].mxu0
  %729 = vmatprep.mubr.f32.mxu0 0.0
  %730 = vmatmul.mubr.f32.gmra.mrb[0].mxu0 %v356
  %v731 = vpop.f32.mrb[0].mxu0
  %v732 = vadd.f32 0.0, %v731
  %v733 = vpop.f32.mrb[0].mxu0
  %734 = vmatprep.mubr.f32.mxu0 0.0
  %735 = vmatmul.mubr.f32.gmra.mrb[0].mxu0 %v361
  %v736 = vpop.f32.mrb[0].mxu0
  %v737 = vadd.f32 0.0, %v736
  %v738 = vpop.f32.mrb[0].mxu0
  %739 = vmatprep.mubr.f32.mxu0 0.0
  %740 = vmatmul.mubr.f32.gmra.mrb[0].mxu0 %v366
  %v741 = vpop.f32.mrb[0].mxu0
  %v742 = vadd.f32 0.0, %v741
  %v743 = vpop.f32.mrb[0].mxu0
  %744 = vmatprep.mubr.f32.mxu0 0.0
  %745 = vmatmul.mubr.f32.gmra.mrb[0].mxu0 %v371
  %v746 = vpop.f32.mrb[0].mxu0
  %v747 = vadd.f32 0.0, %v746
  %v748 = vpop.f32.mrb[0].mxu0
  %749 = vmatprep.mubr.f32.mxu0 0.0
  %750 = vmatmul.mubr.f32.gmra.mrb[0].mxu0 %v376
  %v751 = vpop.f32.mrb[0].mxu0
  %v752 = vadd.f32 0.0, %v751
  %v753 = vpop.f32.mrb[0].mxu0
  %754 = vmatprep.mubr.f32.mxu0 0.0
  %755 = vmatmul.mubr.f32.gmra.mrb[0].mxu0 %v381
  %v756 = vpop.f32.mrb[0].mxu0
  %v757 = vadd.f32 0.0, %v756
  %v758 = vpop.f32.mrb[0].mxu0
  %759 = vdwg.mxu0
  %v760 = vmul.f32 %v717, 0.1
  %v761 = vmul.f32 %v722, 0.1
  %v762 = vmul.f32 %v727, 0.1
  %v763 = vmul.f32 %v732, 0.1
  %v764 = vmul.f32 %v737, 0.1
  %v765 = vmul.f32 %v742, 0.1
  %v766 = vmul.f32 %v747, 0.1
  %v767 = vmul.f32 %v752, 0.1
  %v768 = vmul.f32 %v757, 0.1
  %v769 = vld [vmem:[%s2] sm:$0xff]
  %v770 = vld [vmem:[%s2 + $0x8] sm:$0xff]
  %v771 = vld [vmem:[%s2 + $0x10] sm:$0xff]
  %v772 = vld [vmem:[%s2 + $0x18] sm:$0xff]
  %v773 = vld [vmem:[%s2 + $0x20] sm:$0xff]
  %v774 = vld [vmem:[%s2 + $0x28] sm:$0xff]
  %v775 = vld [vmem:[%s2 + $0x30] sm:$0xff]
  %v776 = vld [vmem:[%s2 + $0x38] sm:$0xff]
  %v777 = vld [vmem:[%s2 + $0x40] sm:$0xff]
  %v778 = vadd.f32 %v760, %v769
  %v779 = vadd.f32 %v761, %v770
  %v780 = vadd.f32 %v762, %v771
  %v781 = vadd.f32 %v763, %v772
  %v782 = vadd.f32 %v764, %v773
  %v783 = vadd.f32 %v765, %v774
  %v784 = vadd.f32 %v766, %v775
  %v785 = vadd.f32 %v767, %v776
  %v786 = vadd.f32 %v768, %v777
  %vm787 = vcmask 588800
  %v788 = vsel %vm787, %v778, -inf
  %789 = vmax.xlane.f32.xlu0 %v788
  %v790 = vpop.xlane.xlu0 %789
  %v791 = vsel %vm787, %v779, -inf
  %792 = vmax.xlane.f32.xlu0 %v791
  %v793 = vpop.xlane.xlu0 %792
  %v794 = vsel %vm787, %v780, -inf
  %795 = vmax.xlane.f32.xlu0 %v794
  %v796 = vpop.xlane.xlu0 %795
  %v797 = vsel %vm787, %v781, -inf
  %798 = vmax.xlane.f32.xlu0 %v797
  %v799 = vpop.xlane.xlu0 %798
  %v800 = vsel %vm787, %v782, -inf
  %801 = vmax.xlane.f32.xlu0 %v800
  %v802 = vpop.xlane.xlu0 %801
  %v803 = vsel %vm787, %v783, -inf
  %804 = vmax.xlane.f32.xlu0 %v803
  %v805 = vpop.xlane.xlu0 %804
  %v806 = vsel %vm787, %v784, -inf
  %807 = vmax.xlane.f32.xlu0 %v806
  %v808 = vpop.xlane.xlu0 %807
  %v809 = vsel %vm787, %v785, -inf
  %810 = vmax.xlane.f32.xlu0 %v809
  %v811 = vpop.xlane.xlu0 %810
  %v812 = vsel %vm787, %v786, -inf
  %813 = vmax.xlane.f32.xlu0 %v812
  %v814 = vpop.xlane.xlu0 %813
  %v815 = vsub.f32 %v778, %v790
  %v816 = vsub.f32 %v779, %v793
  %v817 = vsub.f32 %v780, %v796
  %v818 = vsub.f32 %v781, %v799
  %v819 = vsub.f32 %v782, %v802
  %v820 = vsub.f32 %v783, %v805
  %v821 = vsub.f32 %v784, %v808
  %v822 = vsub.f32 %v785, %v811
  %v823 = vsub.f32 %v786, %v814
  %v824 = vmul.f32 %v815, 1.442695
  %v825 = vpow.pop %v824
  %v826 = vmul.f32 %v816, 1.442695
  %v827 = vpow.pop %v826
  %v828 = vmul.f32 %v817, 1.442695
  %v829 = vpow.pop %v828
  %v830 = vmul.f32 %v818, 1.442695
  %v831 = vpow.pop %v830
  %v832 = vmul.f32 %v819, 1.442695
  %v833 = vpow.pop %v832
  %v834 = vmul.f32 %v820, 1.442695
  %v835 = vpow.pop %v834
  %v836 = vmul.f32 %v821, 1.442695
  %v837 = vpow.pop %v836
  %v838 = vmul.f32 %v822, 1.442695
  %v839 = vpow.pop %v838
  %v840 = vmul.f32 %v823, 1.442695
  %v841 = vpow.pop %v840
  %v842 = vsel %vm787, %v825, 0.0
  %843 = vadd.xlane.f32.xlu0 %v842
  %v844 = vpop.xlane.xlu0 %843
  %v845 = vsel %vm787, %v827, 0.0
  %846 = vadd.xlane.f32.xlu0 %v845
  %v847 = vpop.xlane.xlu0 %846
  %v848 = vsel %vm787, %v829, 0.0
  %849 = vadd.xlane.f32.xlu0 %v848
  %v850 = vpop.xlane.xlu0 %849
  %v851 = vsel %vm787, %v831, 0.0
  %852 = vadd.xlane.f32.xlu0 %v851
  %v853 = vpop.xlane.xlu0 %852
  %v854 = vsel %vm787, %v833, 0.0
  %855 = vadd.xlane.f32.xlu0 %v854
  %v856 = vpop.xlane.xlu0 %855
  %v857 = vsel %vm787, %v835, 0.0
  %858 = vadd.xlane.f32.xlu0 %v857
  %v859 = vpop.xlane.xlu0 %858
  %v860 = vsel %vm787, %v837, 0.0
  %861 = vadd.xlane.f32.xlu0 %v860
  %v862 = vpop.xlane.xlu0 %861
  %v863 = vsel %vm787, %v839, 0.0
  %864 = vadd.xlane.f32.xlu0 %v863
  %v865 = vpop.xlane.xlu0 %864
  %v866 = vsel %vm787, %v841, 0.0
  %867 = vadd.xlane.f32.xlu0 %v866
  %v868 = vpop.xlane.xlu0 %867
  %v869 = vrcp.pop %v844
  %v870 = vrcp.pop %v847
  %v871 = vrcp.pop %v850
  %v872 = vrcp.pop %v853
  %v873 = vrcp.pop %v856
  %v874 = vrcp.pop %v859
  %v875 = vrcp.pop %v862
  %v876 = vrcp.pop %v865
  %v877 = vrcp.pop %v868
  %v878 = vmul.f32 %v825, %v869
  %v879 = vmul.f32 %v827, %v870
  %v880 = vmul.f32 %v829, %v871
  %v881 = vmul.f32 %v831, %v872
  %v882 = vmul.f32 %v833, %v873
  %v883 = vmul.f32 %v835, %v874
  %v884 = vmul.f32 %v837, %v875
  %v885 = vmul.f32 %v839, %v876
  %v886 = vmul.f32 %v841, %v877
  %v888 = vsel %vm787, %v878, 0
  %v891 = vsel %vm787, %v879, 0
  %v894 = vsel %vm787, %v880, 0
  %v897 = vsel %vm787, %v881, 0
  %v900 = vsel %vm787, %v882, 0
  %v903 = vsel %vm787, %v883, 0
  %v906 = vsel %vm787, %v884, 0
  %v909 = vsel %vm787, %v885, 0
  %v912 = vsel %vm787, %v886, 0
  %914 = vmatprep.subr.mxu0 0.0
  %915 = vmatpush1.msra.mxu0 %v607
  %916 = vmatprep.subr.mxu0 0.0
  %917 = vmatpush1.msra.mxu0 %v612
  %918 = vmatprep.subr.mxu0 0.0
  %919 = vmatpush1.msra.mxu0 %v617
  %920 = vmatprep.subr.mxu0 0.0
  %921 = vmatpush1.msra.mxu0 %v622
  %922 = vmatprep.subr.mxu0 0.0
  %923 = vmatpush1.msra.mxu0 %v627
  %924 = vmatprep.subr.mxu0 0.0
  %925 = vmatpush1.msra.mxu0 %v632
  %926 = vmatprep.subr.mxu0 0.0
  %927 = vmatpush1.msra.mxu0 %v637
  %928 = vmatprep.subr.mxu0 0.0
  %929 = vmatpush1.msra.mxu0 %v642
  %930 = vmatprep.subr.mxu0 0.0
  %931 = vmatpush1.msra.mxu0 %v647
  %932 = vmatprep.subr.mxu0 0.0
  %933 = vmatpush1.msra.mxu0 0.0
  %934 = vmatprep.subr.mxu0 0.0
  %935 = vmatpush1.msra.mxu0 0.0
  %936 = vmatprep.subr.mxu0 0.0
  %937 = vmatpush1.msra.mxu0 0.0
  %938 = vmatprep.subr.mxu0 0.0
  %939 = vmatpush1.msra.mxu0 0.0
  %940 = vmatprep.subr.mxu0 0.0
  %941 = vmatpush1.msra.mxu0 0.0
  %942 = vmatprep.subr.mxu0 0.0
  %943 = vmatpush1.msra.mxu0 0.0
  %944 = vmatprep.subr.mxu0 0.0
  %945 = vmatpush1.msra.mxu0 0.0
  %946 = vmatprep.subr.mxu0 0.0
  %947 = vmatpush1.msra.mxu0 0.0
  %948 = vmatprep.subr.mxu0 0.0
  %949 = vmatpush1.msra.mxu0 0.0
  %950 = vmatprep.subr.mxu0 0.0
  %951 = vmatpush1.msra.mxu0 0.0
  %952 = vmatprep.subr.mxu0 0.0
  %953 = vmatpush1.msra.mxu0 0.0
  %954 = vmatprep.subr.mxu0 0.0
  %955 = vmatpush1.msra.mxu0 0.0
  %956 = vmatprep.subr.mxu0 0.0
  %957 = vmatpush1.msra.mxu0 0.0
  %958 = vmatprep.subr.mxu0 0.0
  %959 = vmatpush1.msra.mxu0 0.0
  %960 = vmatprep.subr.mxu0 0.0
  %961 = vmatpush1.msra.mxu0 0.0
  %962 = vmatprep.subr.mxu0 0.0
  %963 = vmatpush1.msra.mxu0 0.0
  %964 = vmatprep.subr.mxu0 0.0
  %965 = vmatpush1.msra.mxu0 0.0
  %966 = vmatprep.subr.mxu0 0.0
  %967 = vmatpush1.msra.mxu0 0.0
  %968 = vmatprep.subr.mxu0 0.0
  %969 = vmatpush1.msra.mxu0 0.0
  %970 = vmatprep.subr.mxu0 0.0
  %971 = vmatpush1.msra.mxu0 0.0
  %972 = vmatprep.subr.mxu0 0.0
  %973 = vmatpush1.msra.mxu0 0.0
  %974 = vmatprep.subr.mxu0 0.0
  %975 = vmatpush1.msra.mxu0 0.0
  %976 = vmatprep.subr.mxu0 0.0
  %977 = vmatpush1.msra.mxu0 0.0
  %978 = vmatprep.mubr.f32.mxu0 0.0
  %979 = vmatmul.mubr.f32.gmra.mrb[0].mxu0 %v888
  %v980 = vpop.f32.mrb[0].mxu0
  %v981 = vadd.f32 0.0, %v980
  %v982 = vpop.f32.mrb[0].mxu0
  %983 = vmatprep.mubr.f32.mxu0 0.0
  %984 = vmatmul.mubr.f32.gmra.mrb[0].mxu0 %v891
  %v985 = vpop.f32.mrb[0].mxu0
  %v986 = vadd.f32 0.0, %v985
  %v987 = vpop.f32.mrb[0].mxu0
  %988 = vmatprep.mubr.f32.mxu0 0.0
  %989 = vmatmul.mubr.f32.gmra.mrb[0].mxu0 %v894
  %v990 = vpop.f32.mrb[0].mxu0
  %v991 = vadd.f32 0.0, %v990
  %v992 = vpop.f32.mrb[0].mxu0
  %993 = vmatprep.mubr.f32.mxu0 0.0
  %994 = vmatmul.mubr.f32.gmra.mrb[0].mxu0 %v897
  %v995 = vpop.f32.mrb[0].mxu0
  %v996 = vadd.f32 0.0, %v995
  %v997 = vpop.f32.mrb[0].mxu0
  %998 = vmatprep.mubr.f32.mxu0 0.0
  %999 = vmatmul.mubr.f32.gmra.mrb[0].mxu0 %v900
  %v1000 = vpop.f32.mrb[0].mxu0
  %v1001 = vadd.f32 0.0, %v1000
  %v1002 = vpop.f32.mrb[0].mxu0
  %1003 = vmatprep.mubr.f32.mxu0 0.0
  %1004 = vmatmul.mubr.f32.gmra.mrb[0].mxu0 %v903
  %v1005 = vpop.f32.mrb[0].mxu0
  %v1006 = vadd.f32 0.0, %v1005
  %v1007 = vpop.f32.mrb[0].mxu0
  %1008 = vmatprep.mubr.f32.mxu0 0.0
  %1009 = vmatmul.mubr.f32.gmra.mrb[0].mxu0 %v906
  %v1010 = vpop.f32.mrb[0].mxu0
  %v1011 = vadd.f32 0.0, %v1010
  %v1012 = vpop.f32.mrb[0].mxu0
  %1013 = vmatprep.mubr.f32.mxu0 0.0
  %1014 = vmatmul.mubr.f32.gmra.mrb[0].mxu0 %v909
  %v1015 = vpop.f32.mrb[0].mxu0
  %v1016 = vadd.f32 0.0, %v1015
  %v1017 = vpop.f32.mrb[0].mxu0
  %1018 = vmatprep.mubr.f32.mxu0 0.0
  %1019 = vmatmul.mubr.f32.gmra.mrb[0].mxu0 %v912
  %v1020 = vpop.f32.mrb[0].mxu0
  %v1021 = vadd.f32 0.0, %v1020
  %v1022 = vpop.f32.mrb[0].mxu0
  %1023 = vdwg.mxu0
  %v1024 = vld [vmem:[%s11] sm:$0xff]
  %v1025 = vld [vmem:[%s11 + $0x8] sm:$0xff]
  %v1026 = vld [vmem:[%s11 + $0x10] sm:$0xff]
  %v1027 = vld [vmem:[%s11 + $0x18] sm:$0xff]
  %v1028 = vld [vmem:[%s11 + $0x20] sm:$0xff]
  %v1029 = vld [vmem:[%s11 + $0x28] sm:$0xff]
  %v1030 = vld [vmem:[%s11 + $0x30] sm:$0xff]
  %v1031 = vld [vmem:[%s11 + $0x38] sm:$0xff]
  %v1032 = vld [vmem:[%s11 + $0x40] sm:$0xff]
  %v1033 = vld [vmem:[%s11 + $0x48] sm:$0xff]
  %v1034 = vld [vmem:[%s11 + $0x50] sm:$0xff]
  %v1035 = vld [vmem:[%s11 + $0x58] sm:$0xff]
  %v1036 = vld [vmem:[%s11 + $0x60] sm:$0xff]
  %v1037 = vld [vmem:[%s11 + $0x68] sm:$0xff]
  %v1038 = vld [vmem:[%s11 + $0x70] sm:$0xff]
  %v1039 = vld [vmem:[%s11 + $0x78] sm:$0xff]
  %v1040 = vld [vmem:[%s12] sm:$0x1]
  %v1042 = vlaneseq
  %v1043 = vshrl.u32 %v1042, 7
  %v1044 = vsub.s32 0, %v1043
  %v1045 = vrot.slane %v1040, %v1044
  %1047 = vmatprep.subr.mxu0 0.0
  %1048 = vmatpush1.msra.mxu0 %v1024
  %1049 = vmatprep.subr.mxu0 0.0
  %1050 = vmatpush1.msra.mxu0 %v1025
  %1051 = vmatprep.subr.mxu0 0.0
  %1052 = vmatpush1.msra.mxu0 %v1026
  %1053 = vmatprep.subr.mxu0 0.0
  %1054 = vmatpush1.msra.mxu0 %v1027
  %1055 = vmatprep.subr.mxu0 0.0
  %1056 = vmatpush1.msra.mxu0 %v1028
  %1057 = vmatprep.subr.mxu0 0.0
  %1058 = vmatpush1.msra.mxu0 %v1029
  %1059 = vmatprep.subr.mxu0 0.0
  %1060 = vmatpush1.msra.mxu0 %v1030
  %1061 = vmatprep.subr.mxu0 0.0
  %1062 = vmatpush1.msra.mxu0 %v1031
  %1063 = vmatprep.subr.mxu0 0.0
  %1064 = vmatpush1.msra.mxu0 %v1032
  %1065 = vmatprep.subr.mxu0 0.0
  %1066 = vmatpush1.msra.mxu0 %v1033
  %1067 = vmatprep.subr.mxu0 0.0
  %1068 = vmatpush1.msra.mxu0 %v1034
  %1069 = vmatprep.subr.mxu0 0.0
  %1070 = vmatpush1.msra.mxu0 %v1035
  %1071 = vmatprep.subr.mxu0 0.0
  %1072 = vmatpush1.msra.mxu0 %v1036
  %1073 = vmatprep.subr.mxu0 0.0
  %1074 = vmatpush1.msra.mxu0 %v1037
  %1075 = vmatprep.subr.mxu0 0.0
  %1076 = vmatpush1.msra.mxu0 %v1038
  %1077 = vmatprep.subr.mxu0 0.0
  %1078 = vmatpush1.msra.mxu0 %v1039
  %1079 = vmatprep.subr.mxu0 0.0
  %1080 = vmatpush1.msra.mxu0 0.0
  %1081 = vmatprep.subr.mxu0 0.0
  %1082 = vmatpush1.msra.mxu0 0.0
  %1083 = vmatprep.subr.mxu0 0.0
  %1084 = vmatpush1.msra.mxu0 0.0
  %1085 = vmatprep.subr.mxu0 0.0
  %1086 = vmatpush1.msra.mxu0 0.0
  %1087 = vmatprep.subr.mxu0 0.0
  %1088 = vmatpush1.msra.mxu0 0.0
  %1089 = vmatprep.subr.mxu0 0.0
  %1090 = vmatpush1.msra.mxu0 0.0
  %1091 = vmatprep.subr.mxu0 0.0
  %1092 = vmatpush1.msra.mxu0 0.0
  %1093 = vmatprep.subr.mxu0 0.0
  %1094 = vmatpush1.msra.mxu0 0.0
  %1095 = vmatprep.subr.mxu0 0.0
  %1096 = vmatpush1.msra.mxu0 0.0
  %1097 = vmatprep.subr.mxu0 0.0
  %1098 = vmatpush1.msra.mxu0 0.0
  %1099 = vmatprep.subr.mxu0 0.0
  %1100 = vmatpush1.msra.mxu0 0.0
  %1101 = vmatprep.subr.mxu0 0.0
  %1102 = vmatpush1.msra.mxu0 0.0
  %1103 = vmatprep.subr.mxu0 0.0
  %1104 = vmatpush1.msra.mxu0 0.0
  %1105 = vmatprep.subr.mxu0 0.0
  %1106 = vmatpush1.msra.mxu0 0.0
  %1107 = vmatprep.subr.mxu0 0.0
  %1108 = vmatpush1.msra.mxu0 0.0
  %1109 = vmatprep.subr.mxu0 0.0
  %1110 = vmatpush1.msra.mxu0 0.0
  %1111 = vmatprep.mubr.f32.mxu0 0.0
  %1112 = vmatmul.mubr.f32.gmra.mrb[0].mxu0 %v981
  %v1113 = vpop.f32.mrb[0].mxu0
  %v1114 = vadd.f32 %v1045, %v1113
  %v1115 = vpop.f32.mrb[0].mxu0
  %1116 = vmatprep.mubr.f32.mxu0 0.0
  %1117 = vmatmul.mubr.f32.gmra.mrb[0].mxu0 %v986
  %v1118 = vpop.f32.mrb[0].mxu0
  %v1119 = vadd.f32 %v1045, %v1118
  %v1120 = vpop.f32.mrb[0].mxu0
  %1121 = vmatprep.mubr.f32.mxu0 0.0
  %1122 = vmatmul.mubr.f32.gmra.mrb[0].mxu0 %v991
  %v1123 = vpop.f32.mrb[0].mxu0
  %v1124 = vadd.f32 %v1045, %v1123
  %v1125 = vpop.f32.mrb[0].mxu0
  %1126 = vmatprep.mubr.f32.mxu0 0.0
  %1127 = vmatmul.mubr.f32.gmra.mrb[0].mxu0 %v996
  %v1128 = vpop.f32.mrb[0].mxu0
  %v1129 = vadd.f32 %v1045, %v1128
  %v1130 = vpop.f32.mrb[0].mxu0
  %1131 = vmatprep.mubr.f32.mxu0 0.0
  %1132 = vmatmul.mubr.f32.gmra.mrb[0].mxu0 %v1001
  %v1133 = vpop.f32.mrb[0].mxu0
  %v1134 = vadd.f32 %v1045, %v1133
  %v1135 = vpop.f32.mrb[0].mxu0
  %1136 = vmatprep.mubr.f32.mxu0 0.0
  %1137 = vmatmul.mubr.f32.gmra.mrb[0].mxu0 %v1006
  %v1138 = vpop.f32.mrb[0].mxu0
  %v1139 = vadd.f32 %v1045, %v1138
  %v1140 = vpop.f32.mrb[0].mxu0
  %1141 = vmatprep.mubr.f32.mxu0 0.0
  %1142 = vmatmul.mubr.f32.gmra.mrb[0].mxu0 %v1011
  %v1143 = vpop.f32.mrb[0].mxu0
  %v1144 = vadd.f32 %v1045, %v1143
  %v1145 = vpop.f32.mrb[0].mxu0
  %1146 = vmatprep.mubr.f32.mxu0 0.0
  %1147 = vmatmul.mubr.f32.gmra.mrb[0].mxu0 %v1016
  %v1148 = vpop.f32.mrb[0].mxu0
  %v1149 = vadd.f32 %v1045, %v1148
  %v1150 = vpop.f32.mrb[0].mxu0
  %1151 = vmatprep.mubr.f32.mxu0 0.0
  %1152 = vmatmul.mubr.f32.gmra.mrb[0].mxu0 %v1021
  %v1153 = vpop.f32.mrb[0].mxu0
  %v1154 = vadd.f32 %v1045, %v1153
  %v1155 = vpop.f32.mrb[0].mxu0
  %1156 = vdwg.mxu0
  %v1157 = vadd.f32 %v91, %v1114
  %v1158 = vadd.f32 %v92, %v1119
  %v1159 = vadd.f32 %v93, %v1124
  %v1160 = vadd.f32 %v94, %v1129
  %v1161 = vadd.f32 %v95, %v1134
  %v1162 = vadd.f32 %v96, %v1139
  %v1163 = vadd.f32 %v97, %v1144
  %v1164 = vadd.f32 %v98, %v1149
  %v1165 = vadd.f32 %v99, %v1154
  %v1166 = vld [vmem:[%s13] sm:$0x1]
  %v1167 = vld [vmem:[%s14] sm:$0x1]
  %v1168 = vsel %vm103, %v1157, 0.0
  %v1169 = vsel %vm103, %v1158, 0.0
  %v1170 = vsel %vm103, %v1159, 0.0
  %v1171 = vsel %vm103, %v1160, 0.0
  %v1172 = vsel %vm103, %v1161, 0.0
  %v1173 = vsel %vm103, %v1162, 0.0
  %v1174 = vsel %vm103, %v1163, 0.0
  %v1175 = vsel %vm103, %v1164, 0.0
  %v1176 = vsel %vm103, %v1165, 0.0
  %1177 = vadd.xlane.f32.xlu0 %v1168
  %v1178 = vpop.xlane.xlu0 %1177
  %1179 = vadd.xlane.f32.xlu0 %v1169
  %v1180 = vpop.xlane.xlu0 %1179
  %1181 = vadd.xlane.f32.xlu0 %v1170
  %v1182 = vpop.xlane.xlu0 %1181
  %1183 = vadd.xlane.f32.xlu0 %v1171
  %v1184 = vpop.xlane.xlu0 %1183
  %1185 = vadd.xlane.f32.xlu0 %v1172
  %v1186 = vpop.xlane.xlu0 %1185
  %1187 = vadd.xlane.f32.xlu0 %v1173
  %v1188 = vpop.xlane.xlu0 %1187
  %1189 = vadd.xlane.f32.xlu0 %v1174
  %v1190 = vpop.xlane.xlu0 %1189
  %1191 = vadd.xlane.f32.xlu0 %v1175
  %v1192 = vpop.xlane.xlu0 %1191
  %1193 = vadd.xlane.f32.xlu0 %v1176
  %v1194 = vpop.xlane.xlu0 %1193
  %v1195 = vmul.f32 %v1178, 0.01
  %v1196 = vmul.f32 %v1180, 0.01
  %v1197 = vmul.f32 %v1182, 0.01
  %v1198 = vmul.f32 %v1184, 0.01
  %v1199 = vmul.f32 %v1186, 0.01
  %v1200 = vmul.f32 %v1188, 0.01
  %v1201 = vmul.f32 %v1190, 0.01
  %v1202 = vmul.f32 %v1192, 0.01
  %v1203 = vmul.f32 %v1194, 0.01
  %v1204 = vsub.f32 %v1157, %v1195
  %v1205 = vsub.f32 %v1158, %v1196
  %v1206 = vsub.f32 %v1159, %v1197
  %v1207 = vsub.f32 %v1160, %v1198
  %v1208 = vsub.f32 %v1161, %v1199
  %v1209 = vsub.f32 %v1162, %v1200
  %v1210 = vsub.f32 %v1163, %v1201
  %v1211 = vsub.f32 %v1164, %v1202
  %v1212 = vsub.f32 %v1165, %v1203
  %v1213 = vsel %vm103, %v1204, 0.0
  %v1214 = vsel %vm103, %v1205, 0.0
  %v1215 = vsel %vm103, %v1206, 0.0
  %v1216 = vsel %vm103, %v1207, 0.0
  %v1217 = vsel %vm103, %v1208, 0.0
  %v1218 = vsel %vm103, %v1209, 0.0
  %v1219 = vsel %vm103, %v1210, 0.0
  %v1220 = vsel %vm103, %v1211, 0.0
  %v1221 = vsel %vm103, %v1212, 0.0
  %v1222 = vmul.f32 %v1213, %v1213
  %v1223 = vmul.f32 %v1214, %v1214
  %v1224 = vmul.f32 %v1215, %v1215
  %v1225 = vmul.f32 %v1216, %v1216
  %v1226 = vmul.f32 %v1217, %v1217
  %v1227 = vmul.f32 %v1218, %v1218
  %v1228 = vmul.f32 %v1219, %v1219
  %v1229 = vmul.f32 %v1220, %v1220
  %v1230 = vmul.f32 %v1221, %v1221
  %1231 = vadd.xlane.f32.xlu0 %v1222
  %v1232 = vpop.xlane.xlu0 %1231
  %1233 = vadd.xlane.f32.xlu0 %v1223
  %v1234 = vpop.xlane.xlu0 %1233
  %1235 = vadd.xlane.f32.xlu0 %v1224
  %v1236 = vpop.xlane.xlu0 %1235
  %1237 = vadd.xlane.f32.xlu0 %v1225
  %v1238 = vpop.xlane.xlu0 %1237
  %1239 = vadd.xlane.f32.xlu0 %v1226
  %v1240 = vpop.xlane.xlu0 %1239
  %1241 = vadd.xlane.f32.xlu0 %v1227
  %v1242 = vpop.xlane.xlu0 %1241
  %1243 = vadd.xlane.f32.xlu0 %v1228
  %v1244 = vpop.xlane.xlu0 %1243
  %1245 = vadd.xlane.f32.xlu0 %v1229
  %v1246 = vpop.xlane.xlu0 %1245
  %1247 = vadd.xlane.f32.xlu0 %v1230
  %v1248 = vpop.xlane.xlu0 %1247
  %v1249 = vmul.f32 %v1232, 0.01
  %v1250 = vmul.f32 %v1234, 0.01
  %v1251 = vmul.f32 %v1236, 0.01
  %v1252 = vmul.f32 %v1238, 0.01
  %v1253 = vmul.f32 %v1240, 0.01
  %v1254 = vmul.f32 %v1242, 0.01
  %v1255 = vmul.f32 %v1244, 0.01
  %v1256 = vmul.f32 %v1246, 0.01
  %v1257 = vmul.f32 %v1248, 0.01
  %v1259 = vlaneseq
  %v1260 = vshrl.u32 %v1259, 7
  %v1261 = vsub.s32 0, %v1260
  %v1262 = vrot.slane %v1166, %v1261
  %v1264 = vmul.f32 %v1262, %v1204
  %v1265 = vmul.f32 %v1262, %v1205
  %v1266 = vmul.f32 %v1262, %v1206
  %v1267 = vmul.f32 %v1262, %v1207
  %v1268 = vmul.f32 %v1262, %v1208
  %v1269 = vmul.f32 %v1262, %v1209
  %v1270 = vmul.f32 %v1262, %v1210
  %v1271 = vmul.f32 %v1262, %v1211
  %v1272 = vmul.f32 %v1262, %v1212
  %v1273 = vadd.f32 %v1249, 1e-06
  %v1274 = vadd.f32 %v1250, 1e-06
  %v1275 = vadd.f32 %v1251, 1e-06
  %v1276 = vadd.f32 %v1252, 1e-06
  %v1277 = vadd.f32 %v1253, 1e-06
  %v1278 = vadd.f32 %v1254, 1e-06
  %v1279 = vadd.f32 %v1255, 1e-06
  %v1280 = vadd.f32 %v1256, 1e-06
  %v1281 = vadd.f32 %v1257, 1e-06
  %v1282 = vrsqrt.pop %v1273
  %v1283 = vrsqrt.pop %v1274
  %v1284 = vrsqrt.pop %v1275
  %v1285 = vrsqrt.pop %v1276
  %v1286 = vrsqrt.pop %v1277
  %v1287 = vrsqrt.pop %v1278
  %v1288 = vrsqrt.pop %v1279
  %v1289 = vrsqrt.pop %v1280
  %v1290 = vrsqrt.pop %v1281
  %v1291 = vmul.f32 %v1264, %v1282
  %v1292 = vmul.f32 %v1265, %v1283
  %v1293 = vmul.f32 %v1266, %v1284
  %v1294 = vmul.f32 %v1267, %v1285
  %v1295 = vmul.f32 %v1268, %v1286
  %v1296 = vmul.f32 %v1269, %v1287
  %v1297 = vmul.f32 %v1270, %v1288
  %v1298 = vmul.f32 %v1271, %v1289
  %v1299 = vmul.f32 %v1272, %v1290
  %v1301 = vlaneseq
  %v1302 = vshrl.u32 %v1301, 7
  %v1303 = vsub.s32 0, %v1302
  %v1304 = vrot.slane %v1167, %v1303
  %v1306 = vadd.f32 %v1291, %v1304
  %v1307 = vadd.f32 %v1292, %v1304
  %v1308 = vadd.f32 %v1293, %v1304
  %v1309 = vadd.f32 %v1294, %v1304
  %v1310 = vadd.f32 %v1295, %v1304
  %v1311 = vadd.f32 %v1296, %v1304
  %v1312 = vadd.f32 %v1297, %v1304
  %v1313 = vadd.f32 %v1298, %v1304
  %v1314 = vadd.f32 %v1299, %v1304
  %v1315 = vld [vmem:[%s15] sm:$0xff]
  %v1316 = vld [vmem:[%s15 + $0x8] sm:$0xff]
  %v1317 = vld [vmem:[%s15 + $0x10] sm:$0xff]
  %v1318 = vld [vmem:[%s15 + $0x18] sm:$0xff]
  %v1319 = vld [vmem:[%s15 + $0x20] sm:$0xff]
  %v1320 = vld [vmem:[%s15 + $0x28] sm:$0xff]
  %v1321 = vld [vmem:[%s15 + $0x30] sm:$0xff]
  %v1322 = vld [vmem:[%s15 + $0x38] sm:$0xff]
  %v1323 = vld [vmem:[%s15 + $0x40] sm:$0xff]
  %v1324 = vld [vmem:[%s15 + $0x48] sm:$0xff]
  %v1325 = vld [vmem:[%s15 + $0x50] sm:$0xff]
  %v1326 = vld [vmem:[%s15 + $0x58] sm:$0xff]
  %v1327 = vld [vmem:[%s15 + $0x60] sm:$0xff]
  %v1328 = vld [vmem:[%s15 + $0x68] sm:$0xff]
  %v1329 = vld [vmem:[%s15 + $0x70] sm:$0xff]
  %v1330 = vld [vmem:[%s15 + $0x78] sm:$0xff]
  %v1331 = vld [vmem:[%s15 + $0x80] sm:$0xff]
  %v1332 = vld [vmem:[%s15 + $0x88] sm:$0xff]
  %v1333 = vld [vmem:[%s15 + $0x90] sm:$0xff]
  %v1334 = vld [vmem:[%s15 + $0x98] sm:$0xff]
  %v1335 = vld [vmem:[%s15 + $0xa0] sm:$0xff]
  %v1336 = vld [vmem:[%s15 + $0xa8] sm:$0xff]
  %v1337 = vld [vmem:[%s15 + $0xb0] sm:$0xff]
  %v1338 = vld [vmem:[%s15 + $0xb8] sm:$0xff]
  %v1339 = vld [vmem:[%s15 + $0xc0] sm:$0xff]
  %v1340 = vld [vmem:[%s15 + $0xc8] sm:$0xff]
  %v1341 = vld [vmem:[%s15 + $0xd0] sm:$0xff]
  %v1342 = vld [vmem:[%s15 + $0xd8] sm:$0xff]
  %v1343 = vld [vmem:[%s15 + $0xe0] sm:$0xff]
  %v1344 = vld [vmem:[%s15 + $0xe8] sm:$0xff]
  %v1345 = vld [vmem:[%s15 + $0xf0] sm:$0xff]
  %v1346 = vld [vmem:[%s15 + $0xf8] sm:$0xff]
  %v1347 = vld [vmem:[%s15 + $0x100] sm:$0xff]
  %v1348 = vld [vmem:[%s15 + $0x108] sm:$0xff]
  %v1349 = vld [vmem:[%s15 + $0x110] sm:$0xff]
  %v1350 = vld [vmem:[%s15 + $0x118] sm:$0xff]
  %v1351 = vld [vmem:[%s15 + $0x120] sm:$0xff]
  %v1352 = vld [vmem:[%s15 + $0x128] sm:$0xff]
  %v1353 = vld [vmem:[%s15 + $0x130] sm:$0xff]
  %v1354 = vld [vmem:[%s15 + $0x138] sm:$0xff]
  %v1355 = vld [vmem:[%s15 + $0x140] sm:$0xff]
  %v1356 = vld [vmem:[%s15 + $0x148] sm:$0xff]
  %v1357 = vld [vmem:[%s15 + $0x150] sm:$0xff]
  %v1358 = vld [vmem:[%s15 + $0x158] sm:$0xff]
  %v1359 = vld [vmem:[%s15 + $0x160] sm:$0xff]
  %v1360 = vld [vmem:[%s15 + $0x168] sm:$0xff]
  %v1361 = vld [vmem:[%s15 + $0x170] sm:$0xff]
  %v1362 = vld [vmem:[%s15 + $0x178] sm:$0xff]
  %v1363 = vld [vmem:[%s15 + $0x180] sm:$0xff]
  %v1364 = vld [vmem:[%s15 + $0x188] sm:$0xff]
  %v1365 = vld [vmem:[%s15 + $0x190] sm:$0xff]
  %v1366 = vld [vmem:[%s15 + $0x198] sm:$0xff]
  %v1367 = vld [vmem:[%s15 + $0x1a0] sm:$0xff]
  %v1368 = vld [vmem:[%s15 + $0x1a8] sm:$0xff]
  %v1369 = vld [vmem:[%s15 + $0x1b0] sm:$0xff]
  %v1370 = vld [vmem:[%s15 + $0x1b8] sm:$0xff]
  %v1371 = vld [vmem:[%s15 + $0x1c0] sm:$0xff]
  %v1372 = vld [vmem:[%s15 + $0x1c8] sm:$0xff]
  %v1373 = vld [vmem:[%s15 + $0x1d0] sm:$0xff]
  %v1374 = vld [vmem:[%s15 + $0x1d8] sm:$0xff]
  %v1375 = vld [vmem:[%s15 + $0x1e0] sm:$0xff]
  %v1376 = vld [vmem:[%s15 + $0x1e8] sm:$0xff]
  %v1377 = vld [vmem:[%s15 + $0x1f0] sm:$0xff]
  %v1378 = vld [vmem:[%s15 + $0x1f8] sm:$0xff]
  %v1379 = vld [vmem:[%s16] sm:$0xf]
  %v1381 = vlaneseq
  %v1382 = vshrl.u32 %v1381, 7
  %v1383 = vsub.s32 0, %v1382
  %v1384 = vrot.slane %v1379, %v1383
  %v1385 = vlaneseq
  %v1386 = vshrl.u32 %v1385, 7
  %v1387 = vsub.s32 1, %v1386
  %v1388 = vrot.slane %v1379, %v1387
  %v1389 = vlaneseq
  %v1390 = vshrl.u32 %v1389, 7
  %v1391 = vsub.s32 2, %v1390
  %v1392 = vrot.slane %v1379, %v1391
  %v1393 = vlaneseq
  %v1394 = vshrl.u32 %v1393, 7
  %v1395 = vsub.s32 3, %v1394
  %v1396 = vrot.slane %v1379, %v1395
  %1401 = vmatprep.subr.mxu0 %v1316
  %1402 = vmatpush1.msra.mxu0 %v1315
  %1403 = vmatprep.subr.mxu0 %v1320
  %1404 = vmatpush1.msra.mxu0 %v1319
  %1405 = vmatprep.subr.mxu0 %v1324
  %1406 = vmatpush1.msra.mxu0 %v1323
  %1407 = vmatprep.subr.mxu0 %v1328
  %1408 = vmatpush1.msra.mxu0 %v1327
  %1409 = vmatprep.subr.mxu0 %v1332
  %1410 = vmatpush1.msra.mxu0 %v1331
  %1411 = vmatprep.subr.mxu0 %v1336
  %1412 = vmatpush1.msra.mxu0 %v1335
  %1413 = vmatprep.subr.mxu0 %v1340
  %1414 = vmatpush1.msra.mxu0 %v1339
  %1415 = vmatprep.subr.mxu0 %v1344
  %1416 = vmatpush1.msra.mxu0 %v1343
  %1417 = vmatprep.subr.mxu0 %v1348
  %1418 = vmatpush1.msra.mxu0 %v1347
  %1419 = vmatprep.subr.mxu0 %v1352
  %1420 = vmatpush1.msra.mxu0 %v1351
  %1421 = vmatprep.subr.mxu0 %v1356
  %1422 = vmatpush1.msra.mxu0 %v1355
  %1423 = vmatprep.subr.mxu0 %v1360
  %1424 = vmatpush1.msra.mxu0 %v1359
  %1425 = vmatprep.subr.mxu0 %v1364
  %1426 = vmatpush1.msra.mxu0 %v1363
  %1427 = vmatprep.subr.mxu0 %v1368
  %1428 = vmatpush1.msra.mxu0 %v1367
  %1429 = vmatprep.subr.mxu0 %v1372
  %1430 = vmatpush1.msra.mxu0 %v1371
  %1431 = vmatprep.subr.mxu0 %v1376
  %1432 = vmatpush1.msra.mxu0 %v1375
  %1433 = vmatprep.subr.mxu0 0.0
  %1434 = vmatpush1.msra.mxu0 0.0
  %1435 = vmatprep.subr.mxu0 0.0
  %1436 = vmatpush1.msra.mxu0 0.0
  %1437 = vmatprep.subr.mxu0 0.0
  %1438 = vmatpush1.msra.mxu0 0.0
  %1439 = vmatprep.subr.mxu0 0.0
  %1440 = vmatpush1.msra.mxu0 0.0
  %1441 = vmatprep.subr.mxu0 0.0
  %1442 = vmatpush1.msra.mxu0 0.0
  %1443 = vmatprep.subr.mxu0 0.0
  %1444 = vmatpush1.msra.mxu0 0.0
  %1445 = vmatprep.subr.mxu0 0.0
  %1446 = vmatpush1.msra.mxu0 0.0
  %1447 = vmatprep.subr.mxu0 0.0
  %1448 = vmatpush1.msra.mxu0 0.0
  %1449 = vmatprep.subr.mxu0 0.0
  %1450 = vmatpush1.msra.mxu0 0.0
  %1451 = vmatprep.subr.mxu0 0.0
  %1452 = vmatpush1.msra.mxu0 0.0
  %1453 = vmatprep.subr.mxu0 0.0
  %1454 = vmatpush1.msra.mxu0 0.0
  %1455 = vmatprep.subr.mxu0 0.0
  %1456 = vmatpush1.msra.mxu0 0.0
  %1457 = vmatprep.subr.mxu0 0.0
  %1458 = vmatpush1.msra.mxu0 0.0
  %1459 = vmatprep.subr.mxu0 0.0
  %1460 = vmatpush1.msra.mxu0 0.0
  %1461 = vmatprep.subr.mxu0 0.0
  %1462 = vmatpush1.msra.mxu0 0.0
  %1463 = vmatprep.subr.mxu0 0.0
  %1464 = vmatpush1.msra.mxu0 0.0
  %1465 = vmatprep.mubr.f32.mxu0 0.0
  %1466 = vmatmul.mubr.f32.gmra.mrb[0].mxu0 %v1306
  %v1467 = vpop.f32.mrb[0].mxu0
  %v1468 = vadd.f32 %v1384, %v1467
  %v1469 = vpop.f32.mrb[0].mxu0
  %v1470 = vadd.f32 %v1388, %v1469
  %1471 = vmatprep.mubr.f32.mxu0 0.0
  %1472 = vmatmul.mubr.f32.gmra.mrb[0].mxu0 %v1307
  %v1473 = vpop.f32.mrb[0].mxu0
  %v1474 = vadd.f32 %v1384, %v1473
  %v1475 = vpop.f32.mrb[0].mxu0
  %v1476 = vadd.f32 %v1388, %v1475
  %1477 = vmatprep.mubr.f32.mxu0 0.0
  %1478 = vmatmul.mubr.f32.gmra.mrb[0].mxu0 %v1308
  %v1479 = vpop.f32.mrb[0].mxu0
  %v1480 = vadd.f32 %v1384, %v1479
  %v1481 = vpop.f32.mrb[0].mxu0
  %v1482 = vadd.f32 %v1388, %v1481
  %1483 = vmatprep.mubr.f32.mxu0 0.0
  %1484 = vmatmul.mubr.f32.gmra.mrb[0].mxu0 %v1309
  %v1485 = vpop.f32.mrb[0].mxu0
  %v1486 = vadd.f32 %v1384, %v1485
  %v1487 = vpop.f32.mrb[0].mxu0
  %v1488 = vadd.f32 %v1388, %v1487
  %1489 = vmatprep.mubr.f32.mxu0 0.0
  %1490 = vmatmul.mubr.f32.gmra.mrb[0].mxu0 %v1310
  %v1491 = vpop.f32.mrb[0].mxu0
  %v1492 = vadd.f32 %v1384, %v1491
  %v1493 = vpop.f32.mrb[0].mxu0
  %v1494 = vadd.f32 %v1388, %v1493
  %1495 = vmatprep.mubr.f32.mxu0 0.0
  %1496 = vmatmul.mubr.f32.gmra.mrb[0].mxu0 %v1311
  %v1497 = vpop.f32.mrb[0].mxu0
  %v1498 = vadd.f32 %v1384, %v1497
  %v1499 = vpop.f32.mrb[0].mxu0
  %v1500 = vadd.f32 %v1388, %v1499
  %1501 = vmatprep.mubr.f32.mxu0 0.0
  %1502 = vmatmul.mubr.f32.gmra.mrb[0].mxu0 %v1312
  %v1503 = vpop.f32.mrb[0].mxu0
  %v1504 = vadd.f32 %v1384, %v1503
  %v1505 = vpop.f32.mrb[0].mxu0
  %v1506 = vadd.f32 %v1388, %v1505
  %1507 = vmatprep.mubr.f32.mxu0 0.0
  %1508 = vmatmul.mubr.f32.gmra.mrb[0].mxu0 %v1313
  %v1509 = vpop.f32.mrb[0].mxu0
  %v1510 = vadd.f32 %v1384, %v1509
  %v1511 = vpop.f32.mrb[0].mxu0
  %v1512 = vadd.f32 %v1388, %v1511
  %1513 = vmatprep.mubr.f32.mxu0 0.0
  %1514 = vmatmul.mubr.f32.gmra.mrb[0].mxu0 %v1314
  %v1515 = vpop.f32.mrb[0].mxu0
  %v1516 = vadd.f32 %v1384, %v1515
  %v1517 = vpop.f32.mrb[0].mxu0
  %v1518 = vadd.f32 %v1388, %v1517
  %1519 = vdwg.mxu0
  %1520 = vmatprep.subr.mxu0 %v1318
  %1521 = vmatpush1.msra.mxu0 %v1317
  %1522 = vmatprep.subr.mxu0 %v1322
  %1523 = vmatpush1.msra.mxu0 %v1321
  %1524 = vmatprep.subr.mxu0 %v1326
  %1525 = vmatpush1.msra.mxu0 %v1325
  %1526 = vmatprep.subr.mxu0 %v1330
  %1527 = vmatpush1.msra.mxu0 %v1329
  %1528 = vmatprep.subr.mxu0 %v1334
  %1529 = vmatpush1.msra.mxu0 %v1333
  %1530 = vmatprep.subr.mxu0 %v1338
  %1531 = vmatpush1.msra.mxu0 %v1337
  %1532 = vmatprep.subr.mxu0 %v1342
  %1533 = vmatpush1.msra.mxu0 %v1341
  %1534 = vmatprep.subr.mxu0 %v1346
  %1535 = vmatpush1.msra.mxu0 %v1345
  %1536 = vmatprep.subr.mxu0 %v1350
  %1537 = vmatpush1.msra.mxu0 %v1349
  %1538 = vmatprep.subr.mxu0 %v1354
  %1539 = vmatpush1.msra.mxu0 %v1353
  %1540 = vmatprep.subr.mxu0 %v1358
  %1541 = vmatpush1.msra.mxu0 %v1357
  %1542 = vmatprep.subr.mxu0 %v1362
  %1543 = vmatpush1.msra.mxu0 %v1361
  %1544 = vmatprep.subr.mxu0 %v1366
  %1545 = vmatpush1.msra.mxu0 %v1365
  %1546 = vmatprep.subr.mxu0 %v1370
  %1547 = vmatpush1.msra.mxu0 %v1369
  %1548 = vmatprep.subr.mxu0 %v1374
  %1549 = vmatpush1.msra.mxu0 %v1373
  %1550 = vmatprep.subr.mxu0 %v1378
  %1551 = vmatpush1.msra.mxu0 %v1377
  %1552 = vmatprep.subr.mxu0 0.0
  %1553 = vmatpush1.msra.mxu0 0.0
  %1554 = vmatprep.subr.mxu0 0.0
  %1555 = vmatpush1.msra.mxu0 0.0
  %1556 = vmatprep.subr.mxu0 0.0
  %1557 = vmatpush1.msra.mxu0 0.0
  %1558 = vmatprep.subr.mxu0 0.0
  %1559 = vmatpush1.msra.mxu0 0.0
  %1560 = vmatprep.subr.mxu0 0.0
  %1561 = vmatpush1.msra.mxu0 0.0
  %1562 = vmatprep.subr.mxu0 0.0
  %1563 = vmatpush1.msra.mxu0 0.0
  %1564 = vmatprep.subr.mxu0 0.0
  %1565 = vmatpush1.msra.mxu0 0.0
  %1566 = vmatprep.subr.mxu0 0.0
  %1567 = vmatpush1.msra.mxu0 0.0
  %1568 = vmatprep.subr.mxu0 0.0
  %1569 = vmatpush1.msra.mxu0 0.0
  %1570 = vmatprep.subr.mxu0 0.0
  %1571 = vmatpush1.msra.mxu0 0.0
  %1572 = vmatprep.subr.mxu0 0.0
  %1573 = vmatpush1.msra.mxu0 0.0
  %1574 = vmatprep.subr.mxu0 0.0
  %1575 = vmatpush1.msra.mxu0 0.0
  %1576 = vmatprep.subr.mxu0 0.0
  %1577 = vmatpush1.msra.mxu0 0.0
  %1578 = vmatprep.subr.mxu0 0.0
  %1579 = vmatpush1.msra.mxu0 0.0
  %1580 = vmatprep.subr.mxu0 0.0
  %1581 = vmatpush1.msra.mxu0 0.0
  %1582 = vmatprep.subr.mxu0 0.0
  %1583 = vmatpush1.msra.mxu0 0.0
  %1584 = vmatprep.mubr.f32.mxu0 0.0
  %1585 = vmatmul.mubr.f32.gmra.mrb[0].mxu0 %v1306
  %v1586 = vpop.f32.mrb[0].mxu0
  %v1587 = vadd.f32 %v1392, %v1586
  %v1588 = vpop.f32.mrb[0].mxu0
  %v1589 = vadd.f32 %v1396, %v1588
  %1590 = vmatprep.mubr.f32.mxu0 0.0
  %1591 = vmatmul.mubr.f32.gmra.mrb[0].mxu0 %v1307
  %v1592 = vpop.f32.mrb[0].mxu0
  %v1593 = vadd.f32 %v1392, %v1592
  %v1594 = vpop.f32.mrb[0].mxu0
  %v1595 = vadd.f32 %v1396, %v1594
  %1596 = vmatprep.mubr.f32.mxu0 0.0
  %1597 = vmatmul.mubr.f32.gmra.mrb[0].mxu0 %v1308
  %v1598 = vpop.f32.mrb[0].mxu0
  %v1599 = vadd.f32 %v1392, %v1598
  %v1600 = vpop.f32.mrb[0].mxu0
  %v1601 = vadd.f32 %v1396, %v1600
  %1602 = vmatprep.mubr.f32.mxu0 0.0
  %1603 = vmatmul.mubr.f32.gmra.mrb[0].mxu0 %v1309
  %v1604 = vpop.f32.mrb[0].mxu0
  %v1605 = vadd.f32 %v1392, %v1604
  %v1606 = vpop.f32.mrb[0].mxu0
  %v1607 = vadd.f32 %v1396, %v1606
  %1608 = vmatprep.mubr.f32.mxu0 0.0
  %1609 = vmatmul.mubr.f32.gmra.mrb[0].mxu0 %v1310
  %v1610 = vpop.f32.mrb[0].mxu0
  %v1611 = vadd.f32 %v1392, %v1610
  %v1612 = vpop.f32.mrb[0].mxu0
  %v1613 = vadd.f32 %v1396, %v1612
  %1614 = vmatprep.mubr.f32.mxu0 0.0
  %1615 = vmatmul.mubr.f32.gmra.mrb[0].mxu0 %v1311
  %v1616 = vpop.f32.mrb[0].mxu0
  %v1617 = vadd.f32 %v1392, %v1616
  %v1618 = vpop.f32.mrb[0].mxu0
  %v1619 = vadd.f32 %v1396, %v1618
  %1620 = vmatprep.mubr.f32.mxu0 0.0
  %1621 = vmatmul.mubr.f32.gmra.mrb[0].mxu0 %v1312
  %v1622 = vpop.f32.mrb[0].mxu0
  %v1623 = vadd.f32 %v1392, %v1622
  %v1624 = vpop.f32.mrb[0].mxu0
  %v1625 = vadd.f32 %v1396, %v1624
  %1626 = vmatprep.mubr.f32.mxu0 0.0
  %1627 = vmatmul.mubr.f32.gmra.mrb[0].mxu0 %v1313
  %v1628 = vpop.f32.mrb[0].mxu0
  %v1629 = vadd.f32 %v1392, %v1628
  %v1630 = vpop.f32.mrb[0].mxu0
  %v1631 = vadd.f32 %v1396, %v1630
  %1632 = vmatprep.mubr.f32.mxu0 0.0
  %1633 = vmatmul.mubr.f32.gmra.mrb[0].mxu0 %v1314
  %v1634 = vpop.f32.mrb[0].mxu0
  %v1635 = vadd.f32 %v1392, %v1634
  %v1636 = vpop.f32.mrb[0].mxu0
  %v1637 = vadd.f32 %v1396, %v1636
  %1638 = vdwg.mxu0
  %v1639 = vmul.f32 %v1468, 0.5
  %v1640 = vmul.f32 %v1470, 0.5
  %v1641 = vmul.f32 %v1587, 0.5
  %v1642 = vmul.f32 %v1589, 0.5
  %v1643 = vmul.f32 %v1474, 0.5
  %v1644 = vmul.f32 %v1476, 0.5
  %v1645 = vmul.f32 %v1593, 0.5
  %v1646 = vmul.f32 %v1595, 0.5
  %v1647 = vmul.f32 %v1480, 0.5
  %v1648 = vmul.f32 %v1482, 0.5
  %v1649 = vmul.f32 %v1599, 0.5
  %v1650 = vmul.f32 %v1601, 0.5
  %v1651 = vmul.f32 %v1486, 0.5
  %v1652 = vmul.f32 %v1488, 0.5
  %v1653 = vmul.f32 %v1605, 0.5
  %v1654 = vmul.f32 %v1607, 0.5
  %v1655 = vmul.f32 %v1492, 0.5
  %v1656 = vmul.f32 %v1494, 0.5
  %v1657 = vmul.f32 %v1611, 0.5
  %v1658 = vmul.f32 %v1613, 0.5
  %v1659 = vmul.f32 %v1498, 0.5
  %v1660 = vmul.f32 %v1500, 0.5
  %v1661 = vmul.f32 %v1617, 0.5
  %v1662 = vmul.f32 %v1619, 0.5
  %v1663 = vmul.f32 %v1504, 0.5
  %v1664 = vmul.f32 %v1506, 0.5
  %v1665 = vmul.f32 %v1623, 0.5
  %v1666 = vmul.f32 %v1625, 0.5
  %v1667 = vmul.f32 %v1510, 0.5
  %v1668 = vmul.f32 %v1512, 0.5
  %v1669 = vmul.f32 %v1629, 0.5
  %v1670 = vmul.f32 %v1631, 0.5
  %v1671 = vmul.f32 %v1516, 0.5
  %v1672 = vmul.f32 %v1518, 0.5
  %v1673 = vmul.f32 %v1635, 0.5
  %v1674 = vmul.f32 %v1637, 0.5
  %v1675 = vmul.f32 %v1468, 0.044715
  %v1676 = vmul.f32 %v1470, 0.044715
  %v1677 = vmul.f32 %v1587, 0.044715
  %v1678 = vmul.f32 %v1589, 0.044715
  %v1679 = vmul.f32 %v1474, 0.044715
  %v1680 = vmul.f32 %v1476, 0.044715
  %v1681 = vmul.f32 %v1593, 0.044715
  %v1682 = vmul.f32 %v1595, 0.044715
  %v1683 = vmul.f32 %v1480, 0.044715
  %v1684 = vmul.f32 %v1482, 0.044715
  %v1685 = vmul.f32 %v1599, 0.044715
  %v1686 = vmul.f32 %v1601, 0.044715
  %v1687 = vmul.f32 %v1486, 0.044715
  %v1688 = vmul.f32 %v1488, 0.044715
  %v1689 = vmul.f32 %v1605, 0.044715
  %v1690 = vmul.f32 %v1607, 0.044715
  %v1691 = vmul.f32 %v1492, 0.044715
  %v1692 = vmul.f32 %v1494, 0.044715
  %v1693 = vmul.f32 %v1611, 0.044715
  %v1694 = vmul.f32 %v1613, 0.044715
  %v1695 = vmul.f32 %v1498, 0.044715
  %v1696 = vmul.f32 %v1500, 0.044715
  %v1697 = vmul.f32 %v1617, 0.044715
  %v1698 = vmul.f32 %v1619, 0.044715
  %v1699 = vmul.f32 %v1504, 0.044715
  %v1700 = vmul.f32 %v1506, 0.044715
  %v1701 = vmul.f32 %v1623, 0.044715
  %v1702 = vmul.f32 %v1625, 0.044715
  %v1703 = vmul.f32 %v1510, 0.044715
  %v1704 = vmul.f32 %v1512, 0.044715
  %v1705 = vmul.f32 %v1629, 0.044715
  %v1706 = vmul.f32 %v1631, 0.044715
  %v1707 = vmul.f32 %v1516, 0.044715
  %v1708 = vmul.f32 %v1518, 0.044715
  %v1709 = vmul.f32 %v1635, 0.044715
  %v1710 = vmul.f32 %v1637, 0.044715
  %v1711 = vmul.f32 %v1675, %v1468
  %v1712 = vmul.f32 %v1676, %v1470
  %v1713 = vmul.f32 %v1677, %v1587
  %v1714 = vmul.f32 %v1678, %v1589
  %v1715 = vmul.f32 %v1679, %v1474
  %v1716 = vmul.f32 %v1680, %v1476
  %v1717 = vmul.f32 %v1681, %v1593
  %v1718 = vmul.f32 %v1682, %v1595
  %v1719 = vmul.f32 %v1683, %v1480
  %v1720 = vmul.f32 %v1684, %v1482
  %v1721 = vmul.f32 %v1685, %v1599
  %v1722 = vmul.f32 %v1686, %v1601
  %v1723 = vmul.f32 %v1687, %v1486
  %v1724 = vmul.f32 %v1688, %v1488
  %v1725 = vmul.f32 %v1689, %v1605
  %v1726 = vmul.f32 %v1690, %v1607
  %v1727 = vmul.f32 %v1691, %v1492
  %v1728 = vmul.f32 %v1692, %v1494
  %v1729 = vmul.f32 %v1693, %v1611
  %v1730 = vmul.f32 %v1694, %v1613
  %v1731 = vmul.f32 %v1695, %v1498
  %v1732 = vmul.f32 %v1696, %v1500
  %v1733 = vmul.f32 %v1697, %v1617
  %v1734 = vmul.f32 %v1698, %v1619
  %v1735 = vmul.f32 %v1699, %v1504
  %v1736 = vmul.f32 %v1700, %v1506
  %v1737 = vmul.f32 %v1701, %v1623
  %v1738 = vmul.f32 %v1702, %v1625
  %v1739 = vmul.f32 %v1703, %v1510
  %v1740 = vmul.f32 %v1704, %v1512
  %v1741 = vmul.f32 %v1705, %v1629
  %v1742 = vmul.f32 %v1706, %v1631
  %v1743 = vmul.f32 %v1707, %v1516
  %v1744 = vmul.f32 %v1708, %v1518
  %v1745 = vmul.f32 %v1709, %v1635
  %v1746 = vmul.f32 %v1710, %v1637
  %v1747 = vmul.f32 %v1711, %v1468
  %v1748 = vmul.f32 %v1712, %v1470
  %v1749 = vmul.f32 %v1713, %v1587
  %v1750 = vmul.f32 %v1714, %v1589
  %v1751 = vmul.f32 %v1715, %v1474
  %v1752 = vmul.f32 %v1716, %v1476
  %v1753 = vmul.f32 %v1717, %v1593
  %v1754 = vmul.f32 %v1718, %v1595
  %v1755 = vmul.f32 %v1719, %v1480
  %v1756 = vmul.f32 %v1720, %v1482
  %v1757 = vmul.f32 %v1721, %v1599
  %v1758 = vmul.f32 %v1722, %v1601
  %v1759 = vmul.f32 %v1723, %v1486
  %v1760 = vmul.f32 %v1724, %v1488
  %v1761 = vmul.f32 %v1725, %v1605
  %v1762 = vmul.f32 %v1726, %v1607
  %v1763 = vmul.f32 %v1727, %v1492
  %v1764 = vmul.f32 %v1728, %v1494
  %v1765 = vmul.f32 %v1729, %v1611
  %v1766 = vmul.f32 %v1730, %v1613
  %v1767 = vmul.f32 %v1731, %v1498
  %v1768 = vmul.f32 %v1732, %v1500
  %v1769 = vmul.f32 %v1733, %v1617
  %v1770 = vmul.f32 %v1734, %v1619
  %v1771 = vmul.f32 %v1735, %v1504
  %v1772 = vmul.f32 %v1736, %v1506
  %v1773 = vmul.f32 %v1737, %v1623
  %v1774 = vmul.f32 %v1738, %v1625
  %v1775 = vmul.f32 %v1739, %v1510
  %v1776 = vmul.f32 %v1740, %v1512
  %v1777 = vmul.f32 %v1741, %v1629
  %v1778 = vmul.f32 %v1742, %v1631
  %v1779 = vmul.f32 %v1743, %v1516
  %v1780 = vmul.f32 %v1744, %v1518
  %v1781 = vmul.f32 %v1745, %v1635
  %v1782 = vmul.f32 %v1746, %v1637
  %v1783 = vadd.f32 %v1468, %v1747
  %v1784 = vadd.f32 %v1470, %v1748
  %v1785 = vadd.f32 %v1587, %v1749
  %v1786 = vadd.f32 %v1589, %v1750
  %v1787 = vadd.f32 %v1474, %v1751
  %v1788 = vadd.f32 %v1476, %v1752
  %v1789 = vadd.f32 %v1593, %v1753
  %v1790 = vadd.f32 %v1595, %v1754
  %v1791 = vadd.f32 %v1480, %v1755
  %v1792 = vadd.f32 %v1482, %v1756
  %v1793 = vadd.f32 %v1599, %v1757
  %v1794 = vadd.f32 %v1601, %v1758
  %v1795 = vadd.f32 %v1486, %v1759
  %v1796 = vadd.f32 %v1488, %v1760
  %v1797 = vadd.f32 %v1605, %v1761
  %v1798 = vadd.f32 %v1607, %v1762
  %v1799 = vadd.f32 %v1492, %v1763
  %v1800 = vadd.f32 %v1494, %v1764
  %v1801 = vadd.f32 %v1611, %v1765
  %v1802 = vadd.f32 %v1613, %v1766
  %v1803 = vadd.f32 %v1498, %v1767
  %v1804 = vadd.f32 %v1500, %v1768
  %v1805 = vadd.f32 %v1617, %v1769
  %v1806 = vadd.f32 %v1619, %v1770
  %v1807 = vadd.f32 %v1504, %v1771
  %v1808 = vadd.f32 %v1506, %v1772
  %v1809 = vadd.f32 %v1623, %v1773
  %v1810 = vadd.f32 %v1625, %v1774
  %v1811 = vadd.f32 %v1510, %v1775
  %v1812 = vadd.f32 %v1512, %v1776
  %v1813 = vadd.f32 %v1629, %v1777
  %v1814 = vadd.f32 %v1631, %v1778
  %v1815 = vadd.f32 %v1516, %v1779
  %v1816 = vadd.f32 %v1518, %v1780
  %v1817 = vadd.f32 %v1635, %v1781
  %v1818 = vadd.f32 %v1637, %v1782
  %v1819 = vmul.f32 %v1783, 0.7978846
  %v1820 = vmul.f32 %v1784, 0.7978846
  %v1821 = vmul.f32 %v1785, 0.7978846
  %v1822 = vmul.f32 %v1786, 0.7978846
  %v1823 = vmul.f32 %v1787, 0.7978846
  %v1824 = vmul.f32 %v1788, 0.7978846
  %v1825 = vmul.f32 %v1789, 0.7978846
  %v1826 = vmul.f32 %v1790, 0.7978846
  %v1827 = vmul.f32 %v1791, 0.7978846
  %v1828 = vmul.f32 %v1792, 0.7978846
  %v1829 = vmul.f32 %v1793, 0.7978846
  %v1830 = vmul.f32 %v1794, 0.7978846
  %v1831 = vmul.f32 %v1795, 0.7978846
  %v1832 = vmul.f32 %v1796, 0.7978846
  %v1833 = vmul.f32 %v1797, 0.7978846
  %v1834 = vmul.f32 %v1798, 0.7978846
  %v1835 = vmul.f32 %v1799, 0.7978846
  %v1836 = vmul.f32 %v1800, 0.7978846
  %v1837 = vmul.f32 %v1801, 0.7978846
  %v1838 = vmul.f32 %v1802, 0.7978846
  %v1839 = vmul.f32 %v1803, 0.7978846
  %v1840 = vmul.f32 %v1804, 0.7978846
  %v1841 = vmul.f32 %v1805, 0.7978846
  %v1842 = vmul.f32 %v1806, 0.7978846
  %v1843 = vmul.f32 %v1807, 0.7978846
  %v1844 = vmul.f32 %v1808, 0.7978846
  %v1845 = vmul.f32 %v1809, 0.7978846
  %v1846 = vmul.f32 %v1810, 0.7978846
  %v1847 = vmul.f32 %v1811, 0.7978846
  %v1848 = vmul.f32 %v1812, 0.7978846
  %v1849 = vmul.f32 %v1813, 0.7978846
  %v1850 = vmul.f32 %v1814, 0.7978846
  %v1851 = vmul.f32 %v1815, 0.7978846
  %v1852 = vmul.f32 %v1816, 0.7978846
  %v1853 = vmul.f32 %v1817, 0.7978846
  %v1854 = vmul.f32 %v1818, 0.7978846
  %v1855 = vtanh.pop %v1819
  %v1856 = vtanh.pop %v1820
  %v1857 = vtanh.pop %v1821
  %v1858 = vtanh.pop %v1822
  %v1859 = vtanh.pop %v1823
  %v1860 = vtanh.pop %v1824
  %v1861 = vtanh.pop %v1825
  %v1862 = vtanh.pop %v1826
  %v1863 = vtanh.pop %v1827
  %v1864 = vtanh.pop %v1828
  %v1865 = vtanh.pop %v1829
  %v1866 = vtanh.pop %v1830
  %v1867 = vtanh.pop %v1831
  %v1868 = vtanh.pop %v1832
  %v1869 = vtanh.pop %v1833
  %v1870 = vtanh.pop %v1834
  %v1871 = vtanh.pop %v1835
  %v1872 = vtanh.pop %v1836
  %v1873 = vtanh.pop %v1837
  %v1874 = vtanh.pop %v1838
  %v1875 = vtanh.pop %v1839
  %v1876 = vtanh.pop %v1840
  %v1877 = vtanh.pop %v1841
  %v1878 = vtanh.pop %v1842
  %v1879 = vtanh.pop %v1843
  %v1880 = vtanh.pop %v1844
  %v1881 = vtanh.pop %v1845
  %v1882 = vtanh.pop %v1846
  %v1883 = vtanh.pop %v1847
  %v1884 = vtanh.pop %v1848
  %v1885 = vtanh.pop %v1849
  %v1886 = vtanh.pop %v1850
  %v1887 = vtanh.pop %v1851
  %v1888 = vtanh.pop %v1852
  %v1889 = vtanh.pop %v1853
  %v1890 = vtanh.pop %v1854
  %v1891 = vadd.f32 %v1855, 1.0
  %v1892 = vadd.f32 %v1856, 1.0
  %v1893 = vadd.f32 %v1857, 1.0
  %v1894 = vadd.f32 %v1858, 1.0
  %v1895 = vadd.f32 %v1859, 1.0
  %v1896 = vadd.f32 %v1860, 1.0
  %v1897 = vadd.f32 %v1861, 1.0
  %v1898 = vadd.f32 %v1862, 1.0
  %v1899 = vadd.f32 %v1863, 1.0
  %v1900 = vadd.f32 %v1864, 1.0
  %v1901 = vadd.f32 %v1865, 1.0
  %v1902 = vadd.f32 %v1866, 1.0
  %v1903 = vadd.f32 %v1867, 1.0
  %v1904 = vadd.f32 %v1868, 1.0
  %v1905 = vadd.f32 %v1869, 1.0
  %v1906 = vadd.f32 %v1870, 1.0
  %v1907 = vadd.f32 %v1871, 1.0
  %v1908 = vadd.f32 %v1872, 1.0
  %v1909 = vadd.f32 %v1873, 1.0
  %v1910 = vadd.f32 %v1874, 1.0
  %v1911 = vadd.f32 %v1875, 1.0
  %v1912 = vadd.f32 %v1876, 1.0
  %v1913 = vadd.f32 %v1877, 1.0
  %v1914 = vadd.f32 %v1878, 1.0
  %v1915 = vadd.f32 %v1879, 1.0
  %v1916 = vadd.f32 %v1880, 1.0
  %v1917 = vadd.f32 %v1881, 1.0
  %v1918 = vadd.f32 %v1882, 1.0
  %v1919 = vadd.f32 %v1883, 1.0
  %v1920 = vadd.f32 %v1884, 1.0
  %v1921 = vadd.f32 %v1885, 1.0
  %v1922 = vadd.f32 %v1886, 1.0
  %v1923 = vadd.f32 %v1887, 1.0
  %v1924 = vadd.f32 %v1888, 1.0
  %v1925 = vadd.f32 %v1889, 1.0
  %v1926 = vadd.f32 %v1890, 1.0
  %v1927 = vmul.f32 %v1639, %v1891
  %v1928 = vmul.f32 %v1640, %v1892
  %v1929 = vmul.f32 %v1641, %v1893
  %v1930 = vmul.f32 %v1642, %v1894
  %v1931 = vmul.f32 %v1643, %v1895
  %v1932 = vmul.f32 %v1644, %v1896
  %v1933 = vmul.f32 %v1645, %v1897
  %v1934 = vmul.f32 %v1646, %v1898
  %v1935 = vmul.f32 %v1647, %v1899
  %v1936 = vmul.f32 %v1648, %v1900
  %v1937 = vmul.f32 %v1649, %v1901
  %v1938 = vmul.f32 %v1650, %v1902
  %v1939 = vmul.f32 %v1651, %v1903
  %v1940 = vmul.f32 %v1652, %v1904
  %v1941 = vmul.f32 %v1653, %v1905
  %v1942 = vmul.f32 %v1654, %v1906
  %v1943 = vmul.f32 %v1655, %v1907
  %v1944 = vmul.f32 %v1656, %v1908
  %v1945 = vmul.f32 %v1657, %v1909
  %v1946 = vmul.f32 %v1658, %v1910
  %v1947 = vmul.f32 %v1659, %v1911
  %v1948 = vmul.f32 %v1660, %v1912
  %v1949 = vmul.f32 %v1661, %v1913
  %v1950 = vmul.f32 %v1662, %v1914
  %v1951 = vmul.f32 %v1663, %v1915
  %v1952 = vmul.f32 %v1664, %v1916
  %v1953 = vmul.f32 %v1665, %v1917
  %v1954 = vmul.f32 %v1666, %v1918
  %v1955 = vmul.f32 %v1667, %v1919
  %v1956 = vmul.f32 %v1668, %v1920
  %v1957 = vmul.f32 %v1669, %v1921
  %v1958 = vmul.f32 %v1670, %v1922
  %v1959 = vmul.f32 %v1671, %v1923
  %v1960 = vmul.f32 %v1672, %v1924
  %v1961 = vmul.f32 %v1673, %v1925
  %v1962 = vmul.f32 %v1674, %v1926
  %v1963 = vld [vmem:[%s17] sm:$0xff]
  %v1964 = vld [vmem:[%s17 + $0x8] sm:$0xff]
  %v1965 = vld [vmem:[%s17 + $0x10] sm:$0xff]
  %v1966 = vld [vmem:[%s17 + $0x18] sm:$0xff]
  %v1967 = vld [vmem:[%s17 + $0x20] sm:$0xff]
  %v1968 = vld [vmem:[%s17 + $0x28] sm:$0xff]
  %v1969 = vld [vmem:[%s17 + $0x30] sm:$0xff]
  %v1970 = vld [vmem:[%s17 + $0x38] sm:$0xff]
  %v1971 = vld [vmem:[%s17 + $0x40] sm:$0xff]
  %v1972 = vld [vmem:[%s17 + $0x48] sm:$0xff]
  %v1973 = vld [vmem:[%s17 + $0x50] sm:$0xff]
  %v1974 = vld [vmem:[%s17 + $0x58] sm:$0xff]
  %v1975 = vld [vmem:[%s17 + $0x60] sm:$0xff]
  %v1976 = vld [vmem:[%s17 + $0x68] sm:$0xff]
  %v1977 = vld [vmem:[%s17 + $0x70] sm:$0xff]
  %v1978 = vld [vmem:[%s17 + $0x78] sm:$0xff]
  %v1979 = vld [vmem:[%s17 + $0x80] sm:$0xff]
  %v1980 = vld [vmem:[%s17 + $0x88] sm:$0xff]
  %v1981 = vld [vmem:[%s17 + $0x90] sm:$0xff]
  %v1982 = vld [vmem:[%s17 + $0x98] sm:$0xff]
  %v1983 = vld [vmem:[%s17 + $0xa0] sm:$0xff]
  %v1984 = vld [vmem:[%s17 + $0xa8] sm:$0xff]
  %v1985 = vld [vmem:[%s17 + $0xb0] sm:$0xff]
  %v1986 = vld [vmem:[%s17 + $0xb8] sm:$0xff]
  %v1987 = vld [vmem:[%s17 + $0xc0] sm:$0xff]
  %v1988 = vld [vmem:[%s17 + $0xc8] sm:$0xff]
  %v1989 = vld [vmem:[%s17 + $0xd0] sm:$0xff]
  %v1990 = vld [vmem:[%s17 + $0xd8] sm:$0xff]
  %v1991 = vld [vmem:[%s17 + $0xe0] sm:$0xff]
  %v1992 = vld [vmem:[%s17 + $0xe8] sm:$0xff]
  %v1993 = vld [vmem:[%s17 + $0xf0] sm:$0xff]
  %v1994 = vld [vmem:[%s17 + $0xf8] sm:$0xff]
  %v1995 = vld [vmem:[%s17 + $0x100] sm:$0xff]
  %v1996 = vld [vmem:[%s17 + $0x108] sm:$0xff]
  %v1997 = vld [vmem:[%s17 + $0x110] sm:$0xff]
  %v1998 = vld [vmem:[%s17 + $0x118] sm:$0xff]
  %v1999 = vld [vmem:[%s17 + $0x120] sm:$0xff]
  %v2000 = vld [vmem:[%s17 + $0x128] sm:$0xff]
  %v2001 = vld [vmem:[%s17 + $0x130] sm:$0xff]
  %v2002 = vld [vmem:[%s17 + $0x138] sm:$0xff]
  %v2003 = vld [vmem:[%s17 + $0x140] sm:$0xff]
  %v2004 = vld [vmem:[%s17 + $0x148] sm:$0xff]
  %v2005 = vld [vmem:[%s17 + $0x150] sm:$0xff]
  %v2006 = vld [vmem:[%s17 + $0x158] sm:$0xff]
  %v2007 = vld [vmem:[%s17 + $0x160] sm:$0xff]
  %v2008 = vld [vmem:[%s17 + $0x168] sm:$0xff]
  %v2009 = vld [vmem:[%s17 + $0x170] sm:$0xff]
  %v2010 = vld [vmem:[%s17 + $0x178] sm:$0xff]
  %v2011 = vld [vmem:[%s17 + $0x180] sm:$0xff]
  %v2012 = vld [vmem:[%s17 + $0x188] sm:$0xff]
  %v2013 = vld [vmem:[%s17 + $0x190] sm:$0xff]
  %v2014 = vld [vmem:[%s17 + $0x198] sm:$0xff]
  %v2015 = vld [vmem:[%s17 + $0x1a0] sm:$0xff]
  %v2016 = vld [vmem:[%s17 + $0x1a8] sm:$0xff]
  %v2017 = vld [vmem:[%s17 + $0x1b0] sm:$0xff]
  %v2018 = vld [vmem:[%s17 + $0x1b8] sm:$0xff]
  %v2019 = vld [vmem:[%s17 + $0x1c0] sm:$0xff]
  %v2020 = vld [vmem:[%s17 + $0x1c8] sm:$0xff]
  %v2021 = vld [vmem:[%s17 + $0x1d0] sm:$0xff]
  %v2022 = vld [vmem:[%s17 + $0x1d8] sm:$0xff]
  %v2023 = vld [vmem:[%s17 + $0x1e0] sm:$0xff]
  %v2024 = vld [vmem:[%s17 + $0x1e8] sm:$0xff]
  %v2025 = vld [vmem:[%s17 + $0x1f0] sm:$0xff]
  %v2026 = vld [vmem:[%s17 + $0x1f8] sm:$0xff]
  %v2027 = vld [vmem:[%s18] sm:$0x1]
  %v2029 = vlaneseq
  %v2030 = vshrl.u32 %v2029, 7
  %v2031 = vsub.s32 0, %v2030
  %v2032 = vrot.slane %v2027, %v2031
  %2034 = vmatprep.subr.mxu0 0.0
  %2035 = vmatpush1.msra.mxu0 %v1963
  %2036 = vmatprep.subr.mxu0 0.0
  %2037 = vmatpush1.msra.mxu0 %v1964
  %2038 = vmatprep.subr.mxu0 0.0
  %2039 = vmatpush1.msra.mxu0 %v1965
  %2040 = vmatprep.subr.mxu0 0.0
  %2041 = vmatpush1.msra.mxu0 %v1966
  %2042 = vmatprep.subr.mxu0 0.0
  %2043 = vmatpush1.msra.mxu0 %v1967
  %2044 = vmatprep.subr.mxu0 0.0
  %2045 = vmatpush1.msra.mxu0 %v1968
  %2046 = vmatprep.subr.mxu0 0.0
  %2047 = vmatpush1.msra.mxu0 %v1969
  %2048 = vmatprep.subr.mxu0 0.0
  %2049 = vmatpush1.msra.mxu0 %v1970
  %2050 = vmatprep.subr.mxu0 0.0
  %2051 = vmatpush1.msra.mxu0 %v1971
  %2052 = vmatprep.subr.mxu0 0.0
  %2053 = vmatpush1.msra.mxu0 %v1972
  %2054 = vmatprep.subr.mxu0 0.0
  %2055 = vmatpush1.msra.mxu0 %v1973
  %2056 = vmatprep.subr.mxu0 0.0
  %2057 = vmatpush1.msra.mxu0 %v1974
  %2058 = vmatprep.subr.mxu0 0.0
  %2059 = vmatpush1.msra.mxu0 %v1975
  %2060 = vmatprep.subr.mxu0 0.0
  %2061 = vmatpush1.msra.mxu0 %v1976
  %2062 = vmatprep.subr.mxu0 0.0
  %2063 = vmatpush1.msra.mxu0 %v1977
  %2064 = vmatprep.subr.mxu0 0.0
  %2065 = vmatpush1.msra.mxu0 %v1978
  %2066 = vmatprep.subr.mxu0 0.0
  %2067 = vmatpush1.msra.mxu0 %v1979
  %2068 = vmatprep.subr.mxu0 0.0
  %2069 = vmatpush1.msra.mxu0 %v1980
  %2070 = vmatprep.subr.mxu0 0.0
  %2071 = vmatpush1.msra.mxu0 %v1981
  %2072 = vmatprep.subr.mxu0 0.0
  %2073 = vmatpush1.msra.mxu0 %v1982
  %2074 = vmatprep.subr.mxu0 0.0
  %2075 = vmatpush1.msra.mxu0 %v1983
  %2076 = vmatprep.subr.mxu0 0.0
  %2077 = vmatpush1.msra.mxu0 %v1984
  %2078 = vmatprep.subr.mxu0 0.0
  %2079 = vmatpush1.msra.mxu0 %v1985
  %2080 = vmatprep.subr.mxu0 0.0
  %2081 = vmatpush1.msra.mxu0 %v1986
  %2082 = vmatprep.subr.mxu0 0.0
  %2083 = vmatpush1.msra.mxu0 %v1987
  %2084 = vmatprep.subr.mxu0 0.0
  %2085 = vmatpush1.msra.mxu0 %v1988
  %2086 = vmatprep.subr.mxu0 0.0
  %2087 = vmatpush1.msra.mxu0 %v1989
  %2088 = vmatprep.subr.mxu0 0.0
  %2089 = vmatpush1.msra.mxu0 %v1990
  %2090 = vmatprep.subr.mxu0 0.0
  %2091 = vmatpush1.msra.mxu0 %v1991
  %2092 = vmatprep.subr.mxu0 0.0
  %2093 = vmatpush1.msra.mxu0 %v1992
  %2094 = vmatprep.subr.mxu0 0.0
  %2095 = vmatpush1.msra.mxu0 %v1993
  %2096 = vmatprep.subr.mxu0 0.0
  %2097 = vmatpush1.msra.mxu0 %v1994
  %2098 = vmatprep.mubr.f32.mxu0 %v1928
  %2099 = vmatmul.mubr.f32.gmra.mrb[0].mxu0 %v1927
  %v2100 = vpop.f32.mrb[0].mxu0
  %v2101 = vadd.f32 %v2032, %v2100
  %v2102 = vpop.f32.mrb[0].mxu0
  %2103 = vmatprep.mubr.f32.mxu0 %v1932
  %2104 = vmatmul.mubr.f32.gmra.mrb[0].mxu0 %v1931
  %v2105 = vpop.f32.mrb[0].mxu0
  %v2106 = vadd.f32 %v2032, %v2105
  %v2107 = vpop.f32.mrb[0].mxu0
  %2108 = vmatprep.mubr.f32.mxu0 %v1936
  %2109 = vmatmul.mubr.f32.gmra.mrb[0].mxu0 %v1935
  %v2110 = vpop.f32.mrb[0].mxu0
  %v2111 = vadd.f32 %v2032, %v2110
  %v2112 = vpop.f32.mrb[0].mxu0
  %2113 = vmatprep.mubr.f32.mxu0 %v1940
  %2114 = vmatmul.mubr.f32.gmra.mrb[0].mxu0 %v1939
  %v2115 = vpop.f32.mrb[0].mxu0
  %v2116 = vadd.f32 %v2032, %v2115
  %v2117 = vpop.f32.mrb[0].mxu0
  %2118 = vmatprep.mubr.f32.mxu0 %v1944
  %2119 = vmatmul.mubr.f32.gmra.mrb[0].mxu0 %v1943
  %v2120 = vpop.f32.mrb[0].mxu0
  %v2121 = vadd.f32 %v2032, %v2120
  %v2122 = vpop.f32.mrb[0].mxu0
  %2123 = vmatprep.mubr.f32.mxu0 %v1948
  %2124 = vmatmul.mubr.f32.gmra.mrb[0].mxu0 %v1947
  %v2125 = vpop.f32.mrb[0].mxu0
  %v2126 = vadd.f32 %v2032, %v2125
  %v2127 = vpop.f32.mrb[0].mxu0
  %2128 = vmatprep.mubr.f32.mxu0 %v1952
  %2129 = vmatmul.mubr.f32.gmra.mrb[0].mxu0 %v1951
  %v2130 = vpop.f32.mrb[0].mxu0
  %v2131 = vadd.f32 %v2032, %v2130
  %v2132 = vpop.f32.mrb[0].mxu0
  %2133 = vmatprep.mubr.f32.mxu0 %v1956
  %2134 = vmatmul.mubr.f32.gmra.mrb[0].mxu0 %v1955
  %v2135 = vpop.f32.mrb[0].mxu0
  %v2136 = vadd.f32 %v2032, %v2135
  %v2137 = vpop.f32.mrb[0].mxu0
  %2138 = vmatprep.mubr.f32.mxu0 %v1960
  %2139 = vmatmul.mubr.f32.gmra.mrb[0].mxu0 %v1959
  %v2140 = vpop.f32.mrb[0].mxu0
  %v2141 = vadd.f32 %v2032, %v2140
  %v2142 = vpop.f32.mrb[0].mxu0
  %2143 = vdwg.mxu0
  %2144 = vmatprep.subr.mxu0 0.0
  %2145 = vmatpush1.msra.mxu0 %v1995
  %2146 = vmatprep.subr.mxu0 0.0
  %2147 = vmatpush1.msra.mxu0 %v1996
  %2148 = vmatprep.subr.mxu0 0.0
  %2149 = vmatpush1.msra.mxu0 %v1997
  %2150 = vmatprep.subr.mxu0 0.0
  %2151 = vmatpush1.msra.mxu0 %v1998
  %2152 = vmatprep.subr.mxu0 0.0
  %2153 = vmatpush1.msra.mxu0 %v1999
  %2154 = vmatprep.subr.mxu0 0.0
  %2155 = vmatpush1.msra.mxu0 %v2000
  %2156 = vmatprep.subr.mxu0 0.0
  %2157 = vmatpush1.msra.mxu0 %v2001
  %2158 = vmatprep.subr.mxu0 0.0
  %2159 = vmatpush1.msra.mxu0 %v2002
  %2160 = vmatprep.subr.mxu0 0.0
  %2161 = vmatpush1.msra.mxu0 %v2003
  %2162 = vmatprep.subr.mxu0 0.0
  %2163 = vmatpush1.msra.mxu0 %v2004
  %2164 = vmatprep.subr.mxu0 0.0
  %2165 = vmatpush1.msra.mxu0 %v2005
  %2166 = vmatprep.subr.mxu0 0.0
  %2167 = vmatpush1.msra.mxu0 %v2006
  %2168 = vmatprep.subr.mxu0 0.0
  %2169 = vmatpush1.msra.mxu0 %v2007
  %2170 = vmatprep.subr.mxu0 0.0
  %2171 = vmatpush1.msra.mxu0 %v2008
  %2172 = vmatprep.subr.mxu0 0.0
  %2173 = vmatpush1.msra.mxu0 %v2009
  %2174 = vmatprep.subr.mxu0 0.0
  %2175 = vmatpush1.msra.mxu0 %v2010
  %2176 = vmatprep.subr.mxu0 0.0
  %2177 = vmatpush1.msra.mxu0 %v2011
  %2178 = vmatprep.subr.mxu0 0.0
  %2179 = vmatpush1.msra.mxu0 %v2012
  %2180 = vmatprep.subr.mxu0 0.0
  %2181 = vmatpush1.msra.mxu0 %v2013
  %2182 = vmatprep.subr.mxu0 0.0
  %2183 = vmatpush1.msra.mxu0 %v2014
  %2184 = vmatprep.subr.mxu0 0.0
  %2185 = vmatpush1.msra.mxu0 %v2015
  %2186 = vmatprep.subr.mxu0 0.0
  %2187 = vmatpush1.msra.mxu0 %v2016
  %2188 = vmatprep.subr.mxu0 0.0
  %2189 = vmatpush1.msra.mxu0 %v2017
  %2190 = vmatprep.subr.mxu0 0.0
  %2191 = vmatpush1.msra.mxu0 %v2018
  %2192 = vmatprep.subr.mxu0 0.0
  %2193 = vmatpush1.msra.mxu0 %v2019
  %2194 = vmatprep.subr.mxu0 0.0
  %2195 = vmatpush1.msra.mxu0 %v2020
  %2196 = vmatprep.subr.mxu0 0.0
  %2197 = vmatpush1.msra.mxu0 %v2021
  %2198 = vmatprep.subr.mxu0 0.0
  %2199 = vmatpush1.msra.mxu0 %v2022
  %2200 = vmatprep.subr.mxu0 0.0
  %2201 = vmatpush1.msra.mxu0 %v2023
  %2202 = vmatprep.subr.mxu0 0.0
  %2203 = vmatpush1.msra.mxu0 %v2024
  %2204 = vmatprep.subr.mxu0 0.0
  %2205 = vmatpush1.msra.mxu0 %v2025
  %2206 = vmatprep.subr.mxu0 0.0
  %2207 = vmatpush1.msra.mxu0 %v2026
  %2208 = vmatprep.mubr.f32.mxu0 %v1930
  %2209 = vmatmul.mubr.f32.gmra.mrb[0].mxu0 %v1929
  %v2210 = vpop.f32.mrb[0].mxu0
  %v2211 = vadd.f32 %v2101, %v2210
  %v2212 = vpop.f32.mrb[0].mxu0
  %2213 = vmatprep.mubr.f32.mxu0 %v1934
  %2214 = vmatmul.mubr.f32.gmra.mrb[0].mxu0 %v1933
  %v2215 = vpop.f32.mrb[0].mxu0
  %v2216 = vadd.f32 %v2106, %v2215
  %v2217 = vpop.f32.mrb[0].mxu0
  %2218 = vmatprep.mubr.f32.mxu0 %v1938
  %2219 = vmatmul.mubr.f32.gmra.mrb[0].mxu0 %v1937
  %v2220 = vpop.f32.mrb[0].mxu0
  %v2221 = vadd.f32 %v2111, %v2220
  %v2222 = vpop.f32.mrb[0].mxu0
  %2223 = vmatprep.mubr.f32.mxu0 %v1942
  %2224 = vmatmul.mubr.f32.gmra.mrb[0].mxu0 %v1941
  %v2225 = vpop.f32.mrb[0].mxu0
  %v2226 = vadd.f32 %v2116, %v2225
  %v2227 = vpop.f32.mrb[0].mxu0
  %2228 = vmatprep.mubr.f32.mxu0 %v1946
  %2229 = vmatmul.mubr.f32.gmra.mrb[0].mxu0 %v1945
  %v2230 = vpop.f32.mrb[0].mxu0
  %v2231 = vadd.f32 %v2121, %v2230
  %v2232 = vpop.f32.mrb[0].mxu0
  %2233 = vmatprep.mubr.f32.mxu0 %v1950
  %2234 = vmatmul.mubr.f32.gmra.mrb[0].mxu0 %v1949
  %v2235 = vpop.f32.mrb[0].mxu0
  %v2236 = vadd.f32 %v2126, %v2235
  %v2237 = vpop.f32.mrb[0].mxu0
  %2238 = vmatprep.mubr.f32.mxu0 %v1954
  %2239 = vmatmul.mubr.f32.gmra.mrb[0].mxu0 %v1953
  %v2240 = vpop.f32.mrb[0].mxu0
  %v2241 = vadd.f32 %v2131, %v2240
  %v2242 = vpop.f32.mrb[0].mxu0
  %2243 = vmatprep.mubr.f32.mxu0 %v1958
  %2244 = vmatmul.mubr.f32.gmra.mrb[0].mxu0 %v1957
  %v2245 = vpop.f32.mrb[0].mxu0
  %v2246 = vadd.f32 %v2136, %v2245
  %v2247 = vpop.f32.mrb[0].mxu0
  %2248 = vmatprep.mubr.f32.mxu0 %v1962
  %2249 = vmatmul.mubr.f32.gmra.mrb[0].mxu0 %v1961
  %v2250 = vpop.f32.mrb[0].mxu0
  %v2251 = vadd.f32 %v2141, %v2250
  %v2252 = vpop.f32.mrb[0].mxu0
  %2253 = vdwg.mxu0
  %v2254 = vadd.f32 %v1157, %v2211
  %v2255 = vadd.f32 %v1158, %v2216
  %v2256 = vadd.f32 %v1159, %v2221
  %v2257 = vadd.f32 %v1160, %v2226
  %v2258 = vadd.f32 %v1161, %v2231
  %v2259 = vadd.f32 %v1162, %v2236
  %v2260 = vadd.f32 %v1163, %v2241
  %v2261 = vadd.f32 %v1164, %v2246
  %v2262 = vadd.f32 %v1165, %v2251
  %2263 = vst [vmem:[%s21] sm:$0xff] %v2254
  %2264 = vst [vmem:[%s21 + $0x8] sm:$0xff] %v2255
  %2265 = vst [vmem:[%s21 + $0x10] sm:$0xff] %v2256
  %2266 = vst [vmem:[%s21 + $0x18] sm:$0xff] %v2257
  %2267 = vst [vmem:[%s21 + $0x20] sm:$0xff] %v2258
  %2268 = vst [vmem:[%s21 + $0x28] sm:$0xff] %v2259
  %2269 = vst [vmem:[%s21 + $0x30] sm:$0xff] %v2260
  %2270 = vst [vmem:[%s21 + $0x38] sm:$0xff] %v2261
  %2271 = vst [vmem:[%s21 + $0x40] sm:$0xff] %v2262
  %v2272 = vld [vmem:[%s19] sm:$0xff]
  %v2273 = vld [vmem:[%s19 + $0x8] sm:$0xff]
  %v2274 = vld [vmem:[%s19 + $0x10] sm:$0xff]
  %v2275 = vld [vmem:[%s19 + $0x18] sm:$0xff]
  %v2276 = vld [vmem:[%s19 + $0x20] sm:$0xff]
  %v2277 = vld [vmem:[%s19 + $0x28] sm:$0xff]
  %v2278 = vld [vmem:[%s19 + $0x30] sm:$0xff]
  %v2279 = vld [vmem:[%s19 + $0x38] sm:$0xff]
  %v2280 = vld [vmem:[%s19 + $0x40] sm:$0xff]
  %v2281 = vld [vmem:[%s19 + $0x48] sm:$0xff]
  %v2282 = vld [vmem:[%s19 + $0x50] sm:$0xff]
  %v2283 = vld [vmem:[%s19 + $0x58] sm:$0xff]
  %v2284 = vld [vmem:[%s19 + $0x60] sm:$0xff]
  %v2285 = vld [vmem:[%s19 + $0x68] sm:$0xff]
  %v2286 = vld [vmem:[%s19 + $0x70] sm:$0xff]
  %v2287 = vld [vmem:[%s19 + $0x78] sm:$0xff]
  %v2288 = vld [vmem:[%s20] sm:$0x1]
  %v2290 = vlaneseq
  %v2291 = vshrl.u32 %v2290, 7
  %v2292 = vsub.s32 0, %v2291
  %v2293 = vrot.slane %v2288, %v2292
  %2295 = vmatprep.subr.mxu0 0.0
  %2296 = vmatpush1.msra.mxu0 %v2272
  %2297 = vmatprep.subr.mxu0 0.0
  %2298 = vmatpush1.msra.mxu0 %v2273
  %2299 = vmatprep.subr.mxu0 0.0
  %2300 = vmatpush1.msra.mxu0 %v2274
  %2301 = vmatprep.subr.mxu0 0.0
  %2302 = vmatpush1.msra.mxu0 %v2275
  %2303 = vmatprep.subr.mxu0 0.0
  %2304 = vmatpush1.msra.mxu0 %v2276
  %2305 = vmatprep.subr.mxu0 0.0
  %2306 = vmatpush1.msra.mxu0 %v2277
  %2307 = vmatprep.subr.mxu0 0.0
  %2308 = vmatpush1.msra.mxu0 %v2278
  %2309 = vmatprep.subr.mxu0 0.0
  %2310 = vmatpush1.msra.mxu0 %v2279
  %2311 = vmatprep.subr.mxu0 0.0
  %2312 = vmatpush1.msra.mxu0 %v2280
  %2313 = vmatprep.subr.mxu0 0.0
  %2314 = vmatpush1.msra.mxu0 %v2281
  %2315 = vmatprep.subr.mxu0 0.0
  %2316 = vmatpush1.msra.mxu0 %v2282
  %2317 = vmatprep.subr.mxu0 0.0
  %2318 = vmatpush1.msra.mxu0 %v2283
  %2319 = vmatprep.subr.mxu0 0.0
  %2320 = vmatpush1.msra.mxu0 %v2284
  %2321 = vmatprep.subr.mxu0 0.0
  %2322 = vmatpush1.msra.mxu0 %v2285
  %2323 = vmatprep.subr.mxu0 0.0
  %2324 = vmatpush1.msra.mxu0 %v2286
  %2325 = vmatprep.subr.mxu0 0.0
  %2326 = vmatpush1.msra.mxu0 %v2287
  %2327 = vmatprep.subr.mxu0 0.0
  %2328 = vmatpush1.msra.mxu0 0.0
  %2329 = vmatprep.subr.mxu0 0.0
  %2330 = vmatpush1.msra.mxu0 0.0
  %2331 = vmatprep.subr.mxu0 0.0
  %2332 = vmatpush1.msra.mxu0 0.0
  %2333 = vmatprep.subr.mxu0 0.0
  %2334 = vmatpush1.msra.mxu0 0.0
  %2335 = vmatprep.subr.mxu0 0.0
  %2336 = vmatpush1.msra.mxu0 0.0
  %2337 = vmatprep.subr.mxu0 0.0
  %2338 = vmatpush1.msra.mxu0 0.0
  %2339 = vmatprep.subr.mxu0 0.0
  %2340 = vmatpush1.msra.mxu0 0.0
  %2341 = vmatprep.subr.mxu0 0.0
  %2342 = vmatpush1.msra.mxu0 0.0
  %2343 = vmatprep.subr.mxu0 0.0
  %2344 = vmatpush1.msra.mxu0 0.0
  %2345 = vmatprep.subr.mxu0 0.0
  %2346 = vmatpush1.msra.mxu0 0.0
  %2347 = vmatprep.subr.mxu0 0.0
  %2348 = vmatpush1.msra.mxu0 0.0
  %2349 = vmatprep.subr.mxu0 0.0
  %2350 = vmatpush1.msra.mxu0 0.0
  %2351 = vmatprep.subr.mxu0 0.0
  %2352 = vmatpush1.msra.mxu0 0.0
  %2353 = vmatprep.subr.mxu0 0.0
  %2354 = vmatpush1.msra.mxu0 0.0
  %2355 = vmatprep.subr.mxu0 0.0
  %2356 = vmatpush1.msra.mxu0 0.0
  %2357 = vmatprep.subr.mxu0 0.0
  %2358 = vmatpush1.msra.mxu0 0.0
  %2359 = vmatprep.mubr.f32.mxu0 0.0
  %2360 = vmatmul.mubr.f32.gmra.mrb[0].mxu0 %v2254
  %v2361 = vpop.f32.mrb[0].mxu0
  %v2362 = vadd.f32 %v2293, %v2361
  %v2363 = vpop.f32.mrb[0].mxu0
  %2364 = vmatprep.mubr.f32.mxu0 0.0
  %2365 = vmatmul.mubr.f32.gmra.mrb[0].mxu0 %v2255
  %v2366 = vpop.f32.mrb[0].mxu0
  %v2367 = vadd.f32 %v2293, %v2366
  %v2368 = vpop.f32.mrb[0].mxu0
  %2369 = vmatprep.mubr.f32.mxu0 0.0
  %2370 = vmatmul.mubr.f32.gmra.mrb[0].mxu0 %v2256
  %v2371 = vpop.f32.mrb[0].mxu0
  %v2372 = vadd.f32 %v2293, %v2371
  %v2373 = vpop.f32.mrb[0].mxu0
  %2374 = vmatprep.mubr.f32.mxu0 0.0
  %2375 = vmatmul.mubr.f32.gmra.mrb[0].mxu0 %v2257
  %v2376 = vpop.f32.mrb[0].mxu0
  %v2377 = vadd.f32 %v2293, %v2376
  %v2378 = vpop.f32.mrb[0].mxu0
  %2379 = vmatprep.mubr.f32.mxu0 0.0
  %2380 = vmatmul.mubr.f32.gmra.mrb[0].mxu0 %v2258
  %v2381 = vpop.f32.mrb[0].mxu0
  %v2382 = vadd.f32 %v2293, %v2381
  %v2383 = vpop.f32.mrb[0].mxu0
  %2384 = vmatprep.mubr.f32.mxu0 0.0
  %2385 = vmatmul.mubr.f32.gmra.mrb[0].mxu0 %v2259
  %v2386 = vpop.f32.mrb[0].mxu0
  %v2387 = vadd.f32 %v2293, %v2386
  %v2388 = vpop.f32.mrb[0].mxu0
  %2389 = vmatprep.mubr.f32.mxu0 0.0
  %2390 = vmatmul.mubr.f32.gmra.mrb[0].mxu0 %v2260
  %v2391 = vpop.f32.mrb[0].mxu0
  %v2392 = vadd.f32 %v2293, %v2391
  %v2393 = vpop.f32.mrb[0].mxu0
  %2394 = vmatprep.mubr.f32.mxu0 0.0
  %2395 = vmatmul.mubr.f32.gmra.mrb[0].mxu0 %v2261
  %v2396 = vpop.f32.mrb[0].mxu0
  %v2397 = vadd.f32 %v2293, %v2396
  %v2398 = vpop.f32.mrb[0].mxu0
  %2399 = vmatprep.mubr.f32.mxu0 0.0
  %2400 = vmatmul.mubr.f32.gmra.mrb[0].mxu0 %v2262
  %v2401 = vpop.f32.mrb[0].mxu0
  %v2402 = vadd.f32 %v2293, %v2401
  %v2403 = vpop.f32.mrb[0].mxu0
  %2404 = vdwg.mxu0
  %2405 = vst [vmem:[%s22] sm:$0xff] %v2362
  %2406 = vst [vmem:[%s22 + $0x8] sm:$0xff] %v2367
  %2407 = vst [vmem:[%s22 + $0x10] sm:$0xff] %v2372
  %2408 = vst [vmem:[%s22 + $0x18] sm:$0xff] %v2377
  %2409 = vst [vmem:[%s22 + $0x20] sm:$0xff] %v2382
  %2410 = vst [vmem:[%s22 + $0x28] sm:$0xff] %v2387
  %2411 = vst [vmem:[%s22 + $0x30] sm:$0xff] %v2392
  %2412 = vst [vmem:[%s22 + $0x38] sm:$0xff] %v2397
  %2413 = vst [vmem:[%s22 + $0x40] sm:$0xff] %v2402
  // Predicated region
  $region86: #{pose_bert_forward.1} parent=0 // pred_check
    _
  $region87: #{pose_bert_forward.1} parent=0 // pred_check_branch
    %2415 = sbr.rel (0) target = $region89
  $region88: #{pose_bert_forward.1} parent=0 // pred_region
    _
  $region89: #{pose_bert_forward.1} parent=0 // pred_fallthru
    _
  // Predicated region
  $region90: #{pose_bert_forward.1} parent=0 // pred_check
    _
  $region91: #{pose_bert_forward.1} parent=0 // pred_check_branch
    %2417 = sbr.rel (0) target = $region93
  $region92: #{pose_bert_forward.1} parent=0 // pred_region
    _
  $region93: #{pose_bert_forward.1} parent=0 // pred_fallthru
    _
  // Predicated region
  $region94: #{pose_bert_forward.1} parent=0 // pred_check
    _
  $region95: #{pose_bert_forward.1} parent=0 // pred_check_branch
    %2419 = sbr.rel (0) target = $region97
  $region96: #{pose_bert_forward.1} parent=0 // pred_region
    _
  $region97: #{pose_bert_forward.1} parent=0 // pred_fallthru
    _
  // Predicated region
  $region98: #{pose_bert_forward.1} parent=0 // pred_check
    _
  $region99: #{pose_bert_forward.1} parent=0 // pred_check_branch
    %2421 = sbr.rel (0) target = $region101
  $region100: #{pose_bert_forward.1} parent=0 // pred_region
    _
  $region101: #{pose_bert_forward.1} parent=0 // pred_fallthru
    _

</llo_original>
